<compile_context>
chip_gen: v6e
topology: v6e:2x2x1
jax: 0.10.0
libtpu: 0.0.40
codegen_flags: <defaults>
</compile_context>

<pallas_src>
import functools

import jax
import jax.numpy as jnp
import numpy as np
from jax.experimental import pallas as pl
from jax.experimental.pallas import tpu as pltpu


# --------------------------------------------------------------------------
# Kernel 1: fused backbone stand-in, ONE grid step per batch element.
#   conv1 (7x7/s2) as im2col matmul + bias + ReLU
#   -> 4x4 avg-pool as a small bf16 constant matmul (one MXU pass, f32 acc)
#   -> 1x1 channel projection + bias + ReLU
# Per-batch tile: 784 im2col rows in, (49, 256) NHWC feature rows out.
# --------------------------------------------------------------------------
def backbone_kernel(cols_ref, wc_ref, bc_ref, pool_ref, wp_ref, bp_ref, out_ref):
    # 7x7/s2 conv as im2col matmul (bf16 feed, f32 accumulate) + bias + ReLU.
    h1 = jnp.dot(cols_ref[...], wc_ref[...], preferred_element_type=jnp.float32)
    h1 = jnp.maximum(h1 + bc_ref[...], 0.0)                               # (784, 64) f32

    # 4x4 average pool as a bf16 constant matmul (entries exactly 1/16), f32 accumulate.
    pooled = jnp.dot(pool_ref[...], h1.astype(pool_ref.dtype),
                     preferred_element_type=jnp.float32)                  # (49, 64) f32

    # 1x1 channel projection + bias + ReLU.
    proj = jnp.dot(pooled.astype(wp_ref.dtype), wp_ref[...],
                   preferred_element_type=jnp.float32)
    proj = jnp.maximum(proj + bp_ref[...], 0.0)                           # (49, 256) f32

    out_ref[0] = proj.astype(out_ref.dtype)                               # lane-dense (49,256) store


def pallas_backbone(cols, w_conv1, b_conv1, pool_mat, w_proj, b_proj,
                    *, batch, tile_m, enc_hw, c_out):
    M, K = cols.shape
    C1 = w_conv1.shape[1]
    flops = 2 * (M * K * C1                      # conv1 matmul
                 + batch * enc_hw * tile_m * C1  # pooling matmul
                 + batch * enc_hw * C1 * c_out)  # 1x1 projection
    bytes_accessed = int(
        cols.size * cols.dtype.itemsize
        + w_conv1.size * w_conv1.dtype.itemsize
        + pool_mat.size * pool_mat.dtype.itemsize
        + w_proj.size * w_proj.dtype.itemsize
        + b_conv1.size * 4 + b_proj.size * 4
        + batch * enc_hw * c_out * 2)

    return pl.pallas_call(
        backbone_kernel,
        out_shape=jax.ShapeDtypeStruct((batch, enc_hw, c_out), jnp.bfloat16),
        grid=(batch,),
        in_specs=[
            pl.BlockSpec((tile_m, K), lambda b: (b, 0)),       # im2col rows for this batch
            pl.BlockSpec((K, C1), lambda b: (0, 0)),           # conv1 weight (resident)
            pl.BlockSpec((1, C1), lambda b: (0, 0)),           # conv1 bias
            pl.BlockSpec((enc_hw, tile_m), lambda b: (0, 0)),  # pooling matrix (resident, bf16)
            pl.BlockSpec((C1, c_out), lambda b: (0, 0)),       # 1x1 proj weight
            pl.BlockSpec((1, c_out), lambda b: (0, 0)),        # proj bias
        ],
        out_specs=pl.BlockSpec((1, enc_hw, c_out), lambda b: (b, 0, 0)),
        compiler_params=pltpu.CompilerParams(dimension_semantics=("parallel",)),
        cost_estimate=pl.CostEstimate(flops=int(flops), transcendentals=0,
                                      bytes_accessed=bytes_accessed),
    )(cols, w_conv1, b_conv1, pool_mat, w_proj, b_proj)


# --------------------------------------------------------------------------
# Kernel 2: fused MLP head:  out = relu(x @ W1 + b1) @ W2 + b2
# K-reduction grid over Din so the 3.2 MB bf16 W1 stream overlaps compute
# (f32 VMEM accumulator, init on k==0, bias/ReLU/W2 finalize on last k).
# Class dim is lane-padded to 128 so the final store is an unmasked vst.
# Dropout = identity at inference.
# --------------------------------------------------------------------------
def mlp_head_kernel(x_ref, w1_ref, b1_ref, w2_ref, b2_ref, out_ref, acc_ref):
    k = pl.program_id(0)

    @pl.when(k == 0)
    def _():
        acc_ref[...] = jnp.zeros_like(acc_ref)

    acc_ref[...] += jnp.dot(x_ref[...], w1_ref[...],
                            preferred_element_type=jnp.float32)

    @pl.when(k == pl.num_programs(0) - 1)
    def _():
        h = jnp.maximum(acc_ref[...] + b1_ref[...], 0.0)
        out = jnp.dot(h.astype(w2_ref.dtype), w2_ref[...],
                      preferred_element_type=jnp.float32)
        out_ref[...] = (out + b2_ref[...]).astype(out_ref.dtype)


def pallas_mlp_head(flat, w1, b1, w2, b2, *, tile_k):
    B, Din = flat.shape
    H = w1.shape[1]
    Npad = w2.shape[1]
    assert Din % tile_k == 0
    nk = Din // tile_k
    flops = 2 * (B * Din * H + B * H * Npad)
    bytes_accessed = int(
        flat.size * flat.dtype.itemsize + w1.size * w1.dtype.itemsize
        + w2.size * w2.dtype.itemsize + b1.size * 4 + b2.size * 4 + B * Npad * 4)

    return pl.pallas_call(
        mlp_head_kernel,
        out_shape=jax.ShapeDtypeStruct((B, Npad), jnp.float32),
        grid=(nk,),
        in_specs=[
            pl.BlockSpec((B, tile_k), lambda k: (0, k)),   # activation K-chunk
            pl.BlockSpec((tile_k, H), lambda k: (k, 0)),   # W1 K-chunk (streamed/pipelined)
            pl.BlockSpec((1, H), lambda k: (0, 0)),        # b1 (resident)
            pl.BlockSpec((H, Npad), lambda k: (0, 0)),     # W2 (resident)
            pl.BlockSpec((1, Npad), lambda k: (0, 0)),     # b2 (resident)
        ],
        out_specs=pl.BlockSpec((B, Npad), lambda k: (0, 0)),
        scratch_shapes=[pltpu.VMEM((B, H), jnp.float32)],
        compiler_params=pltpu.CompilerParams(dimension_semantics=("arbitrary",)),
        cost_estimate=pl.CostEstimate(flops=int(flops), transcendentals=0,
                                      bytes_accessed=bytes_accessed),
    )(flat, w1, b1, w2, b2)


# --------------------------------------------------------------------------
# Full IMG forward (synthetic small-scale config).
# --------------------------------------------------------------------------
def img_forward(params, image, question, question_len, *, enc_size, conv_out_ch,
                n_class, head_tile_k):
    # question / question_len are unused in IMG.forward (kept for signature parity).
    del question, question_len
    B = image.shape[0]

    # --- im2col in NHWC directly (no NCHW->NHWC transpose of the patch tensor) -----
    patches = jax.lax.conv_general_dilated_patches(
        image, filter_shape=(7, 7), window_strides=(2, 2),
        padding=((3, 3), (3, 3)),
        dimension_numbers=("NCHW", "OIHW", "NHWC"),
    )  # (B, Ho, Wo, Cin*49), feature dim ordered (c, kh, kw)
    _, Ho, Wo, CKK = patches.shape
    assert Ho % enc_size == 0 and Wo % enc_size == 0

    cols = patches.reshape(B * Ho * Wo, CKK)
    # Pad K (147 -> 256) so vreg lanes / MXU feed stay aligned; cast to bf16 (f32 acc in kernel).
    Kpad = params["w_conv1"].shape[0]
    cols = jnp.pad(cols, ((0, 0), (0, Kpad - CKK))).astype(jnp.bfloat16)

    feat = pallas_backbone(
        cols, params["w_conv1"], params["b_conv1"], params["pool"],
        params["w_proj"], params["b_proj"],
        batch=B, tile_m=Ho * Wo, enc_hw=enc_size * enc_size, c_out=conv_out_ch,
    )  # (B, enc_size*enc_size, conv_out_ch) bf16, rows ordered (h, w), cols = channels

    # Pure row-major merge (NO transpose / in-kernel relayout): w1 rows were permuted to
    # NHWC order at init, reproducing the PyTorch NCHW `conv_out.view(B, -1)` semantics.
    flat = feat.reshape(B, enc_size * enc_size * conv_out_ch)

    out_padded = pallas_mlp_head(flat, params["w1"], params["b1"],
                                 params["w2"], params["b2"], tile_k=head_tile_k)
    return out_padded[:, :n_class]


def make_pool_matrix(enc_size, pool_h, pool_w, Ho, Wo):
    """(enc_size^2, Ho*Wo) averaging matrix: pooled = P @ conv1_rows (rows ordered (h, w))."""
    P = np.zeros((enc_size * enc_size, Ho * Wo), np.float32)
    inv = 1.0 / (pool_h * pool_w)
    for eh in range(enc_size):
        for ew in range(enc_size):
            for dh in range(pool_h):
                for dw in range(pool_w):
                    P[eh * enc_size + ew, (eh * pool_h + dh) * Wo + (ew * pool_w + dw)] = inv
    # 1/16 is exactly representable in bf16 -> one MXU pass, no accuracy loss on the weights.
    return jnp.asarray(P, dtype=jnp.bfloat16)


def init_params(key, *, c_in, c_conv1, conv_out_ch, enc_size, mlp_hidden, n_class,
                k_pad, n_pad, img_hw):
    ks = jax.random.split(key, 6)
    din = conv_out_ch * enc_size * enc_size
    ckk = c_in * 7 * 7

    def nrm(k, shape, fan_in):
        return jax.random.normal(k, shape, jnp.float32) / jnp.sqrt(fan_in)

    # conv1 weight: zero-pad rows to match the zero-padded im2col K dim.
    w_conv1 = nrm(ks[0], (ckk, c_conv1), ckk)
    w_conv1 = jnp.pad(w_conv1, ((0, k_pad - ckk), (0, 0)))
    w_proj = nrm(ks[1], (c_conv1, conv_out_ch), c_conv1)

    # w1 is generated in the module's NCHW-flatten order (c, h, w) and row-permuted
    # ONCE here (free at runtime) so it consumes the NHWC flatten directly.
    w1_nchw = nrm(ks[2], (din, mlp_hidden), din)
    w1_nhwc = (w1_nchw.reshape(conv_out_ch, enc_size, enc_size, mlp_hidden)
               .transpose(1, 2, 0, 3).reshape(din, mlp_hidden))

    b1 = 0.01 * jax.random.normal(ks[3], (1, mlp_hidden), jnp.float32)
    w2 = nrm(ks[4], (mlp_hidden, n_class), mlp_hidden)
    b2 = 0.01 * jax.random.normal(ks[5], (1, n_class), jnp.float32)
    # Lane-pad the tiny class dim (10 -> 128); sliced back outside the kernel.
    w2 = jnp.pad(w2, ((0, 0), (0, n_pad - n_class)))
    b2 = jnp.pad(b2, ((0, 0), (0, n_pad - n_class)))

    Ho = Wo = img_hw // 2
    pool = make_pool_matrix(enc_size, Ho // enc_size, Wo // enc_size, Ho, Wo)

    return {
        "w_conv1": w_conv1.astype(jnp.bfloat16),
        "b_conv1": jnp.zeros((1, c_conv1), jnp.float32),
        "w_proj": w_proj.astype(jnp.bfloat16),
        "b_proj": jnp.zeros((1, conv_out_ch), jnp.float32),
        "pool": pool,                            # (49, 784) bf16
        "w1": w1_nhwc.astype(jnp.bfloat16),      # bf16 halves the dominant HBM stream
        "b1": b1,
        "w2": w2.astype(jnp.bfloat16),
        "b2": b2,
    }


if __name__ == "__main__":
    # Small-scale config consistent with the module:
    # encoded_image_size=7; conv_output_size scaled 2048->256; mlp_hidden 1024->128.
    B, C_IN, HW = 2, 3, 56
    ENC_SIZE = 7
    C_CONV1 = 64
    CONV_OUT_CH = 256
    MLP_HIDDEN = 128
    N_CLASS = 10
    K_PAD = 256      # im2col K (3*49=147) zero-padded to a lane-aligned 256
    N_PAD = 128      # class dim lane-padded in-kernel, sliced to N_CLASS outside
    HEAD_TILE_K = 1792  # 12544 / 7 chunks; 14*128 -> lane/sublane aligned W1 stream

    key = jax.random.PRNGKey(0)
    k_img, k_q, k_p = jax.random.split(key, 3)

    image = jax.random.normal(k_img, (B, C_IN, HW, HW), jnp.float32)   # NCHW (PyTorch conv input)
    question = jax.random.randint(k_q, (B, 8), 0, 100)                 # unused by forward
    question_len = jnp.full((B,), 8, jnp.int32)                        # unused by forward

    params = init_params(
        k_p, c_in=C_IN, c_conv1=C_CONV1, conv_out_ch=CONV_OUT_CH,
        enc_size=ENC_SIZE, mlp_hidden=MLP_HIDDEN, n_class=N_CLASS,
        k_pad=K_PAD, n_pad=N_PAD, img_hw=HW,
    )

    fwd = jax.jit(functools.partial(
        img_forward, enc_size=ENC_SIZE, conv_out_ch=CONV_OUT_CH,
        n_class=N_CLASS, head_tile_k=HEAD_TILE_K))
    out = fwd(params, image, question, question_len)
    out = jax.block_until_ready(out)
    assert out.shape == (B, N_CLASS), out.shape
    assert bool(jnp.all(jnp.isfinite(out)))
    print("KERNEL_OK")
</pallas_src>

<mosaic_0001>
module attributes {stable_mosaic.version = 11 : i64} {
  func.func @backbone_kernel(%arg0: i32, %arg1: memref<784x256xbf16, #tpu.memory_space<vmem>>, %arg2: memref<256x64xbf16, #tpu.memory_space<vmem>>, %arg3: memref<1x64xf32, #tpu.memory_space<vmem>>, %arg4: memref<49x784xbf16, #tpu.memory_space<vmem>>, %arg5: memref<64x256xbf16, #tpu.memory_space<vmem>>, %arg6: memref<1x256xf32, #tpu.memory_space<vmem>>, %arg7: memref<1x49x256xbf16, #tpu.memory_space<vmem>>) attributes {dimension_semantics = [#tpu.dimension_semantics<parallel>], iteration_bounds = array<i64: 2>, scalar_prefetch = 0 : i64, scratch_operands = 0 : i64, tpu.core_type = #tpu.core_type<tc>, window_params = [{transform_indices = @transform_0, window_bounds = array<i64: 784, 256>}, {pipeline_mode = #tpu.pipeline_mode<synchronous>, transform_indices = @transform_1, window_bounds = array<i64: 256, 64>}, {pipeline_mode = #tpu.pipeline_mode<synchronous>, transform_indices = @transform_2, window_bounds = array<i64: 1, 64>}, {pipeline_mode = #tpu.pipeline_mode<synchronous>, transform_indices = @transform_3, window_bounds = array<i64: 49, 784>}, {pipeline_mode = #tpu.pipeline_mode<synchronous>, transform_indices = @transform_4, window_bounds = array<i64: 64, 256>}, {pipeline_mode = #tpu.pipeline_mode<synchronous>, transform_indices = @transform_5, window_bounds = array<i64: 1, 256>}, {transform_indices = @transform_6, window_bounds = array<i64: 1, 49, 256>}]} {
    %c0 = arith.constant 0 : index
    %c0_0 = arith.constant 0 : index
    %0 = vector.load %arg1[%c0, %c0_0] : memref<784x256xbf16, #tpu.memory_space<vmem>>, vector<784x256xbf16>
    %c0_1 = arith.constant 0 : index
    %c0_2 = arith.constant 0 : index
    %1 = vector.load %arg2[%c0_1, %c0_2] : memref<256x64xbf16, #tpu.memory_space<vmem>>, vector<256x64xbf16>
    %cst = arith.constant dense<0.000000e+00> : vector<784x64xf32>
    %2 = tpu.matmul %0, %1, %cst {dimension_numbers = #tpu.dot_dimension_numbers<[1], [0], [0], [1], [0, 0, 1, 1], [], []>} : vector<784x256xbf16>, vector<256x64xbf16>, vector<784x64xf32> -> vector<784x64xf32>
    %c0_3 = arith.constant 0 : index
    %c0_4 = arith.constant 0 : index
    %3 = vector.load %arg3[%c0_3, %c0_4] : memref<1x64xf32, #tpu.memory_space<vmem>>, vector<1x64xf32>
    %4 = vector.broadcast %3 : vector<1x64xf32> to vector<784x64xf32>
    %5 = arith.addf %2, %4 : vector<784x64xf32>
    %cst_5 = arith.constant 0.000000e+00 : f32
    %6 = vector.broadcast %cst_5 : f32 to vector<784x64xf32>
    %7 = arith.maximumf %5, %6 : vector<784x64xf32>
    %c0_6 = arith.constant 0 : index
    %c0_7 = arith.constant 0 : index
    %8 = vector.load %arg4[%c0_6, %c0_7] : memref<49x784xbf16, #tpu.memory_space<vmem>>, vector<49x784xbf16>
    %9 = arith.truncf %7 : vector<784x64xf32> to vector<784x64xbf16>
    %cst_8 = arith.constant dense<0.000000e+00> : vector<49x64xf32>
    %10 = tpu.matmul %8, %9, %cst_8 {dimension_numbers = #tpu.dot_dimension_numbers<[1], [0], [0], [1], [0, 0, 1, 1], [], []>} : vector<49x784xbf16>, vector<784x64xbf16>, vector<49x64xf32> -> vector<49x64xf32>
    %11 = arith.truncf %10 : vector<49x64xf32> to vector<49x64xbf16>
    %c0_9 = arith.constant 0 : index
    %c0_10 = arith.constant 0 : index
    %12 = vector.load %arg5[%c0_9, %c0_10] : memref<64x256xbf16, #tpu.memory_space<vmem>>, vector<64x256xbf16>
    %cst_11 = arith.constant dense<0.000000e+00> : vector<49x256xf32>
    %13 = tpu.matmul %11, %12, %cst_11 {dimension_numbers = #tpu.dot_dimension_numbers<[1], [0], [0], [1], [0, 0, 1, 1], [], []>} : vector<49x64xbf16>, vector<64x256xbf16>, vector<49x256xf32> -> vector<49x256xf32>
    %c0_12 = arith.constant 0 : index
    %c0_13 = arith.constant 0 : index
    %14 = vector.load %arg6[%c0_12, %c0_13] : memref<1x256xf32, #tpu.memory_space<vmem>>, vector<1x256xf32>
    %15 = vector.broadcast %14 : vector<1x256xf32> to vector<49x256xf32>
    %16 = arith.addf %13, %15 : vector<49x256xf32>
    %cst_14 = arith.constant 0.000000e+00 : f32
    %17 = vector.broadcast %cst_14 : f32 to vector<49x256xf32>
    %18 = arith.maximumf %16, %17 : vector<49x256xf32>
    %19 = arith.truncf %18 : vector<49x256xf32> to vector<49x256xbf16>
    %c0_15 = arith.constant 0 : index
    %c0_16 = arith.constant 0 : index
    %c0_17 = arith.constant 0 : index
    %20 = vector.load %arg7[%c0_15, %c0_16, %c0_17] : memref<1x49x256xbf16, #tpu.memory_space<vmem>>, vector<1x49x256xbf16>
    %21 = vector.shape_cast %20 : vector<1x49x256xbf16> to vector<49x256xbf16>
    %22 = vector.shape_cast %19 : vector<49x256xbf16> to vector<1x49x256xbf16>
    tpu.vector_store %arg7[%c0_15, %c0_16, %c0_17], %22 {strides = array<i32>} : memref<1x49x256xbf16, #tpu.memory_space<vmem>>, vector<1x49x256xbf16>,
    return
  }
  func.func @transform_0(%arg0: i32) -> (i32, i32) {
    %c0_i32 = arith.constant 0 : i32
    %c0_i32_0 = arith.constant 0 : i32
    return %arg0, %c0_i32 : i32, i32
  }
  func.func @transform_1(%arg0: i32) -> (i32, i32) {
    %c0_i32 = arith.constant 0 : i32
    %c0_i32_0 = arith.constant 0 : i32
    %c0_i32_1 = arith.constant 0 : i32
    return %c0_i32, %c0_i32_0 : i32, i32
  }
  func.func @transform_2(%arg0: i32) -> (i32, i32) {
    %c0_i32 = arith.constant 0 : i32
    %c0_i32_0 = arith.constant 0 : i32
    %c0_i32_1 = arith.constant 0 : i32
    return %c0_i32, %c0_i32_0 : i32, i32
  }
  func.func @transform_3(%arg0: i32) -> (i32, i32) {
    %c0_i32 = arith.constant 0 : i32
    %c0_i32_0 = arith.constant 0 : i32
    %c0_i32_1 = arith.constant 0 : i32
    return %c0_i32, %c0_i32_0 : i32, i32
  }
  func.func @transform_4(%arg0: i32) -> (i32, i32) {
    %c0_i32 = arith.constant 0 : i32
    %c0_i32_0 = arith.constant 0 : i32
    %c0_i32_1 = arith.constant 0 : i32
    return %c0_i32, %c0_i32_0 : i32, i32
  }
  func.func @transform_5(%arg0: i32) -> (i32, i32) {
    %c0_i32 = arith.constant 0 : i32
    %c0_i32_0 = arith.constant 0 : i32
    %c0_i32_1 = arith.constant 0 : i32
    return %c0_i32, %c0_i32_0 : i32, i32
  }
  func.func @transform_6(%arg0: i32) -> (i32, i32, i32) {
    %c0_i32 = arith.constant 0 : i32
    %c0_i32_0 = arith.constant 0 : i32
    %c0_i32_1 = arith.constant 0 : i32
    return %arg0, %c0_i32, %c0_i32_0 : i32, i32, i32
  }
}

module attributes {stable_mosaic.version = 11 : i64} {
  func.func @mlp_head_kernel(%arg0: i32, %arg1: memref<2x1792xbf16, #tpu.memory_space<vmem>>, %arg2: memref<1792x128xbf16, #tpu.memory_space<vmem>>, %arg3: memref<1x128xf32, #tpu.memory_space<vmem>>, %arg4: memref<128x128xbf16, #tpu.memory_space<vmem>>, %arg5: memref<1x128xf32, #tpu.memory_space<vmem>>, %arg6: memref<2x128xf32, #tpu.memory_space<vmem>>, %arg7: memref<2x128xf32, #tpu.memory_space<vmem>>) attributes {dimension_semantics = [#tpu.dimension_semantics<arbitrary>], iteration_bounds = array<i64: 7>, scalar_prefetch = 0 : i64, scratch_operands = 1 : i64, tpu.core_type = #tpu.core_type<tc>, window_params = [{transform_indices = @transform_0, window_bounds = array<i64: 2, 1792>}, {transform_indices = @transform_1, window_bounds = array<i64: 1792, 128>}, {pipeline_mode = #tpu.pipeline_mode<synchronous>, transform_indices = @transform_2, window_bounds = array<i64: 1, 128>}, {pipeline_mode = #tpu.pipeline_mode<synchronous>, transform_indices = @transform_3, window_bounds = array<i64: 128, 128>}, {pipeline_mode = #tpu.pipeline_mode<synchronous>, transform_indices = @transform_4, window_bounds = array<i64: 1, 128>}, {pipeline_mode = #tpu.pipeline_mode<synchronous>, transform_indices = @transform_5, window_bounds = array<i64: 2, 128>}]} {
    %c0_i32 = arith.constant 0 : i32
    %0 = arith.cmpi eq, %arg0, %c0_i32 : i32
    %1 = arith.extui %0 : i1 to i32
    %c0_i32_0 = arith.constant 0 : i32
    %2 = arith.cmpi ne, %1, %c0_i32_0 : i32
    scf.if %2 {
      %cst_9 = arith.constant 0.000000e+00 : f32
      %12 = vector.broadcast %cst_9 : f32 to vector<2x128xf32>
      %c0_10 = arith.constant 0 : index
      %c0_11 = arith.constant 0 : index
      %13 = vector.load %arg7[%c0_10, %c0_11] : memref<2x128xf32, #tpu.memory_space<vmem>>, vector<2x128xf32>
      tpu.vector_store %arg7[%c0_10, %c0_11], %12 {strides = array<i32>} : memref<2x128xf32, #tpu.memory_space<vmem>>, vector<2x128xf32>,
    } else {
    }
    %c0 = arith.constant 0 : index
    %c0_1 = arith.constant 0 : index
    %3 = vector.load %arg7[%c0, %c0_1] : memref<2x128xf32, #tpu.memory_space<vmem>>, vector<2x128xf32>
    %c0_2 = arith.constant 0 : index
    %c0_3 = arith.constant 0 : index
    %4 = vector.load %arg1[%c0_2, %c0_3] : memref<2x1792xbf16, #tpu.memory_space<vmem>>, vector<2x1792xbf16>
    %c0_4 = arith.constant 0 : index
    %c0_5 = arith.constant 0 : index
    %5 = vector.load %arg2[%c0_4, %c0_5] : memref<1792x128xbf16, #tpu.memory_space<vmem>>, vector<1792x128xbf16>
    %cst = arith.constant dense<0.000000e+00> : vector<2x128xf32>
    %6 = tpu.matmul %4, %5, %cst {dimension_numbers = #tpu.dot_dimension_numbers<[1], [0], [0], [1], [0, 0, 1, 1], [], []>} : vector<2x1792xbf16>, vector<1792x128xbf16>, vector<2x128xf32> -> vector<2x128xf32>
    %7 = arith.addf %3, %6 : vector<2x128xf32>
    %c0_6 = arith.constant 0 : index
    %c0_7 = arith.constant 0 : index
    %8 = vector.load %arg7[%c0_6, %c0_7] : memref<2x128xf32, #tpu.memory_space<vmem>>, vector<2x128xf32>
    tpu.vector_store %arg7[%c0_6, %c0_7], %7 {strides = array<i32>} : memref<2x128xf32, #tpu.memory_space<vmem>>, vector<2x128xf32>,
    %c6_i32 = arith.constant 6 : i32
    %9 = arith.cmpi eq, %arg0, %c6_i32 : i32
    %10 = arith.extui %9 : i1 to i32
    %c0_i32_8 = arith.constant 0 : i32
    %11 = arith.cmpi ne, %10, %c0_i32_8 : i32
    scf.if %11 {
      %c0_9 = arith.constant 0 : index
      %c0_10 = arith.constant 0 : index
      %12 = vector.load %arg7[%c0_9, %c0_10] : memref<2x128xf32, #tpu.memory_space<vmem>>, vector<2x128xf32>
      %c0_11 = arith.constant 0 : index
      %c0_12 = arith.constant 0 : index
      %13 = vector.load %arg3[%c0_11, %c0_12] : memref<1x128xf32, #tpu.memory_space<vmem>>, vector<1x128xf32>
      %14 = vector.broadcast %13 : vector<1x128xf32> to vector<2x128xf32>
      %15 = arith.addf %12, %14 : vector<2x128xf32>
      %cst_13 = arith.constant 0.000000e+00 : f32
      %16 = vector.broadcast %cst_13 : f32 to vector<2x128xf32>
      %17 = arith.maximumf %15, %16 : vector<2x128xf32>
      %18 = arith.truncf %17 : vector<2x128xf32> to vector<2x128xbf16>
      %c0_14 = arith.constant 0 : index
      %c0_15 = arith.constant 0 : index
      %19 = vector.load %arg4[%c0_14, %c0_15] : memref<128x128xbf16, #tpu.memory_space<vmem>>, vector<128x128xbf16>
      %cst_16 = arith.constant dense<0.000000e+00> : vector<2x128xf32>
      %20 = tpu.matmul %18, %19, %cst_16 {dimension_numbers = #tpu.dot_dimension_numbers<[1], [0], [0], [1], [0, 0, 1, 1], [], []>} : vector<2x128xbf16>, vector<128x128xbf16>, vector<2x128xf32> -> vector<2x128xf32>
      %c0_17 = arith.constant 0 : index
      %c0_18 = arith.constant 0 : index
      %21 = vector.load %arg5[%c0_17, %c0_18] : memref<1x128xf32, #tpu.memory_space<vmem>>, vector<1x128xf32>
      %22 = vector.broadcast %21 : vector<1x128xf32> to vector<2x128xf32>
      %23 = arith.addf %20, %22 : vector<2x128xf32>
      %c0_19 = arith.constant 0 : index
      %c0_20 = arith.constant 0 : index
      %24 = vector.load %arg6[%c0_19, %c0_20] : memref<2x128xf32, #tpu.memory_space<vmem>>, vector<2x128xf32>
      tpu.vector_store %arg6[%c0_19, %c0_20], %23 {strides = array<i32>} : memref<2x128xf32, #tpu.memory_space<vmem>>, vector<2x128xf32>,
    } else {
    }
    return
  }
  func.func @transform_0(%arg0: i32) -> (i32, i32) {
    %c0_i32 = arith.constant 0 : i32
    %c0_i32_0 = arith.constant 0 : i32
    return %c0_i32, %arg0 : i32, i32
  }
  func.func @transform_1(%arg0: i32) -> (i32, i32) {
    %c0_i32 = arith.constant 0 : i32
    %c0_i32_0 = arith.constant 0 : i32
    return %arg0, %c0_i32 : i32, i32
  }
  func.func @transform_2(%arg0: i32) -> (i32, i32) {
    %c0_i32 = arith.constant 0 : i32
    %c0_i32_0 = arith.constant 0 : i32
    %c0_i32_1 = arith.constant 0 : i32
    return %c0_i32, %c0_i32_0 : i32, i32
  }
  func.func @transform_3(%arg0: i32) -> (i32, i32) {
    %c0_i32 = arith.constant 0 : i32
    %c0_i32_0 = arith.constant 0 : i32
    %c0_i32_1 = arith.constant 0 : i32
    return %c0_i32, %c0_i32_0 : i32, i32
  }
  func.func @transform_4(%arg0: i32) -> (i32, i32) {
    %c0_i32 = arith.constant 0 : i32
    %c0_i32_0 = arith.constant 0 : i32
    %c0_i32_1 = arith.constant 0 : i32
    return %c0_i32, %c0_i32_0 : i32, i32
  }
  func.func @transform_5(%arg0: i32) -> (i32, i32) {
    %c0_i32 = arith.constant 0 : i32
    %c0_i32_0 = arith.constant 0 : i32
    %c0_i32_1 = arith.constant 0 : i32
    return %c0_i32, %c0_i32_0 : i32, i32
  }
}

</mosaic_0001>

<llo_original>
// kernel: img_forward.2
$region0: #{img_forward.2}
  #allocation0 [shape = 'u32[]', space=smem, size = 0x4, offset = 0x4, fixed_abs, tag = 'smem constant byte address 0x4 - core index']
  #allocation1 [shape = 'u32[144,128]{1,0:T(1,128)}', space=vmem, size = 0x12000, scoped, tag = 'internal scratch']
  %s0 = inlined_call_operand.vmem [shape: bf16[1568,256], index: 0, kind: input, shape index: {}]
  %s1 = inlined_call_operand.vmem [shape: bf16[256,64], index: 1, kind: input, shape index: {}]
  %s2 = inlined_call_operand.vmem [shape: f32[1,64], index: 2, kind: input, shape index: {}]
  %s3 = inlined_call_operand.vmem [shape: bf16[49,784], index: 3, kind: input, shape index: {}]
  %s4 = inlined_call_operand.vmem [shape: bf16[64,256], index: 4, kind: input, shape index: {}]
  %s5 = inlined_call_operand.vmem [shape: f32[1,256], index: 5, kind: input, shape index: {}]
  %s6 = inlined_call_operand.vmem [shape: bf16[2,49,256], index: 6, kind: output, shape index: {}]
  %s7 = sld [smem:[#allocation0]]
  $region57: #{img_forward.2} parent=0
    _
  %s9 = ssub.s32 1, %s7
  %s10 = scalar_select 0, %s9, %s7
  loop: start=0, step=1, limit=4
  $region2: #{img_forward.2} parent=0 // loop_pre_header
    _
  $region3: #{img_forward.2} parent=0 // loop_header
    %s12 = sphi 0, %s16
    %p13 = scmp.ge.s32.totalorder %s12, 4
    %s22 = sphi 0, %s24
    %s25 = sphi 0, %s22
    %s26 = sphi 0, %s25
    %s42 = sphi 0, %s26
    %s46 = sphi 0, %s46
    %s48 = sphi 0, %s46
    %s49 = sphi 0, %s48
    %s63 = sphi 0, %s49
    %s67 = sphi 0, %s67
    %s69 = sphi 0, %s67
    %s70 = sphi 0, %s69
    %s84 = sphi 0, %s70
    %s88 = sphi 0, %s88
    %s90 = sphi 0, %s88
    %s91 = sphi 0, %s90
    %s105 = sphi 0, %s91
    %s109 = sphi 0, %s109
    %s111 = sphi 0, %s109
    %s112 = sphi 0, %s111
    %s126 = sphi 0, %s112
    %s130 = sphi 0, %s130
    %s132 = sphi 0, %s130
    %s133 = sphi 0, %s132
    %s147 = sphi 0, %s133
    %s153 = sphi 0, %s155
    %s156 = sphi 0, %s153
    %s157 = sphi 0, %s156
    %s173 = sphi 0, %s157
  $region4: #{img_forward.2} parent=0 // loop_header_branch
    %15 = sbr.rel (%p13) target = $region8
  $region5: #{img_forward.2} parent=0 // loop_body
    %s17 = ssub.s32 %s12, 1
    %s18 = ssub.s32 %s12, 2
    %s19 = sadd.s32 %s12, 1
    %s20 = ssub.s32 %s12, %s19
    %p21 = scmp.eq.s32.totalorder %s20, 0
    %s23 = sadd.s32 %s22, 1
    %s24 = scalar_select %p21, %s22, %s23
    %p27 = pneg %p21
    %p28 = scmp.eq.s32.totalorder %s12, 1
    %p29 = por %p27, %p28
    %p30 = scmp.ne.s32.totalorder %s22, %s25
    %p31 = scmp.eq.s32.totalorder %s12, 0
    %p32 = por %p30, %p31
    %p33 = scmp.ne.s32.totalorder %s22, %s25
    %p34 = scmp.eq.s32.totalorder %s17, 1
    %p35 = por %p33, %p34
    %p36 = scmp.ne.s32.totalorder %s25, %s26
    %p37 = scmp.eq.s32.totalorder %s17, 0
    %p38 = por %p36, %p37
    %p39 = scmp.ne.s32.totalorder %s25, %s26
    %p40 = scmp.eq.s32.totalorder %s18, 1
    %p41 = por %p39, %p40
    %p43 = scmp.ne.s32.totalorder %s26, %s42
    %p44 = scmp.eq.s32.totalorder %s18, 0
    %p45 = por %p43, %p44
    %s47 = sadd.s32 %s46, 1
    %p50 = scmp.eq.s32.totalorder %s12, 1
    %p51 = scmp.ne.s32.totalorder %s46, %s48
    %p52 = scmp.eq.s32.totalorder %s12, 0
    %p53 = por %p51, %p52
    %p54 = scmp.ne.s32.totalorder %s46, %s48
    %p55 = scmp.eq.s32.totalorder %s17, 1
    %p56 = por %p54, %p55
    %p57 = scmp.ne.s32.totalorder %s48, %s49
    %p58 = scmp.eq.s32.totalorder %s17, 0
    %p59 = por %p57, %p58
    %p60 = scmp.ne.s32.totalorder %s48, %s49
    %p61 = scmp.eq.s32.totalorder %s18, 1
    %p62 = por %p60, %p61
    %p64 = scmp.ne.s32.totalorder %s49, %s63
    %p65 = scmp.eq.s32.totalorder %s18, 0
    %p66 = por %p64, %p65
    %s68 = sadd.s32 %s67, 1
    %p71 = scmp.eq.s32.totalorder %s12, 1
    %p72 = scmp.ne.s32.totalorder %s67, %s69
    %p73 = scmp.eq.s32.totalorder %s12, 0
    %p74 = por %p72, %p73
    %p75 = scmp.ne.s32.totalorder %s67, %s69
    %p76 = scmp.eq.s32.totalorder %s17, 1
    %p77 = por %p75, %p76
    %p78 = scmp.ne.s32.totalorder %s69, %s70
    %p79 = scmp.eq.s32.totalorder %s17, 0
    %p80 = por %p78, %p79
    %p81 = scmp.ne.s32.totalorder %s69, %s70
    %p82 = scmp.eq.s32.totalorder %s18, 1
    %p83 = por %p81, %p82
    %p85 = scmp.ne.s32.totalorder %s70, %s84
    %p86 = scmp.eq.s32.totalorder %s18, 0
    %p87 = por %p85, %p86
    %s89 = sadd.s32 %s88, 1
    %p92 = scmp.eq.s32.totalorder %s12, 1
    %p93 = scmp.ne.s32.totalorder %s88, %s90
    %p94 = scmp.eq.s32.totalorder %s12, 0
    %p95 = por %p93, %p94
    %p96 = scmp.ne.s32.totalorder %s88, %s90
    %p97 = scmp.eq.s32.totalorder %s17, 1
    %p98 = por %p96, %p97
    %p99 = scmp.ne.s32.totalorder %s90, %s91
    %p100 = scmp.eq.s32.totalorder %s17, 0
    %p101 = por %p99, %p100
    %p102 = scmp.ne.s32.totalorder %s90, %s91
    %p103 = scmp.eq.s32.totalorder %s18, 1
    %p104 = por %p102, %p103
    %p106 = scmp.ne.s32.totalorder %s91, %s105
    %p107 = scmp.eq.s32.totalorder %s18, 0
    %p108 = por %p106, %p107
    %s110 = sadd.s32 %s109, 1
    %p113 = scmp.eq.s32.totalorder %s12, 1
    %p114 = scmp.ne.s32.totalorder %s109, %s111
    %p115 = scmp.eq.s32.totalorder %s12, 0
    %p116 = por %p114, %p115
    %p117 = scmp.ne.s32.totalorder %s109, %s111
    %p118 = scmp.eq.s32.totalorder %s17, 1
    %p119 = por %p117, %p118
    %p120 = scmp.ne.s32.totalorder %s111, %s112
    %p121 = scmp.eq.s32.totalorder %s17, 0
    %p122 = por %p120, %p121
    %p123 = scmp.ne.s32.totalorder %s111, %s112
    %p124 = scmp.eq.s32.totalorder %s18, 1
    %p125 = por %p123, %p124
    %p127 = scmp.ne.s32.totalorder %s112, %s126
    %p128 = scmp.eq.s32.totalorder %s18, 0
    %p129 = por %p127, %p128
    %s131 = sadd.s32 %s130, 1
    %p134 = scmp.eq.s32.totalorder %s12, 1
    %p135 = scmp.ne.s32.totalorder %s130, %s132
    %p136 = scmp.eq.s32.totalorder %s12, 0
    %p137 = por %p135, %p136
    %p138 = scmp.ne.s32.totalorder %s130, %s132
    %p139 = scmp.eq.s32.totalorder %s17, 1
    %p140 = por %p138, %p139
    %p141 = scmp.ne.s32.totalorder %s132, %s133
    %p142 = scmp.eq.s32.totalorder %s17, 0
    %p143 = por %p141, %p142
    %p144 = scmp.ne.s32.totalorder %s132, %s133
    %p145 = scmp.eq.s32.totalorder %s18, 1
    %p146 = por %p144, %p145
    %p148 = scmp.ne.s32.totalorder %s133, %s147
    %p149 = scmp.eq.s32.totalorder %s18, 0
    %p150 = por %p148, %p149
    %s151 = ssub.s32 %s12, %s19
    %p152 = scmp.eq.s32.totalorder %s151, 0
    %s154 = sadd.s32 %s153, 1
    %s155 = scalar_select %p152, %s153, %s154
    %p158 = pneg %p152
    %p159 = scmp.eq.s32.totalorder %s12, 1
    %p160 = por %p158, %p159
    %p161 = scmp.ne.s32.totalorder %s153, %s156
    %p162 = scmp.eq.s32.totalorder %s12, 0
    %p163 = por %p161, %p162
    %p164 = scmp.ne.s32.totalorder %s153, %s156
    %p165 = scmp.eq.s32.totalorder %s17, 1
    %p166 = por %p164, %p165
    %p167 = scmp.ne.s32.totalorder %s156, %s157
    %p168 = scmp.eq.s32.totalorder %s17, 0
    %p169 = por %p167, %p168
    %p170 = scmp.ne.s32.totalorder %s156, %s157
    %p171 = scmp.eq.s32.totalorder %s18, 1
    %p172 = por %p170, %p171
    %p174 = scmp.ne.s32.totalorder %s157, %s173
    %p175 = scmp.eq.s32.totalorder %s18, 0
    %p176 = por %p174, %p175
    %p177 = scmp.le.s32.totalorder 1, %s12
    %p178 = scmp.lt.s32.totalorder %s12, 3
    %p179 = pnand %p177, %p178
    %p180 = pneg %p179
    // Predicated region
    $region9: #{img_forward.2} parent=5 // pred_check
      _
    $region10: #{img_forward.2} parent=5 // pred_check_branch
      %182 = sbr.rel (%p179) target = $region12
    $region11: #{img_forward.2} parent=5 // pred_region
      %s183 = ssub.s32 %s12, 1
      // Predicated region
      $region13: #{img_forward.2} parent=11 // pred_check
        %p184 = pneg %p59
      $region14: #{img_forward.2} parent=11 // pred_check_branch
        %186 = sbr.rel (%p184) target = $region16
      $region15: #{img_forward.2} parent=11 // pred_region
        _
      $region16: #{img_forward.2} parent=11 // pred_fallthru
        _
      // Predicated region
      $region17: #{img_forward.2} parent=11 // pred_check
        %p187 = pneg %p80
      $region18: #{img_forward.2} parent=11 // pred_check_branch
        %189 = sbr.rel (%p187) target = $region20
      $region19: #{img_forward.2} parent=11 // pred_region
        _
      $region20: #{img_forward.2} parent=11 // pred_fallthru
        _
      // Predicated region
      $region21: #{img_forward.2} parent=11 // pred_check
        %p190 = pneg %p101
      $region22: #{img_forward.2} parent=11 // pred_check_branch
        %192 = sbr.rel (%p190) target = $region24
      $region23: #{img_forward.2} parent=11 // pred_region
        _
      $region24: #{img_forward.2} parent=11 // pred_fallthru
        _
      // Predicated region
      $region25: #{img_forward.2} parent=11 // pred_check
        %p193 = pneg %p122
      $region26: #{img_forward.2} parent=11 // pred_check_branch
        %195 = sbr.rel (%p193) target = $region28
      $region27: #{img_forward.2} parent=11 // pred_region
        _
      $region28: #{img_forward.2} parent=11 // pred_fallthru
        _
      // Predicated region
      $region29: #{img_forward.2} parent=11 // pred_check
        %p196 = pneg %p143
      $region30: #{img_forward.2} parent=11 // pred_check_branch
        %198 = sbr.rel (%p196) target = $region32
      $region31: #{img_forward.2} parent=11 // pred_region
        _
      $region32: #{img_forward.2} parent=11 // pred_fallthru
        _
    $region12: #{img_forward.2} parent=5 // pred_fallthru
      _
    %p199 = scmp.lt.s32.totalorder %s12, 2
    // Predicated region
    $region33: #{img_forward.2} parent=5 // pred_check
      %p200 = pneg %p199
    $region34: #{img_forward.2} parent=5 // pred_check_branch
      %202 = sbr.rel (%p200) target = $region36
    $region35: #{img_forward.2} parent=5 // pred_region
      // Predicated region
      $region37: #{img_forward.2} parent=35 // pred_check
        %p203 = pneg %p32
      $region38: #{img_forward.2} parent=35 // pred_check_branch
        %205 = sbr.rel (%p203) target = $region40
      $region39: #{img_forward.2} parent=35 // pred_region
        %s206 = smul.u32 98, %s12
        %p207 = scmp.lt.s32.totalorder %s206, 195
        %s208 = scalar_select %p207, %s206, 195
        %s209 = smul.addr %s208, 2
        %s210 = smul.addr %s209, 4
        %s211 = scalar_lea.vmem %s0, %s210
        %s212 = smul.u32 98, %s12
      $region40: #{img_forward.2} parent=35 // pred_fallthru
        _
    $region36: #{img_forward.2} parent=5 // pred_fallthru
      _
    %p213 = scmp.le.s32.totalorder 1, %s12
    %p214 = scmp.lt.s32.totalorder %s12, 3
    %p215 = pnand %p213, %p214
    %p216 = pneg %p215
    // Predicated region
    $region41: #{img_forward.2} parent=5 // pred_check
      _
    $region42: #{img_forward.2} parent=5 // pred_check_branch
      %218 = sbr.rel (%p215) target = $region44
    $region43: #{img_forward.2} parent=5 // pred_region
      %s219 = ssub.s32 %s12, 1
      %s220 = smul.u32 98, %s17
      %p221 = scmp.lt.s32.totalorder %s220, 195
      %s222 = scalar_select %p221, %s220, 195
      %s223 = smul.addr %s222, 2
      %s224 = smul.addr %s223, 4
      %s225 = scalar_lea.vmem %s0, %s224
      %p226 = pneg %p38
      %p227 = pneg %p35
      %p228 = pneg %p59
      %p229 = pneg %p56
      %p230 = pneg %p80
      %p231 = pneg %p77
      %p232 = pneg %p101
      %p233 = pneg %p98
      %p234 = pneg %p122
      %p235 = pneg %p119
      %p236 = pneg %p143
      %p237 = pneg %p140
      %p238 = pneg %p169
      %p239 = pneg %p166
      %p240 = scmp.lt.s32.totalorder %s17, 1
      %s241 = scalar_select %p240, %s17, 1
      %s242 = smul.addr %s241, 14
      %s243 = smul.addr %s242, 4
      %s244 = scalar_lea.vmem %s6, %s243
      %s245 = smul.u32 98, %s17
      %p246 = scmp.lt.s32.totalorder %s245, 195
      %s247 = scalar_select %p246, %s245, 195
      %s248 = smul.addr %s247, 2
      %s249 = smul.addr %s248, 4
      %s250 = scalar_lea.vmem %s0, %s249
      %s251 = smul.u32 98, %s17
      %p252 = scmp.lt.s32.totalorder %s17, 1
      %s253 = scalar_select %p252, %s17, 1
      %s254 = smul.addr %s253, 14
      %s255 = smul.addr %s254, 4
      %s256 = scalar_lea.vmem %s6, %s255
      %v258 = vld [vmem:[%s250] sm:$0xff]
      %v259 = vld [vmem:[%s250 + $0x8] sm:$0xff]
      %v260 = vld [vmem:[%s250 + $0x10] sm:$0xff]
      %v261 = vld [vmem:[%s250 + $0x18] sm:$0xff]
      %v262 = vld [vmem:[%s250 + $0x20] sm:$0xff]
      %v263 = vld [vmem:[%s250 + $0x28] sm:$0xff]
      %v264 = vld [vmem:[%s250 + $0x30] sm:$0xff]
      %v265 = vld [vmem:[%s250 + $0x38] sm:$0xff]
      %v266 = vld [vmem:[%s250 + $0x40] sm:$0xff]
      %v267 = vld [vmem:[%s250 + $0x48] sm:$0xff]
      %v268 = vld [vmem:[%s250 + $0x50] sm:$0xff]
      %v269 = vld [vmem:[%s250 + $0x58] sm:$0xff]
      %v270 = vld [vmem:[%s250 + $0x60] sm:$0xff]
      %v271 = vld [vmem:[%s250 + $0x68] sm:$0xff]
      %v272 = vld [vmem:[%s250 + $0x70] sm:$0xff]
      %v273 = vld [vmem:[%s250 + $0x78] sm:$0xff]
      %v274 = vld [vmem:[%s250 + $0x80] sm:$0xff]
      %v275 = vld [vmem:[%s250 + $0x88] sm:$0xff]
      %v276 = vld [vmem:[%s250 + $0x90] sm:$0xff]
      %v277 = vld [vmem:[%s250 + $0x98] sm:$0xff]
      %v278 = vld [vmem:[%s250 + $0xa0] sm:$0xff]
      %v279 = vld [vmem:[%s250 + $0xa8] sm:$0xff]
      %v280 = vld [vmem:[%s250 + $0xb0] sm:$0xff]
      %v281 = vld [vmem:[%s250 + $0xb8] sm:$0xff]
      %v282 = vld [vmem:[%s250 + $0xc0] sm:$0xff]
      %v283 = vld [vmem:[%s250 + $0xc8] sm:$0xff]
      %v284 = vld [vmem:[%s250 + $0xd0] sm:$0xff]
      %v285 = vld [vmem:[%s250 + $0xd8] sm:$0xff]
      %v286 = vld [vmem:[%s250 + $0xe0] sm:$0xff]
      %v287 = vld [vmem:[%s250 + $0xe8] sm:$0xff]
      %v288 = vld [vmem:[%s250 + $0xf0] sm:$0xff]
      %v289 = vld [vmem:[%s250 + $0xf8] sm:$0xff]
      %v290 = vld [vmem:[%s250 + $0x100] sm:$0xff]
      %v291 = vld [vmem:[%s250 + $0x108] sm:$0xff]
      %v292 = vld [vmem:[%s250 + $0x110] sm:$0xff]
      %v293 = vld [vmem:[%s250 + $0x118] sm:$0xff]
      %v294 = vld [vmem:[%s250 + $0x120] sm:$0xff]
      %v295 = vld [vmem:[%s250 + $0x128] sm:$0xff]
      %v296 = vld [vmem:[%s250 + $0x130] sm:$0xff]
      %v297 = vld [vmem:[%s250 + $0x138] sm:$0xff]
      %v298 = vld [vmem:[%s250 + $0x140] sm:$0xff]
      %v299 = vld [vmem:[%s250 + $0x148] sm:$0xff]
      %v300 = vld [vmem:[%s250 + $0x150] sm:$0xff]
      %v301 = vld [vmem:[%s250 + $0x158] sm:$0xff]
      %v302 = vld [vmem:[%s250 + $0x160] sm:$0xff]
      %v303 = vld [vmem:[%s250 + $0x168] sm:$0xff]
      %v304 = vld [vmem:[%s250 + $0x170] sm:$0xff]
      %v305 = vld [vmem:[%s250 + $0x178] sm:$0xff]
      %v306 = vld [vmem:[%s250 + $0x180] sm:$0xff]
      %v307 = vld [vmem:[%s250 + $0x188] sm:$0xff]
      %v308 = vld [vmem:[%s250 + $0x190] sm:$0xff]
      %v309 = vld [vmem:[%s250 + $0x198] sm:$0xff]
      %v310 = vld [vmem:[%s250 + $0x1a0] sm:$0xff]
      %v311 = vld [vmem:[%s250 + $0x1a8] sm:$0xff]
      %v312 = vld [vmem:[%s250 + $0x1b0] sm:$0xff]
      %v313 = vld [vmem:[%s250 + $0x1b8] sm:$0xff]
      %v314 = vld [vmem:[%s250 + $0x1c0] sm:$0xff]
      %v315 = vld [vmem:[%s250 + $0x1c8] sm:$0xff]
      %v316 = vld [vmem:[%s250 + $0x1d0] sm:$0xff]
      %v317 = vld [vmem:[%s250 + $0x1d8] sm:$0xff]
      %v318 = vld [vmem:[%s250 + $0x1e0] sm:$0xff]
      %v319 = vld [vmem:[%s250 + $0x1e8] sm:$0xff]
      %v320 = vld [vmem:[%s250 + $0x1f0] sm:$0xff]
      %v321 = vld [vmem:[%s250 + $0x1f8] sm:$0xff]
      %v322 = vld [vmem:[%s250 + $0x200] sm:$0xff]
      %v323 = vld [vmem:[%s250 + $0x208] sm:$0xff]
      %v324 = vld [vmem:[%s250 + $0x210] sm:$0xff]
      %v325 = vld [vmem:[%s250 + $0x218] sm:$0xff]
      %v326 = vld [vmem:[%s250 + $0x220] sm:$0xff]
      %v327 = vld [vmem:[%s250 + $0x228] sm:$0xff]
      %v328 = vld [vmem:[%s250 + $0x230] sm:$0xff]
      %v329 = vld [vmem:[%s250 + $0x238] sm:$0xff]
      %v330 = vld [vmem:[%s250 + $0x240] sm:$0xff]
      %v331 = vld [vmem:[%s250 + $0x248] sm:$0xff]
      %v332 = vld [vmem:[%s250 + $0x250] sm:$0xff]
      %v333 = vld [vmem:[%s250 + $0x258] sm:$0xff]
      %v334 = vld [vmem:[%s250 + $0x260] sm:$0xff]
      %v335 = vld [vmem:[%s250 + $0x268] sm:$0xff]
      %v336 = vld [vmem:[%s250 + $0x270] sm:$0xff]
      %v337 = vld [vmem:[%s250 + $0x278] sm:$0xff]
      %v338 = vld [vmem:[%s250 + $0x280] sm:$0xff]
      %v339 = vld [vmem:[%s250 + $0x288] sm:$0xff]
      %v340 = vld [vmem:[%s250 + $0x290] sm:$0xff]
      %v341 = vld [vmem:[%s250 + $0x298] sm:$0xff]
      %v342 = vld [vmem:[%s250 + $0x2a0] sm:$0xff]
      %v343 = vld [vmem:[%s250 + $0x2a8] sm:$0xff]
      %v344 = vld [vmem:[%s250 + $0x2b0] sm:$0xff]
      %v345 = vld [vmem:[%s250 + $0x2b8] sm:$0xff]
      %v346 = vld [vmem:[%s250 + $0x2c0] sm:$0xff]
      %v347 = vld [vmem:[%s250 + $0x2c8] sm:$0xff]
      %v348 = vld [vmem:[%s250 + $0x2d0] sm:$0xff]
      %v349 = vld [vmem:[%s250 + $0x2d8] sm:$0xff]
      %v350 = vld [vmem:[%s250 + $0x2e0] sm:$0xff]
      %v351 = vld [vmem:[%s250 + $0x2e8] sm:$0xff]
      %v352 = vld [vmem:[%s250 + $0x2f0] sm:$0xff]
      %v353 = vld [vmem:[%s250 + $0x2f8] sm:$0xff]
      %v354 = vld [vmem:[%s250 + $0x300] sm:$0xff]
      %v355 = vld [vmem:[%s250 + $0x308] sm:$0xff]
      %v356 = vld [vmem:[%s1] sm:$0xf]
      %v357 = vld [vmem:[%s1 + $0x4] sm:$0xf]
      %v358 = vld [vmem:[%s1 + $0x8] sm:$0xf]
      %v359 = vld [vmem:[%s1 + $0xc] sm:$0xf]
      %v360 = vld [vmem:[%s1 + $0x10] sm:$0xf]
      %v361 = vld [vmem:[%s1 + $0x14] sm:$0xf]
      %v362 = vld [vmem:[%s1 + $0x18] sm:$0xf]
      %v363 = vld [vmem:[%s1 + $0x1c] sm:$0xf]
      %v364 = vld [vmem:[%s1 + $0x20] sm:$0xf]
      %v365 = vld [vmem:[%s1 + $0x24] sm:$0xf]
      %v366 = vld [vmem:[%s1 + $0x28] sm:$0xf]
      %v367 = vld [vmem:[%s1 + $0x2c] sm:$0xf]
      %v368 = vld [vmem:[%s1 + $0x30] sm:$0xf]
      %v369 = vld [vmem:[%s1 + $0x34] sm:$0xf]
      %v370 = vld [vmem:[%s1 + $0x38] sm:$0xf]
      %v371 = vld [vmem:[%s1 + $0x3c] sm:$0xf]
      %v372 = vld [vmem:[%s1 + $0x40] sm:$0xf]
      %v373 = vld [vmem:[%s1 + $0x44] sm:$0xf]
      %v374 = vld [vmem:[%s1 + $0x48] sm:$0xf]
      %v375 = vld [vmem:[%s1 + $0x4c] sm:$0xf]
      %v376 = vld [vmem:[%s1 + $0x50] sm:$0xf]
      %v377 = vld [vmem:[%s1 + $0x54] sm:$0xf]
      %v378 = vld [vmem:[%s1 + $0x58] sm:$0xf]
      %v379 = vld [vmem:[%s1 + $0x5c] sm:$0xf]
      %v380 = vld [vmem:[%s1 + $0x60] sm:$0xf]
      %v381 = vld [vmem:[%s1 + $0x64] sm:$0xf]
      %v382 = vld [vmem:[%s1 + $0x68] sm:$0xf]
      %v383 = vld [vmem:[%s1 + $0x6c] sm:$0xf]
      %v384 = vld [vmem:[%s1 + $0x70] sm:$0xf]
      %v385 = vld [vmem:[%s1 + $0x74] sm:$0xf]
      %v386 = vld [vmem:[%s1 + $0x78] sm:$0xf]
      %v387 = vld [vmem:[%s1 + $0x7c] sm:$0xf]
      %v388 = vld [vmem:[%s2] sm:$0x1]
      %v390 = vlaneseq
      %v391 = vshrl.u32 %v390, 7
      %v392 = vsub.s32 0, %v391
      %v393 = vrot.slane %v388, %v392
      %v493 = vunpack.c.l.b16 %v258
      %v494 = vunpack.c.h.b16 %v258
      %v495 = vunpack.c.l.b16 %v259
      %v496 = vunpack.c.h.b16 %v259
      %v497 = vunpack.c.l.b16 %v260
      %v498 = vunpack.c.h.b16 %v260
      %v499 = vunpack.c.l.b16 %v261
      %v500 = vunpack.c.h.b16 %v261
      %v501 = vunpack.c.l.b16 %v262
      %v502 = vunpack.c.h.b16 %v262
      %v503 = vunpack.c.l.b16 %v263
      %v504 = vunpack.c.h.b16 %v263
      %v505 = vunpack.c.l.b16 %v264
      %v506 = vunpack.c.h.b16 %v264
      %v507 = vunpack.c.l.b16 %v265
      %v508 = vunpack.c.h.b16 %v265
      %v509 = vunpack.c.l.b16 %v266
      %v510 = vunpack.c.h.b16 %v266
      %v511 = vunpack.c.l.b16 %v267
      %v512 = vunpack.c.h.b16 %v267
      %v513 = vunpack.c.l.b16 %v268
      %v514 = vunpack.c.h.b16 %v268
      %v515 = vunpack.c.l.b16 %v269
      %v516 = vunpack.c.h.b16 %v269
      %v517 = vunpack.c.l.b16 %v270
      %v518 = vunpack.c.h.b16 %v270
      %v519 = vunpack.c.l.b16 %v271
      %v520 = vunpack.c.h.b16 %v271
      %v521 = vunpack.c.l.b16 %v272
      %v522 = vunpack.c.h.b16 %v272
      %v523 = vunpack.c.l.b16 %v273
      %v524 = vunpack.c.h.b16 %v273
      %v525 = vunpack.c.l.b16 %v274
      %v526 = vunpack.c.h.b16 %v274
      %v527 = vunpack.c.l.b16 %v275
      %v528 = vunpack.c.h.b16 %v275
      %v529 = vunpack.c.l.b16 %v276
      %v530 = vunpack.c.h.b16 %v276
      %v531 = vunpack.c.l.b16 %v277
      %v532 = vunpack.c.h.b16 %v277
      %v533 = vunpack.c.l.b16 %v278
      %v534 = vunpack.c.h.b16 %v278
      %v535 = vunpack.c.l.b16 %v279
      %v536 = vunpack.c.h.b16 %v279
      %v537 = vunpack.c.l.b16 %v280
      %v538 = vunpack.c.h.b16 %v280
      %v539 = vunpack.c.l.b16 %v281
      %v540 = vunpack.c.h.b16 %v281
      %v541 = vunpack.c.l.b16 %v282
      %v542 = vunpack.c.h.b16 %v282
      %v543 = vunpack.c.l.b16 %v283
      %v544 = vunpack.c.h.b16 %v283
      %v545 = vunpack.c.l.b16 %v284
      %v546 = vunpack.c.h.b16 %v284
      %v547 = vunpack.c.l.b16 %v285
      %v548 = vunpack.c.h.b16 %v285
      %v549 = vunpack.c.l.b16 %v286
      %v550 = vunpack.c.h.b16 %v286
      %v551 = vunpack.c.l.b16 %v287
      %v552 = vunpack.c.h.b16 %v287
      %v553 = vunpack.c.l.b16 %v288
      %v554 = vunpack.c.h.b16 %v288
      %v555 = vunpack.c.l.b16 %v289
      %v556 = vunpack.c.h.b16 %v289
      %v557 = vunpack.c.l.b16 %v290
      %v558 = vunpack.c.h.b16 %v290
      %v559 = vunpack.c.l.b16 %v291
      %v560 = vunpack.c.h.b16 %v291
      %v561 = vunpack.c.l.b16 %v292
      %v562 = vunpack.c.h.b16 %v292
      %v563 = vunpack.c.l.b16 %v293
      %v564 = vunpack.c.h.b16 %v293
      %v565 = vunpack.c.l.b16 %v294
      %v566 = vunpack.c.h.b16 %v294
      %v567 = vunpack.c.l.b16 %v295
      %v568 = vunpack.c.h.b16 %v295
      %v569 = vunpack.c.l.b16 %v296
      %v570 = vunpack.c.h.b16 %v296
      %v571 = vunpack.c.l.b16 %v297
      %v572 = vunpack.c.h.b16 %v297
      %v573 = vunpack.c.l.b16 %v298
      %v574 = vunpack.c.h.b16 %v298
      %v575 = vunpack.c.l.b16 %v299
      %v576 = vunpack.c.h.b16 %v299
      %v577 = vunpack.c.l.b16 %v300
      %v578 = vunpack.c.h.b16 %v300
      %v579 = vunpack.c.l.b16 %v301
      %v580 = vunpack.c.h.b16 %v301
      %v581 = vunpack.c.l.b16 %v302
      %v582 = vunpack.c.h.b16 %v302
      %v583 = vunpack.c.l.b16 %v303
      %v584 = vunpack.c.h.b16 %v303
      %v585 = vunpack.c.l.b16 %v304
      %v586 = vunpack.c.h.b16 %v304
      %v587 = vunpack.c.l.b16 %v305
      %v588 = vunpack.c.h.b16 %v305
      %v589 = vunpack.c.l.b16 %v306
      %v590 = vunpack.c.h.b16 %v306
      %v591 = vunpack.c.l.b16 %v307
      %v592 = vunpack.c.h.b16 %v307
      %v593 = vunpack.c.l.b16 %v308
      %v594 = vunpack.c.h.b16 %v308
      %v595 = vunpack.c.l.b16 %v309
      %v596 = vunpack.c.h.b16 %v309
      %v597 = vunpack.c.l.b16 %v310
      %v598 = vunpack.c.h.b16 %v310
      %v599 = vunpack.c.l.b16 %v311
      %v600 = vunpack.c.h.b16 %v311
      %v601 = vunpack.c.l.b16 %v312
      %v602 = vunpack.c.h.b16 %v312
      %v603 = vunpack.c.l.b16 %v313
      %v604 = vunpack.c.h.b16 %v313
      %v605 = vunpack.c.l.b16 %v314
      %v606 = vunpack.c.h.b16 %v314
      %v607 = vunpack.c.l.b16 %v315
      %v608 = vunpack.c.h.b16 %v315
      %v609 = vunpack.c.l.b16 %v316
      %v610 = vunpack.c.h.b16 %v316
      %v611 = vunpack.c.l.b16 %v317
      %v612 = vunpack.c.h.b16 %v317
      %v613 = vunpack.c.l.b16 %v318
      %v614 = vunpack.c.h.b16 %v318
      %v615 = vunpack.c.l.b16 %v319
      %v616 = vunpack.c.h.b16 %v319
      %v617 = vunpack.c.l.b16 %v320
      %v618 = vunpack.c.h.b16 %v320
      %v619 = vunpack.c.l.b16 %v321
      %v620 = vunpack.c.h.b16 %v321
      %v621 = vunpack.c.l.b16 %v322
      %v622 = vunpack.c.h.b16 %v322
      %v623 = vunpack.c.l.b16 %v323
      %v624 = vunpack.c.h.b16 %v323
      %v625 = vunpack.c.l.b16 %v324
      %v626 = vunpack.c.h.b16 %v324
      %v627 = vunpack.c.l.b16 %v325
      %v628 = vunpack.c.h.b16 %v325
      %v629 = vunpack.c.l.b16 %v326
      %v630 = vunpack.c.h.b16 %v326
      %v631 = vunpack.c.l.b16 %v327
      %v632 = vunpack.c.h.b16 %v327
      %v633 = vunpack.c.l.b16 %v328
      %v634 = vunpack.c.h.b16 %v328
      %v635 = vunpack.c.l.b16 %v329
      %v636 = vunpack.c.h.b16 %v329
      %v637 = vunpack.c.l.b16 %v330
      %v638 = vunpack.c.h.b16 %v330
      %v639 = vunpack.c.l.b16 %v331
      %v640 = vunpack.c.h.b16 %v331
      %v641 = vunpack.c.l.b16 %v332
      %v642 = vunpack.c.h.b16 %v332
      %v643 = vunpack.c.l.b16 %v333
      %v644 = vunpack.c.h.b16 %v333
      %v645 = vunpack.c.l.b16 %v334
      %v646 = vunpack.c.h.b16 %v334
      %v647 = vunpack.c.l.b16 %v335
      %v648 = vunpack.c.h.b16 %v335
      %v649 = vunpack.c.l.b16 %v336
      %v650 = vunpack.c.h.b16 %v336
      %v651 = vunpack.c.l.b16 %v337
      %v652 = vunpack.c.h.b16 %v337
      %v653 = vunpack.c.l.b16 %v338
      %v654 = vunpack.c.h.b16 %v338
      %v655 = vunpack.c.l.b16 %v339
      %v656 = vunpack.c.h.b16 %v339
      %v657 = vunpack.c.l.b16 %v340
      %v658 = vunpack.c.h.b16 %v340
      %v659 = vunpack.c.l.b16 %v341
      %v660 = vunpack.c.h.b16 %v341
      %v661 = vunpack.c.l.b16 %v342
      %v662 = vunpack.c.h.b16 %v342
      %v663 = vunpack.c.l.b16 %v343
      %v664 = vunpack.c.h.b16 %v343
      %v665 = vunpack.c.l.b16 %v344
      %v666 = vunpack.c.h.b16 %v344
      %v667 = vunpack.c.l.b16 %v345
      %v668 = vunpack.c.h.b16 %v345
      %v669 = vunpack.c.l.b16 %v346
      %v670 = vunpack.c.h.b16 %v346
      %v671 = vunpack.c.l.b16 %v347
      %v672 = vunpack.c.h.b16 %v347
      %v673 = vunpack.c.l.b16 %v348
      %v674 = vunpack.c.h.b16 %v348
      %v675 = vunpack.c.l.b16 %v349
      %v676 = vunpack.c.h.b16 %v349
      %v677 = vunpack.c.l.b16 %v350
      %v678 = vunpack.c.h.b16 %v350
      %v679 = vunpack.c.l.b16 %v351
      %v680 = vunpack.c.h.b16 %v351
      %v681 = vunpack.c.l.b16 %v352
      %v682 = vunpack.c.h.b16 %v352
      %v683 = vunpack.c.l.b16 %v353
      %v684 = vunpack.c.h.b16 %v353
      %v685 = vunpack.c.l.b16 %v354
      %v686 = vunpack.c.h.b16 %v354
      %v687 = vunpack.c.l.b16 %v355
      %v688 = vunpack.c.h.b16 %v355
      %v689 = vpack.c.b16 %v495, %v493
      %v690 = vpack.c.b16 %v496, %v494
      %v691 = vpack.c.b16 %v499, %v497
      %v692 = vpack.c.b16 %v500, %v498
      %v693 = vpack.c.b16 %v503, %v501
      %v694 = vpack.c.b16 %v504, %v502
      %v695 = vpack.c.b16 %v507, %v505
      %v696 = vpack.c.b16 %v508, %v506
      %v697 = vpack.c.b16 %v511, %v509
      %v698 = vpack.c.b16 %v512, %v510
      %v699 = vpack.c.b16 %v515, %v513
      %v700 = vpack.c.b16 %v516, %v514
      %v701 = vpack.c.b16 %v519, %v517
      %v702 = vpack.c.b16 %v520, %v518
      %v703 = vpack.c.b16 %v523, %v521
      %v704 = vpack.c.b16 %v524, %v522
      %v705 = vpack.c.b16 %v527, %v525
      %v706 = vpack.c.b16 %v528, %v526
      %v707 = vpack.c.b16 %v531, %v529
      %v708 = vpack.c.b16 %v532, %v530
      %v709 = vpack.c.b16 %v535, %v533
      %v710 = vpack.c.b16 %v536, %v534
      %v711 = vpack.c.b16 %v539, %v537
      %v712 = vpack.c.b16 %v540, %v538
      %v713 = vpack.c.b16 %v543, %v541
      %v714 = vpack.c.b16 %v544, %v542
      %v715 = vpack.c.b16 %v547, %v545
      %v716 = vpack.c.b16 %v548, %v546
      %v717 = vpack.c.b16 %v551, %v549
      %v718 = vpack.c.b16 %v552, %v550
      %v719 = vpack.c.b16 %v555, %v553
      %v720 = vpack.c.b16 %v556, %v554
      %v721 = vpack.c.b16 %v559, %v557
      %v722 = vpack.c.b16 %v560, %v558
      %v723 = vpack.c.b16 %v563, %v561
      %v724 = vpack.c.b16 %v564, %v562
      %v725 = vpack.c.b16 %v567, %v565
      %v726 = vpack.c.b16 %v568, %v566
      %v727 = vpack.c.b16 %v571, %v569
      %v728 = vpack.c.b16 %v572, %v570
      %v729 = vpack.c.b16 %v575, %v573
      %v730 = vpack.c.b16 %v576, %v574
      %v731 = vpack.c.b16 %v579, %v577
      %v732 = vpack.c.b16 %v580, %v578
      %v733 = vpack.c.b16 %v583, %v581
      %v734 = vpack.c.b16 %v584, %v582
      %v735 = vpack.c.b16 %v587, %v585
      %v736 = vpack.c.b16 %v588, %v586
      %v737 = vpack.c.b16 %v591, %v589
      %v738 = vpack.c.b16 %v592, %v590
      %v739 = vpack.c.b16 %v595, %v593
      %v740 = vpack.c.b16 %v596, %v594
      %v741 = vpack.c.b16 %v599, %v597
      %v742 = vpack.c.b16 %v600, %v598
      %v743 = vpack.c.b16 %v603, %v601
      %v744 = vpack.c.b16 %v604, %v602
      %v745 = vpack.c.b16 %v607, %v605
      %v746 = vpack.c.b16 %v608, %v606
      %v747 = vpack.c.b16 %v611, %v609
      %v748 = vpack.c.b16 %v612, %v610
      %v749 = vpack.c.b16 %v615, %v613
      %v750 = vpack.c.b16 %v616, %v614
      %v751 = vpack.c.b16 %v619, %v617
      %v752 = vpack.c.b16 %v620, %v618
      %v753 = vpack.c.b16 %v623, %v621
      %v754 = vpack.c.b16 %v624, %v622
      %v755 = vpack.c.b16 %v627, %v625
      %v756 = vpack.c.b16 %v628, %v626
      %v757 = vpack.c.b16 %v631, %v629
      %v758 = vpack.c.b16 %v632, %v630
      %v759 = vpack.c.b16 %v635, %v633
      %v760 = vpack.c.b16 %v636, %v634
      %v761 = vpack.c.b16 %v639, %v637
      %v762 = vpack.c.b16 %v640, %v638
      %v763 = vpack.c.b16 %v643, %v641
      %v764 = vpack.c.b16 %v644, %v642
      %v765 = vpack.c.b16 %v647, %v645
      %v766 = vpack.c.b16 %v648, %v646
      %v767 = vpack.c.b16 %v651, %v649
      %v768 = vpack.c.b16 %v652, %v650
      %v769 = vpack.c.b16 %v655, %v653
      %v770 = vpack.c.b16 %v656, %v654
      %v771 = vpack.c.b16 %v659, %v657
      %v772 = vpack.c.b16 %v660, %v658
      %v773 = vpack.c.b16 %v663, %v661
      %v774 = vpack.c.b16 %v664, %v662
      %v775 = vpack.c.b16 %v667, %v665
      %v776 = vpack.c.b16 %v668, %v666
      %v777 = vpack.c.b16 %v671, %v669
      %v778 = vpack.c.b16 %v672, %v670
      %v779 = vpack.c.b16 %v675, %v673
      %v780 = vpack.c.b16 %v676, %v674
      %v781 = vpack.c.b16 %v679, %v677
      %v782 = vpack.c.b16 %v680, %v678
      %v783 = vpack.c.b16 %v683, %v681
      %v784 = vpack.c.b16 %v684, %v682
      %v785 = vpack.c.b16 %v687, %v685
      %v786 = vpack.c.b16 %v688, %v686
      %v917 = vunpack.c.l.b16 %v356
      %v918 = vunpack.c.l.b16 %v357
      %v919 = vunpack.c.l.b16 %v358
      %v920 = vunpack.c.l.b16 %v359
      %v921 = vunpack.c.l.b16 %v360
      %v922 = vunpack.c.l.b16 %v361
      %v923 = vunpack.c.l.b16 %v362
      %v924 = vunpack.c.l.b16 %v363
      %v925 = vunpack.c.l.b16 %v364
      %v926 = vunpack.c.l.b16 %v365
      %v927 = vunpack.c.l.b16 %v366
      %v928 = vunpack.c.l.b16 %v367
      %v929 = vunpack.c.l.b16 %v368
      %v930 = vunpack.c.l.b16 %v369
      %v931 = vunpack.c.l.b16 %v370
      %v932 = vunpack.c.l.b16 %v371
      %v933 = vunpack.c.l.b16 %v372
      %v934 = vunpack.c.l.b16 %v373
      %v935 = vunpack.c.l.b16 %v374
      %v936 = vunpack.c.l.b16 %v375
      %v937 = vunpack.c.l.b16 %v376
      %v938 = vunpack.c.l.b16 %v377
      %v939 = vunpack.c.l.b16 %v378
      %v940 = vunpack.c.l.b16 %v379
      %v941 = vunpack.c.l.b16 %v380
      %v942 = vunpack.c.l.b16 %v381
      %v943 = vunpack.c.l.b16 %v382
      %v944 = vunpack.c.l.b16 %v383
      %v945 = vunpack.c.l.b16 %v384
      %v946 = vunpack.c.l.b16 %v385
      %v947 = vunpack.c.l.b16 %v386
      %v948 = vunpack.c.l.b16 %v387
      %v949 = vpack.c.b16 %v918, %v917
      %v950 = vpack.c.b16 %v920, %v919
      %v951 = vpack.c.b16 %v922, %v921
      %v952 = vpack.c.b16 %v924, %v923
      %v953 = vpack.c.b16 %v926, %v925
      %v954 = vpack.c.b16 %v928, %v927
      %v955 = vpack.c.b16 %v930, %v929
      %v956 = vpack.c.b16 %v932, %v931
      %v957 = vpack.c.b16 %v934, %v933
      %v958 = vpack.c.b16 %v936, %v935
      %v959 = vpack.c.b16 %v938, %v937
      %v960 = vpack.c.b16 %v940, %v939
      %v961 = vpack.c.b16 %v942, %v941
      %v962 = vpack.c.b16 %v944, %v943
      %v963 = vpack.c.b16 %v946, %v945
      %v964 = vpack.c.b16 %v948, %v947
      %981 = vmatprep.subr.bf16.mxu0 0
      %982 = vmatpush1.bf16.msra.mxu0 %v956
      %983 = vmatprep.subr.bf16.mxu0 0
      %984 = vmatpush1.bf16.msra.mxu0 %v955
      %985 = vmatprep.subr.bf16.mxu0 0
      %986 = vmatpush1.bf16.msra.mxu0 %v954
      %987 = vmatprep.subr.bf16.mxu0 0
      %988 = vmatpush1.bf16.msra.mxu0 %v953
      %989 = vmatprep.subr.bf16.mxu0 0
      %990 = vmatpush1.bf16.msra.mxu0 %v952
      %991 = vmatprep.subr.bf16.mxu0 0
      %992 = vmatpush1.bf16.msra.mxu0 %v951
      %993 = vmatprep.subr.bf16.mxu0 0
      %994 = vmatpush1.bf16.msra.mxu0 %v950
      %995 = vmatprep.subr.bf16.mxu0 0
      %996 = vmatpush1.bf16.msra.mxu0 %v949
      %997 = vmatprep.subr.bf16.mxu0 0
      %998 = vmatpush2.bf16.msra.mxu0 %v964
      %999 = vmatprep.subr.bf16.mxu0 0
      %1000 = vmatpush2.bf16.msra.mxu0 %v963
      %1001 = vmatprep.subr.bf16.mxu0 0
      %1002 = vmatpush2.bf16.msra.mxu0 %v962
      %1003 = vmatprep.subr.bf16.mxu0 0
      %1004 = vmatpush2.bf16.msra.mxu0 %v961
      %1005 = vmatprep.subr.bf16.mxu0 0
      %1006 = vmatpush2.bf16.msra.mxu0 %v960
      %1007 = vmatprep.subr.bf16.mxu0 0
      %1008 = vmatpush2.bf16.msra.mxu0 %v959
      %1009 = vmatprep.subr.bf16.mxu0 0
      %1010 = vmatpush2.bf16.msra.mxu0 %v958
      %1011 = vmatprep.subr.bf16.mxu0 0
      %1012 = vmatpush2.bf16.msra.mxu0 %v957
      %1013 = vmatprep.mubr.bf16.mxu0 %v690
      %1014 = vmatmul.mubr.bf16.gmra.mxu0 %v689
      %v1015 = vpop.f32.mrf.mxu0
      %v1016 = vadd.f32 %v393, %v1015
      %v1017 = vpop.f32.mrf.mxu0
      %v1018 = vpop.f32.mrf.mxu0
      %v1019 = vadd.f32 %v393, %v1018
      %v1020 = vpop.f32.mrf.mxu0
      %1021 = vmatprep.mubr.bf16.mxu0 %v692
      %1022 = vmatmul.mubr.bf16.gmra.mxu0 %v691
      %v1023 = vpop.f32.mrf.mxu0
      %v1024 = vadd.f32 %v393, %v1023
      %v1025 = vpop.f32.mrf.mxu0
      %v1026 = vpop.f32.mrf.mxu0
      %v1027 = vadd.f32 %v393, %v1026
      %v1028 = vpop.f32.mrf.mxu0
      %1029 = vmatprep.mubr.bf16.mxu0 %v694
      %1030 = vmatmul.mubr.bf16.gmra.mxu0 %v693
      %v1031 = vpop.f32.mrf.mxu0
      %v1032 = vadd.f32 %v393, %v1031
      %v1033 = vpop.f32.mrf.mxu0
      %v1034 = vpop.f32.mrf.mxu0
      %v1035 = vadd.f32 %v393, %v1034
      %v1036 = vpop.f32.mrf.mxu0
      %1037 = vmatprep.mubr.bf16.mxu0 %v696
      %1038 = vmatmul.mubr.bf16.gmra.mxu0 %v695
      %v1039 = vpop.f32.mrf.mxu0
      %v1040 = vadd.f32 %v393, %v1039
      %v1041 = vpop.f32.mrf.mxu0
      %v1042 = vpop.f32.mrf.mxu0
      %v1043 = vadd.f32 %v393, %v1042
      %v1044 = vpop.f32.mrf.mxu0
      %1045 = vmatprep.mubr.bf16.mxu0 %v698
      %1046 = vmatmul.mubr.bf16.gmra.mxu0 %v697
      %v1047 = vpop.f32.mrf.mxu0
      %v1048 = vadd.f32 %v393, %v1047
      %v1049 = vpop.f32.mrf.mxu0
      %v1050 = vpop.f32.mrf.mxu0
      %v1051 = vadd.f32 %v393, %v1050
      %v1052 = vpop.f32.mrf.mxu0
      %1053 = vmatprep.mubr.bf16.mxu0 %v700
      %1054 = vmatmul.mubr.bf16.gmra.mxu0 %v699
      %v1055 = vpop.f32.mrf.mxu0
      %v1056 = vadd.f32 %v393, %v1055
      %v1057 = vpop.f32.mrf.mxu0
      %v1058 = vpop.f32.mrf.mxu0
      %v1059 = vadd.f32 %v393, %v1058
      %v1060 = vpop.f32.mrf.mxu0
      %1061 = vmatprep.mubr.bf16.mxu0 %v702
      %1062 = vmatmul.mubr.bf16.gmra.mxu0 %v701
      %v1063 = vpop.f32.mrf.mxu0
      %v1064 = vadd.f32 %v393, %v1063
      %v1065 = vpop.f32.mrf.mxu0
      %v1066 = vpop.f32.mrf.mxu0
      %v1067 = vadd.f32 %v393, %v1066
      %v1068 = vpop.f32.mrf.mxu0
      %1069 = vmatprep.mubr.bf16.mxu0 %v704
      %1070 = vmatmul.mubr.bf16.gmra.mxu0 %v703
      %v1071 = vpop.f32.mrf.mxu0
      %v1072 = vadd.f32 %v393, %v1071
      %v1073 = vpop.f32.mrf.mxu0
      %v1074 = vpop.f32.mrf.mxu0
      %v1075 = vadd.f32 %v393, %v1074
      %v1076 = vpop.f32.mrf.mxu0
      %1077 = vmatprep.mubr.bf16.mxu0 %v706
      %1078 = vmatmul.mubr.bf16.gmra.mxu0 %v705
      %v1079 = vpop.f32.mrf.mxu0
      %v1080 = vadd.f32 %v393, %v1079
      %v1081 = vpop.f32.mrf.mxu0
      %v1082 = vpop.f32.mrf.mxu0
      %v1083 = vadd.f32 %v393, %v1082
      %v1084 = vpop.f32.mrf.mxu0
      %1085 = vmatprep.mubr.bf16.mxu0 %v708
      %1086 = vmatmul.mubr.bf16.gmra.mxu0 %v707
      %v1087 = vpop.f32.mrf.mxu0
      %v1088 = vadd.f32 %v393, %v1087
      %v1089 = vpop.f32.mrf.mxu0
      %v1090 = vpop.f32.mrf.mxu0
      %v1091 = vadd.f32 %v393, %v1090
      %v1092 = vpop.f32.mrf.mxu0
      %1093 = vmatprep.mubr.bf16.mxu0 %v710
      %1094 = vmatmul.mubr.bf16.gmra.mxu0 %v709
      %v1095 = vpop.f32.mrf.mxu0
      %v1096 = vadd.f32 %v393, %v1095
      %v1097 = vpop.f32.mrf.mxu0
      %v1098 = vpop.f32.mrf.mxu0
      %v1099 = vadd.f32 %v393, %v1098
      %v1100 = vpop.f32.mrf.mxu0
      %1101 = vmatprep.mubr.bf16.mxu0 %v712
      %1102 = vmatmul.mubr.bf16.gmra.mxu0 %v711
      %v1103 = vpop.f32.mrf.mxu0
      %v1104 = vadd.f32 %v393, %v1103
      %v1105 = vpop.f32.mrf.mxu0
      %v1106 = vpop.f32.mrf.mxu0
      %v1107 = vadd.f32 %v393, %v1106
      %v1108 = vpop.f32.mrf.mxu0
      %1109 = vmatprep.mubr.bf16.mxu0 %v714
      %1110 = vmatmul.mubr.bf16.gmra.mxu0 %v713
      %v1111 = vpop.f32.mrf.mxu0
      %v1112 = vadd.f32 %v393, %v1111
      %v1113 = vpop.f32.mrf.mxu0
      %v1114 = vpop.f32.mrf.mxu0
      %v1115 = vadd.f32 %v393, %v1114
      %v1116 = vpop.f32.mrf.mxu0
      %1117 = vmatprep.mubr.bf16.mxu0 %v716
      %1118 = vmatmul.mubr.bf16.gmra.mxu0 %v715
      %v1119 = vpop.f32.mrf.mxu0
      %v1120 = vadd.f32 %v393, %v1119
      %v1121 = vpop.f32.mrf.mxu0
      %v1122 = vpop.f32.mrf.mxu0
      %v1123 = vadd.f32 %v393, %v1122
      %v1124 = vpop.f32.mrf.mxu0
      %1125 = vmatprep.mubr.bf16.mxu0 %v718
      %1126 = vmatmul.mubr.bf16.gmra.mxu0 %v717
      %v1127 = vpop.f32.mrf.mxu0
      %v1128 = vadd.f32 %v393, %v1127
      %v1129 = vpop.f32.mrf.mxu0
      %v1130 = vpop.f32.mrf.mxu0
      %v1131 = vadd.f32 %v393, %v1130
      %v1132 = vpop.f32.mrf.mxu0
      %1133 = vmatprep.mubr.bf16.mxu0 %v720
      %1134 = vmatmul.mubr.bf16.gmra.mxu0 %v719
      %v1135 = vpop.f32.mrf.mxu0
      %v1136 = vadd.f32 %v393, %v1135
      %v1137 = vpop.f32.mrf.mxu0
      %v1138 = vpop.f32.mrf.mxu0
      %v1139 = vadd.f32 %v393, %v1138
      %v1140 = vpop.f32.mrf.mxu0
      %1141 = vmatprep.mubr.bf16.mxu0 %v722
      %1142 = vmatmul.mubr.bf16.gmra.mxu0 %v721
      %v1143 = vpop.f32.mrf.mxu0
      %v1144 = vadd.f32 %v393, %v1143
      %v1145 = vpop.f32.mrf.mxu0
      %v1146 = vpop.f32.mrf.mxu0
      %v1147 = vadd.f32 %v393, %v1146
      %v1148 = vpop.f32.mrf.mxu0
      %1149 = vmatprep.mubr.bf16.mxu0 %v724
      %1150 = vmatmul.mubr.bf16.gmra.mxu0 %v723
      %v1151 = vpop.f32.mrf.mxu0
      %v1152 = vadd.f32 %v393, %v1151
      %v1153 = vpop.f32.mrf.mxu0
      %v1154 = vpop.f32.mrf.mxu0
      %v1155 = vadd.f32 %v393, %v1154
      %v1156 = vpop.f32.mrf.mxu0
      %1157 = vmatprep.mubr.bf16.mxu0 %v726
      %1158 = vmatmul.mubr.bf16.gmra.mxu0 %v725
      %v1159 = vpop.f32.mrf.mxu0
      %v1160 = vadd.f32 %v393, %v1159
      %v1161 = vpop.f32.mrf.mxu0
      %v1162 = vpop.f32.mrf.mxu0
      %v1163 = vadd.f32 %v393, %v1162
      %v1164 = vpop.f32.mrf.mxu0
      %1165 = vmatprep.mubr.bf16.mxu0 %v728
      %1166 = vmatmul.mubr.bf16.gmra.mxu0 %v727
      %v1167 = vpop.f32.mrf.mxu0
      %v1168 = vadd.f32 %v393, %v1167
      %v1169 = vpop.f32.mrf.mxu0
      %v1170 = vpop.f32.mrf.mxu0
      %v1171 = vadd.f32 %v393, %v1170
      %v1172 = vpop.f32.mrf.mxu0
      %1173 = vmatprep.mubr.bf16.mxu0 %v730
      %1174 = vmatmul.mubr.bf16.gmra.mxu0 %v729
      %v1175 = vpop.f32.mrf.mxu0
      %v1176 = vadd.f32 %v393, %v1175
      %v1177 = vpop.f32.mrf.mxu0
      %v1178 = vpop.f32.mrf.mxu0
      %v1179 = vadd.f32 %v393, %v1178
      %v1180 = vpop.f32.mrf.mxu0
      %1181 = vmatprep.mubr.bf16.mxu0 %v732
      %1182 = vmatmul.mubr.bf16.gmra.mxu0 %v731
      %v1183 = vpop.f32.mrf.mxu0
      %v1184 = vadd.f32 %v393, %v1183
      %v1185 = vpop.f32.mrf.mxu0
      %v1186 = vpop.f32.mrf.mxu0
      %v1187 = vadd.f32 %v393, %v1186
      %v1188 = vpop.f32.mrf.mxu0
      %1189 = vmatprep.mubr.bf16.mxu0 %v734
      %1190 = vmatmul.mubr.bf16.gmra.mxu0 %v733
      %v1191 = vpop.f32.mrf.mxu0
      %v1192 = vadd.f32 %v393, %v1191
      %v1193 = vpop.f32.mrf.mxu0
      %v1194 = vpop.f32.mrf.mxu0
      %v1195 = vadd.f32 %v393, %v1194
      %v1196 = vpop.f32.mrf.mxu0
      %1197 = vmatprep.mubr.bf16.mxu0 %v736
      %1198 = vmatmul.mubr.bf16.gmra.mxu0 %v735
      %v1199 = vpop.f32.mrf.mxu0
      %v1200 = vadd.f32 %v393, %v1199
      %v1201 = vpop.f32.mrf.mxu0
      %v1202 = vpop.f32.mrf.mxu0
      %v1203 = vadd.f32 %v393, %v1202
      %v1204 = vpop.f32.mrf.mxu0
      %1205 = vmatprep.mubr.bf16.mxu0 %v738
      %1206 = vmatmul.mubr.bf16.gmra.mxu0 %v737
      %v1207 = vpop.f32.mrf.mxu0
      %v1208 = vadd.f32 %v393, %v1207
      %v1209 = vpop.f32.mrf.mxu0
      %v1210 = vpop.f32.mrf.mxu0
      %v1211 = vadd.f32 %v393, %v1210
      %v1212 = vpop.f32.mrf.mxu0
      %1213 = vmatprep.mubr.bf16.mxu0 %v740
      %1214 = vmatmul.mubr.bf16.gmra.mxu0 %v739
      %v1215 = vpop.f32.mrf.mxu0
      %v1216 = vadd.f32 %v393, %v1215
      %v1217 = vpop.f32.mrf.mxu0
      %v1218 = vpop.f32.mrf.mxu0
      %v1219 = vadd.f32 %v393, %v1218
      %v1220 = vpop.f32.mrf.mxu0
      %1221 = vmatprep.mubr.bf16.mxu0 %v742
      %1222 = vmatmul.mubr.bf16.gmra.mxu0 %v741
      %v1223 = vpop.f32.mrf.mxu0
      %v1224 = vadd.f32 %v393, %v1223
      %v1225 = vpop.f32.mrf.mxu0
      %v1226 = vpop.f32.mrf.mxu0
      %v1227 = vadd.f32 %v393, %v1226
      %v1228 = vpop.f32.mrf.mxu0
      %1229 = vmatprep.mubr.bf16.mxu0 %v744
      %1230 = vmatmul.mubr.bf16.gmra.mxu0 %v743
      %v1231 = vpop.f32.mrf.mxu0
      %v1232 = vadd.f32 %v393, %v1231
      %v1233 = vpop.f32.mrf.mxu0
      %v1234 = vpop.f32.mrf.mxu0
      %v1235 = vadd.f32 %v393, %v1234
      %v1236 = vpop.f32.mrf.mxu0
      %1237 = vmatprep.mubr.bf16.mxu0 %v746
      %1238 = vmatmul.mubr.bf16.gmra.mxu0 %v745
      %v1239 = vpop.f32.mrf.mxu0
      %v1240 = vadd.f32 %v393, %v1239
      %v1241 = vpop.f32.mrf.mxu0
      %v1242 = vpop.f32.mrf.mxu0
      %v1243 = vadd.f32 %v393, %v1242
      %v1244 = vpop.f32.mrf.mxu0
      %1245 = vmatprep.mubr.bf16.mxu0 %v748
      %1246 = vmatmul.mubr.bf16.gmra.mxu0 %v747
      %v1247 = vpop.f32.mrf.mxu0
      %v1248 = vadd.f32 %v393, %v1247
      %v1249 = vpop.f32.mrf.mxu0
      %v1250 = vpop.f32.mrf.mxu0
      %v1251 = vadd.f32 %v393, %v1250
      %v1252 = vpop.f32.mrf.mxu0
      %1253 = vmatprep.mubr.bf16.mxu0 %v750
      %1254 = vmatmul.mubr.bf16.gmra.mxu0 %v749
      %v1255 = vpop.f32.mrf.mxu0
      %v1256 = vadd.f32 %v393, %v1255
      %v1257 = vpop.f32.mrf.mxu0
      %v1258 = vpop.f32.mrf.mxu0
      %v1259 = vadd.f32 %v393, %v1258
      %v1260 = vpop.f32.mrf.mxu0
      %1261 = vmatprep.mubr.bf16.mxu0 %v752
      %1262 = vmatmul.mubr.bf16.gmra.mxu0 %v751
      %v1263 = vpop.f32.mrf.mxu0
      %v1264 = vadd.f32 %v393, %v1263
      %v1265 = vpop.f32.mrf.mxu0
      %v1266 = vpop.f32.mrf.mxu0
      %v1267 = vadd.f32 %v393, %v1266
      %v1268 = vpop.f32.mrf.mxu0
      %1269 = vmatprep.mubr.bf16.mxu0 %v754
      %1270 = vmatmul.mubr.bf16.gmra.mxu0 %v753
      %v1271 = vpop.f32.mrf.mxu0
      %v1272 = vadd.f32 %v393, %v1271
      %v1273 = vpop.f32.mrf.mxu0
      %v1274 = vpop.f32.mrf.mxu0
      %v1275 = vadd.f32 %v393, %v1274
      %v1276 = vpop.f32.mrf.mxu0
      %1277 = vmatprep.mubr.bf16.mxu0 %v756
      %1278 = vmatmul.mubr.bf16.gmra.mxu0 %v755
      %v1279 = vpop.f32.mrf.mxu0
      %v1280 = vadd.f32 %v393, %v1279
      %v1281 = vpop.f32.mrf.mxu0
      %v1282 = vpop.f32.mrf.mxu0
      %v1283 = vadd.f32 %v393, %v1282
      %v1284 = vpop.f32.mrf.mxu0
      %1285 = vmatprep.mubr.bf16.mxu0 %v758
      %1286 = vmatmul.mubr.bf16.gmra.mxu0 %v757
      %v1287 = vpop.f32.mrf.mxu0
      %v1288 = vadd.f32 %v393, %v1287
      %v1289 = vpop.f32.mrf.mxu0
      %v1290 = vpop.f32.mrf.mxu0
      %v1291 = vadd.f32 %v393, %v1290
      %v1292 = vpop.f32.mrf.mxu0
      %1293 = vmatprep.mubr.bf16.mxu0 %v760
      %1294 = vmatmul.mubr.bf16.gmra.mxu0 %v759
      %v1295 = vpop.f32.mrf.mxu0
      %v1296 = vadd.f32 %v393, %v1295
      %v1297 = vpop.f32.mrf.mxu0
      %v1298 = vpop.f32.mrf.mxu0
      %v1299 = vadd.f32 %v393, %v1298
      %v1300 = vpop.f32.mrf.mxu0
      %1301 = vmatprep.mubr.bf16.mxu0 %v762
      %1302 = vmatmul.mubr.bf16.gmra.mxu0 %v761
      %v1303 = vpop.f32.mrf.mxu0
      %v1304 = vadd.f32 %v393, %v1303
      %v1305 = vpop.f32.mrf.mxu0
      %v1306 = vpop.f32.mrf.mxu0
      %v1307 = vadd.f32 %v393, %v1306
      %v1308 = vpop.f32.mrf.mxu0
      %1309 = vmatprep.mubr.bf16.mxu0 %v764
      %1310 = vmatmul.mubr.bf16.gmra.mxu0 %v763
      %v1311 = vpop.f32.mrf.mxu0
      %v1312 = vadd.f32 %v393, %v1311
      %v1313 = vpop.f32.mrf.mxu0
      %v1314 = vpop.f32.mrf.mxu0
      %v1315 = vadd.f32 %v393, %v1314
      %v1316 = vpop.f32.mrf.mxu0
      %1317 = vmatprep.mubr.bf16.mxu0 %v766
      %1318 = vmatmul.mubr.bf16.gmra.mxu0 %v765
      %v1319 = vpop.f32.mrf.mxu0
      %v1320 = vadd.f32 %v393, %v1319
      %v1321 = vpop.f32.mrf.mxu0
      %v1322 = vpop.f32.mrf.mxu0
      %v1323 = vadd.f32 %v393, %v1322
      %v1324 = vpop.f32.mrf.mxu0
      %1325 = vmatprep.mubr.bf16.mxu0 %v768
      %1326 = vmatmul.mubr.bf16.gmra.mxu0 %v767
      %v1327 = vpop.f32.mrf.mxu0
      %v1328 = vadd.f32 %v393, %v1327
      %v1329 = vpop.f32.mrf.mxu0
      %v1330 = vpop.f32.mrf.mxu0
      %v1331 = vadd.f32 %v393, %v1330
      %v1332 = vpop.f32.mrf.mxu0
      %1333 = vmatprep.mubr.bf16.mxu0 %v770
      %1334 = vmatmul.mubr.bf16.gmra.mxu0 %v769
      %v1335 = vpop.f32.mrf.mxu0
      %v1336 = vadd.f32 %v393, %v1335
      %v1337 = vpop.f32.mrf.mxu0
      %v1338 = vpop.f32.mrf.mxu0
      %v1339 = vadd.f32 %v393, %v1338
      %v1340 = vpop.f32.mrf.mxu0
      %1341 = vmatprep.mubr.bf16.mxu0 %v772
      %1342 = vmatmul.mubr.bf16.gmra.mxu0 %v771
      %v1343 = vpop.f32.mrf.mxu0
      %v1344 = vadd.f32 %v393, %v1343
      %v1345 = vpop.f32.mrf.mxu0
      %v1346 = vpop.f32.mrf.mxu0
      %v1347 = vadd.f32 %v393, %v1346
      %v1348 = vpop.f32.mrf.mxu0
      %1349 = vmatprep.mubr.bf16.mxu0 %v774
      %1350 = vmatmul.mubr.bf16.gmra.mxu0 %v773
      %v1351 = vpop.f32.mrf.mxu0
      %v1352 = vadd.f32 %v393, %v1351
      %v1353 = vpop.f32.mrf.mxu0
      %v1354 = vpop.f32.mrf.mxu0
      %v1355 = vadd.f32 %v393, %v1354
      %v1356 = vpop.f32.mrf.mxu0
      %1357 = vmatprep.mubr.bf16.mxu0 %v776
      %1358 = vmatmul.mubr.bf16.gmra.mxu0 %v775
      %v1359 = vpop.f32.mrf.mxu0
      %v1360 = vadd.f32 %v393, %v1359
      %v1361 = vpop.f32.mrf.mxu0
      %v1362 = vpop.f32.mrf.mxu0
      %v1363 = vadd.f32 %v393, %v1362
      %v1364 = vpop.f32.mrf.mxu0
      %1365 = vmatprep.mubr.bf16.mxu0 %v778
      %1366 = vmatmul.mubr.bf16.gmra.mxu0 %v777
      %v1367 = vpop.f32.mrf.mxu0
      %v1368 = vadd.f32 %v393, %v1367
      %v1369 = vpop.f32.mrf.mxu0
      %v1370 = vpop.f32.mrf.mxu0
      %v1371 = vadd.f32 %v393, %v1370
      %v1372 = vpop.f32.mrf.mxu0
      %1373 = vmatprep.mubr.bf16.mxu0 %v780
      %1374 = vmatmul.mubr.bf16.gmra.mxu0 %v779
      %v1375 = vpop.f32.mrf.mxu0
      %v1376 = vadd.f32 %v393, %v1375
      %v1377 = vpop.f32.mrf.mxu0
      %v1378 = vpop.f32.mrf.mxu0
      %v1379 = vadd.f32 %v393, %v1378
      %v1380 = vpop.f32.mrf.mxu0
      %1381 = vmatprep.mubr.bf16.mxu0 %v782
      %1382 = vmatmul.mubr.bf16.gmra.mxu0 %v781
      %v1383 = vpop.f32.mrf.mxu0
      %v1384 = vadd.f32 %v393, %v1383
      %v1385 = vpop.f32.mrf.mxu0
      %v1386 = vpop.f32.mrf.mxu0
      %v1387 = vadd.f32 %v393, %v1386
      %v1388 = vpop.f32.mrf.mxu0
      %1389 = vmatprep.mubr.bf16.mxu0 %v784
      %1390 = vmatmul.mubr.bf16.gmra.mxu0 %v783
      %v1391 = vpop.f32.mrf.mxu0
      %v1392 = vadd.f32 %v393, %v1391
      %v1393 = vpop.f32.mrf.mxu0
      %v1394 = vpop.f32.mrf.mxu0
      %v1395 = vadd.f32 %v393, %v1394
      %v1396 = vpop.f32.mrf.mxu0
      %1397 = vmatprep.mubr.bf16.mxu0 %v786
      %1398 = vmatmul.mubr.bf16.gmra.mxu0 %v785
      %v1399 = vpop.f32.mrf.mxu0
      %v1400 = vadd.f32 %v393, %v1399
      %v1401 = vpop.f32.mrf.mxu0
      %v1402 = vpop.f32.mrf.mxu0
      %v1403 = vadd.f32 %v393, %v1402
      %v1404 = vpop.f32.mrf.mxu0
      %1405 = vdwg.mxu0
      %v1406 = vmax.f32 %v1016, 0.0
      %v1407 = vmax.f32 %v1019, 0.0
      %v1408 = vmax.f32 %v1024, 0.0
      %v1409 = vmax.f32 %v1027, 0.0
      %v1410 = vmax.f32 %v1032, 0.0
      %v1411 = vmax.f32 %v1035, 0.0
      %v1412 = vmax.f32 %v1040, 0.0
      %v1413 = vmax.f32 %v1043, 0.0
      %v1414 = vmax.f32 %v1048, 0.0
      %v1415 = vmax.f32 %v1051, 0.0
      %v1416 = vmax.f32 %v1056, 0.0
      %v1417 = vmax.f32 %v1059, 0.0
      %v1418 = vmax.f32 %v1064, 0.0
      %v1419 = vmax.f32 %v1067, 0.0
      %v1420 = vmax.f32 %v1072, 0.0
      %v1421 = vmax.f32 %v1075, 0.0
      %v1422 = vmax.f32 %v1080, 0.0
      %v1423 = vmax.f32 %v1083, 0.0
      %v1424 = vmax.f32 %v1088, 0.0
      %v1425 = vmax.f32 %v1091, 0.0
      %v1426 = vmax.f32 %v1096, 0.0
      %v1427 = vmax.f32 %v1099, 0.0
      %v1428 = vmax.f32 %v1104, 0.0
      %v1429 = vmax.f32 %v1107, 0.0
      %v1430 = vmax.f32 %v1112, 0.0
      %v1431 = vmax.f32 %v1115, 0.0
      %v1432 = vmax.f32 %v1120, 0.0
      %v1433 = vmax.f32 %v1123, 0.0
      %v1434 = vmax.f32 %v1128, 0.0
      %v1435 = vmax.f32 %v1131, 0.0
      %v1436 = vmax.f32 %v1136, 0.0
      %v1437 = vmax.f32 %v1139, 0.0
      %v1438 = vmax.f32 %v1144, 0.0
      %v1439 = vmax.f32 %v1147, 0.0
      %v1440 = vmax.f32 %v1152, 0.0
      %v1441 = vmax.f32 %v1155, 0.0
      %v1442 = vmax.f32 %v1160, 0.0
      %v1443 = vmax.f32 %v1163, 0.0
      %v1444 = vmax.f32 %v1168, 0.0
      %v1445 = vmax.f32 %v1171, 0.0
      %v1446 = vmax.f32 %v1176, 0.0
      %v1447 = vmax.f32 %v1179, 0.0
      %v1448 = vmax.f32 %v1184, 0.0
      %v1449 = vmax.f32 %v1187, 0.0
      %v1450 = vmax.f32 %v1192, 0.0
      %v1451 = vmax.f32 %v1195, 0.0
      %v1452 = vmax.f32 %v1200, 0.0
      %v1453 = vmax.f32 %v1203, 0.0
      %v1454 = vmax.f32 %v1208, 0.0
      %v1455 = vmax.f32 %v1211, 0.0
      %v1456 = vmax.f32 %v1216, 0.0
      %v1457 = vmax.f32 %v1219, 0.0
      %v1458 = vmax.f32 %v1224, 0.0
      %v1459 = vmax.f32 %v1227, 0.0
      %v1460 = vmax.f32 %v1232, 0.0
      %v1461 = vmax.f32 %v1235, 0.0
      %v1462 = vmax.f32 %v1240, 0.0
      %v1463 = vmax.f32 %v1243, 0.0
      %v1464 = vmax.f32 %v1248, 0.0
      %v1465 = vmax.f32 %v1251, 0.0
      %v1466 = vmax.f32 %v1256, 0.0
      %v1467 = vmax.f32 %v1259, 0.0
      %v1468 = vmax.f32 %v1264, 0.0
      %v1469 = vmax.f32 %v1267, 0.0
      %v1470 = vmax.f32 %v1272, 0.0
      %v1471 = vmax.f32 %v1275, 0.0
      %v1472 = vmax.f32 %v1280, 0.0
      %v1473 = vmax.f32 %v1283, 0.0
      %v1474 = vmax.f32 %v1288, 0.0
      %v1475 = vmax.f32 %v1291, 0.0
      %v1476 = vmax.f32 %v1296, 0.0
      %v1477 = vmax.f32 %v1299, 0.0
      %v1478 = vmax.f32 %v1304, 0.0
      %v1479 = vmax.f32 %v1307, 0.0
      %v1480 = vmax.f32 %v1312, 0.0
      %v1481 = vmax.f32 %v1315, 0.0
      %v1482 = vmax.f32 %v1320, 0.0
      %v1483 = vmax.f32 %v1323, 0.0
      %v1484 = vmax.f32 %v1328, 0.0
      %v1485 = vmax.f32 %v1331, 0.0
      %v1486 = vmax.f32 %v1336, 0.0
      %v1487 = vmax.f32 %v1339, 0.0
      %v1488 = vmax.f32 %v1344, 0.0
      %v1489 = vmax.f32 %v1347, 0.0
      %v1490 = vmax.f32 %v1352, 0.0
      %v1491 = vmax.f32 %v1355, 0.0
      %v1492 = vmax.f32 %v1360, 0.0
      %v1493 = vmax.f32 %v1363, 0.0
      %v1494 = vmax.f32 %v1368, 0.0
      %v1495 = vmax.f32 %v1371, 0.0
      %v1496 = vmax.f32 %v1376, 0.0
      %v1497 = vmax.f32 %v1379, 0.0
      %v1498 = vmax.f32 %v1384, 0.0
      %v1499 = vmax.f32 %v1387, 0.0
      %v1500 = vmax.f32 %v1392, 0.0
      %v1501 = vmax.f32 %v1395, 0.0
      %v1502 = vmax.f32 %v1400, 0.0
      %v1503 = vmax.f32 %v1403, 0.0
      %v1504 = vld [vmem:[%s3] sm:$0xff]
      %v1505 = vld [vmem:[%s3 + $0x8] sm:$0xff]
      %v1506 = vld [vmem:[%s3 + $0x10] sm:$0xff]
      %v1507 = vld [vmem:[%s3 + $0x18] sm:$0xf]
      %v1508 = vld [vmem:[%s3 + $0x1c] sm:$0xff]
      %v1509 = vld [vmem:[%s3 + $0x24] sm:$0xff]
      %v1510 = vld [vmem:[%s3 + $0x2c] sm:$0xff]
      %v1511 = vld [vmem:[%s3 + $0x34] sm:$0xf]
      %v1512 = vld [vmem:[%s3 + $0x38] sm:$0xff]
      %v1513 = vld [vmem:[%s3 + $0x40] sm:$0xff]
      %v1514 = vld [vmem:[%s3 + $0x48] sm:$0xff]
      %v1515 = vld [vmem:[%s3 + $0x50] sm:$0xf]
      %v1516 = vld [vmem:[%s3 + $0x54] sm:$0xff]
      %v1517 = vld [vmem:[%s3 + $0x5c] sm:$0xff]
      %v1518 = vld [vmem:[%s3 + $0x64] sm:$0xff]
      %v1519 = vld [vmem:[%s3 + $0x6c] sm:$0xf]
      %v1520 = vld [vmem:[%s3 + $0x70] sm:$0xff]
      %v1521 = vld [vmem:[%s3 + $0x78] sm:$0xff]
      %v1522 = vld [vmem:[%s3 + $0x80] sm:$0xff]
      %v1523 = vld [vmem:[%s3 + $0x88] sm:$0xf]
      %v1524 = vld [vmem:[%s3 + $0x8c] sm:$0xff]
      %v1525 = vld [vmem:[%s3 + $0x94] sm:$0xff]
      %v1526 = vld [vmem:[%s3 + $0x9c] sm:$0xff]
      %v1527 = vld [vmem:[%s3 + $0xa4] sm:$0xf]
      %v1528 = vld [vmem:[%s3 + $0xa8] sm:$0x11]
      %v1529 = vld [vmem:[%s3 + $0xb0] sm:$0x11]
      %v1530 = vld [vmem:[%s3 + $0xb8] sm:$0x11]
      %v1531 = vld [vmem:[%s3 + $0xc0] sm:$0x1]
      %v1532 = vpack.c.bf16 %v1407, %v1406
      %v1533 = vpack.c.bf16 %v1409, %v1408
      %v1534 = vpack.c.bf16 %v1411, %v1410
      %v1535 = vpack.c.bf16 %v1413, %v1412
      %v1536 = vpack.c.bf16 %v1415, %v1414
      %v1537 = vpack.c.bf16 %v1417, %v1416
      %v1538 = vpack.c.bf16 %v1419, %v1418
      %v1539 = vpack.c.bf16 %v1421, %v1420
      %v1540 = vpack.c.bf16 %v1423, %v1422
      %v1541 = vpack.c.bf16 %v1425, %v1424
      %v1542 = vpack.c.bf16 %v1427, %v1426
      %v1543 = vpack.c.bf16 %v1429, %v1428
      %v1544 = vpack.c.bf16 %v1431, %v1430
      %v1545 = vpack.c.bf16 %v1433, %v1432
      %v1546 = vpack.c.bf16 %v1435, %v1434
      %v1547 = vpack.c.bf16 %v1437, %v1436
      %v1548 = vpack.c.bf16 %v1439, %v1438
      %v1549 = vpack.c.bf16 %v1441, %v1440
      %v1550 = vpack.c.bf16 %v1443, %v1442
      %v1551 = vpack.c.bf16 %v1445, %v1444
      %v1552 = vpack.c.bf16 %v1447, %v1446
      %v1553 = vpack.c.bf16 %v1449, %v1448
      %v1554 = vpack.c.bf16 %v1451, %v1450
      %v1555 = vpack.c.bf16 %v1453, %v1452
      %v1556 = vpack.c.bf16 %v1455, %v1454
      %v1557 = vpack.c.bf16 %v1457, %v1456
      %v1558 = vpack.c.bf16 %v1459, %v1458
      %v1559 = vpack.c.bf16 %v1461, %v1460
      %v1560 = vpack.c.bf16 %v1463, %v1462
      %v1561 = vpack.c.bf16 %v1465, %v1464
      %v1562 = vpack.c.bf16 %v1467, %v1466
      %v1563 = vpack.c.bf16 %v1469, %v1468
      %v1564 = vpack.c.bf16 %v1471, %v1470
      %v1565 = vpack.c.bf16 %v1473, %v1472
      %v1566 = vpack.c.bf16 %v1475, %v1474
      %v1567 = vpack.c.bf16 %v1477, %v1476
      %v1568 = vpack.c.bf16 %v1479, %v1478
      %v1569 = vpack.c.bf16 %v1481, %v1480
      %v1570 = vpack.c.bf16 %v1483, %v1482
      %v1571 = vpack.c.bf16 %v1485, %v1484
      %v1572 = vpack.c.bf16 %v1487, %v1486
      %v1573 = vpack.c.bf16 %v1489, %v1488
      %v1574 = vpack.c.bf16 %v1491, %v1490
      %v1575 = vpack.c.bf16 %v1493, %v1492
      %v1576 = vpack.c.bf16 %v1495, %v1494
      %v1577 = vpack.c.bf16 %v1497, %v1496
      %v1578 = vpack.c.bf16 %v1499, %v1498
      %v1579 = vpack.c.bf16 %v1501, %v1500
      %v1580 = vpack.c.bf16 %v1503, %v1502
      %v1609 = vunpack.c.l.b16 %v1504
      %v1610 = vunpack.c.h.b16 %v1504
      %v1611 = vunpack.c.l.b16 %v1505
      %v1612 = vunpack.c.h.b16 %v1505
      %v1613 = vunpack.c.l.b16 %v1506
      %v1614 = vunpack.c.h.b16 %v1506
      %v1615 = vunpack.c.l.b16 %v1507
      %v1616 = vunpack.c.l.b16 %v1508
      %v1617 = vunpack.c.h.b16 %v1508
      %v1618 = vunpack.c.l.b16 %v1509
      %v1619 = vunpack.c.h.b16 %v1509
      %v1620 = vunpack.c.l.b16 %v1510
      %v1621 = vunpack.c.h.b16 %v1510
      %v1622 = vunpack.c.l.b16 %v1511
      %v1623 = vunpack.c.l.b16 %v1512
      %v1624 = vunpack.c.h.b16 %v1512
      %v1625 = vunpack.c.l.b16 %v1513
      %v1626 = vunpack.c.h.b16 %v1513
      %v1627 = vunpack.c.l.b16 %v1514
      %v1628 = vunpack.c.h.b16 %v1514
      %v1629 = vunpack.c.l.b16 %v1515
      %v1630 = vunpack.c.l.b16 %v1516
      %v1631 = vunpack.c.h.b16 %v1516
      %v1632 = vunpack.c.l.b16 %v1517
      %v1633 = vunpack.c.h.b16 %v1517
      %v1634 = vunpack.c.l.b16 %v1518
      %v1635 = vunpack.c.h.b16 %v1518
      %v1636 = vunpack.c.l.b16 %v1519
      %v1637 = vunpack.c.l.b16 %v1520
      %v1638 = vunpack.c.h.b16 %v1520
      %v1639 = vunpack.c.l.b16 %v1521
      %v1640 = vunpack.c.h.b16 %v1521
      %v1641 = vunpack.c.l.b16 %v1522
      %v1642 = vunpack.c.h.b16 %v1522
      %v1643 = vunpack.c.l.b16 %v1523
      %v1644 = vunpack.c.l.b16 %v1524
      %v1645 = vunpack.c.h.b16 %v1524
      %v1646 = vunpack.c.l.b16 %v1525
      %v1647 = vunpack.c.h.b16 %v1525
      %v1648 = vunpack.c.l.b16 %v1526
      %v1649 = vunpack.c.h.b16 %v1526
      %v1650 = vunpack.c.l.b16 %v1527
      %v1651 = vunpack.c.l.b16 %v1528
      %v1652 = vunpack.c.h.b16 %v1528
      %v1653 = vunpack.c.l.b16 %v1529
      %v1654 = vunpack.c.h.b16 %v1529
      %v1655 = vunpack.c.l.b16 %v1530
      %v1656 = vunpack.c.h.b16 %v1530
      %v1657 = vunpack.c.l.b16 %v1531
      %v1658 = vpack.c.b16 %v1616, %v1609
      %v1659 = vpack.c.b16 %v1617, %v1610
      %v1660 = vpack.c.b16 %v1618, %v1611
      %v1661 = vpack.c.b16 %v1619, %v1612
      %v1662 = vpack.c.b16 %v1620, %v1613
      %v1663 = vpack.c.b16 %v1621, %v1614
      %v1664 = vpack.c.b16 %v1622, %v1615
      %v1665 = vpack.c.b16 %v1630, %v1623
      %v1666 = vpack.c.b16 %v1631, %v1624
      %v1667 = vpack.c.b16 %v1632, %v1625
      %v1668 = vpack.c.b16 %v1633, %v1626
      %v1669 = vpack.c.b16 %v1634, %v1627
      %v1670 = vpack.c.b16 %v1635, %v1628
      %v1671 = vpack.c.b16 %v1636, %v1629
      %v1672 = vpack.c.b16 %v1644, %v1637
      %v1673 = vpack.c.b16 %v1645, %v1638
      %v1674 = vpack.c.b16 %v1646, %v1639
      %v1675 = vpack.c.b16 %v1647, %v1640
      %v1676 = vpack.c.b16 %v1648, %v1641
      %v1677 = vpack.c.b16 %v1649, %v1642
      %v1678 = vpack.c.b16 %v1650, %v1643
      %v1679 = vpack.c.b16 %v1651, %v1651
      %v1680 = vpack.c.b16 %v1652, %v1652
      %v1681 = vpack.c.b16 %v1653, %v1653
      %v1682 = vpack.c.b16 %v1654, %v1654
      %v1683 = vpack.c.b16 %v1655, %v1655
      %v1684 = vpack.c.b16 %v1656, %v1656
      %v1685 = vpack.c.b16 %v1657, %v1657
      %vm1710 = vcmask 130048
      %v1712 = vsel %vm1710, %v1664, 0
      %v1715 = vsel %vm1710, %v1671, 0
      %v1718 = vsel %vm1710, %v1678, 0
      %v1721 = vsel %vm1710, %v1685, 0
      %1723 = vmatprep.subr.bf16.mxu0 0
      %1724 = vmatpush1.bf16.msra.mxu0 %v1539
      %1725 = vmatprep.subr.bf16.mxu0 0
      %1726 = vmatpush1.bf16.msra.mxu0 %v1538
      %1727 = vmatprep.subr.bf16.mxu0 0
      %1728 = vmatpush1.bf16.msra.mxu0 %v1537
      %1729 = vmatprep.subr.bf16.mxu0 0
      %1730 = vmatpush1.bf16.msra.mxu0 %v1536
      %1731 = vmatprep.subr.bf16.mxu0 0
      %1732 = vmatpush1.bf16.msra.mxu0 %v1535
      %1733 = vmatprep.subr.bf16.mxu0 0
      %1734 = vmatpush1.bf16.msra.mxu0 %v1534
      %1735 = vmatprep.subr.bf16.mxu0 0
      %1736 = vmatpush1.bf16.msra.mxu0 %v1533
      %1737 = vmatprep.subr.bf16.mxu0 0
      %1738 = vmatpush1.bf16.msra.mxu0 %v1532
      %1739 = vmatprep.subr.bf16.mxu0 0
      %1740 = vmatpush2.bf16.msra.mxu0 %v1547
      %1741 = vmatprep.subr.bf16.mxu0 0
      %1742 = vmatpush2.bf16.msra.mxu0 %v1546
      %1743 = vmatprep.subr.bf16.mxu0 0
      %1744 = vmatpush2.bf16.msra.mxu0 %v1545
      %1745 = vmatprep.subr.bf16.mxu0 0
      %1746 = vmatpush2.bf16.msra.mxu0 %v1544
      %1747 = vmatprep.subr.bf16.mxu0 0
      %1748 = vmatpush2.bf16.msra.mxu0 %v1543
      %1749 = vmatprep.subr.bf16.mxu0 0
      %1750 = vmatpush2.bf16.msra.mxu0 %v1542
      %1751 = vmatprep.subr.bf16.mxu0 0
      %1752 = vmatpush2.bf16.msra.mxu0 %v1541
      %1753 = vmatprep.subr.bf16.mxu0 0
      %1754 = vmatpush2.bf16.msra.mxu0 %v1540
      %1755 = vmatprep.mubr.bf16.mxu0 %v1659
      %1756 = vmatmul.mubr.bf16.gmra.mxu0 %v1658
      %v1757 = vpop.f32.mrf.mxu0
      %v1758 = vadd.f32 0.0, %v1757
      %v1759 = vpop.f32.mrf.mxu0
      %v1760 = vpop.f32.mrf.mxu0
      %v1761 = vadd.f32 0.0, %v1760
      %v1762 = vpop.f32.mrf.mxu0
      %1763 = vmatprep.mubr.bf16.mxu0 %v1666
      %1764 = vmatmul.mubr.bf16.gmra.mxu0 %v1665
      %v1765 = vpop.f32.mrf.mxu0
      %v1766 = vadd.f32 0.0, %v1765
      %v1767 = vpop.f32.mrf.mxu0
      %v1768 = vpop.f32.mrf.mxu0
      %v1769 = vadd.f32 0.0, %v1768
      %v1770 = vpop.f32.mrf.mxu0
      %1771 = vmatprep.mubr.bf16.mxu0 %v1673
      %1772 = vmatmul.mubr.bf16.gmra.mxu0 %v1672
      %v1773 = vpop.f32.mrf.mxu0
      %v1774 = vadd.f32 0.0, %v1773
      %v1775 = vpop.f32.mrf.mxu0
      %v1776 = vpop.f32.mrf.mxu0
      %v1777 = vadd.f32 0.0, %v1776
      %v1778 = vpop.f32.mrf.mxu0
      %1779 = vmatprep.mubr.bf16.mxu0 %v1680
      %1780 = vmatmul.mubr.bf16.gmra.mxu0 %v1679
      %v1781 = vpop.f32.mrf.mxu0
      %v1782 = vadd.f32 0.0, %v1781
      %v1783 = vpop.f32.mrf.mxu0
      %v1784 = vpop.f32.mrf.mxu0
      %v1785 = vpop.f32.mrf.mxu0
      %1786 = vdwg.mxu0
      %1787 = vmatprep.subr.bf16.mxu0 0
      %1788 = vmatpush1.bf16.msra.mxu0 %v1555
      %1789 = vmatprep.subr.bf16.mxu0 0
      %1790 = vmatpush1.bf16.msra.mxu0 %v1554
      %1791 = vmatprep.subr.bf16.mxu0 0
      %1792 = vmatpush1.bf16.msra.mxu0 %v1553
      %1793 = vmatprep.subr.bf16.mxu0 0
      %1794 = vmatpush1.bf16.msra.mxu0 %v1552
      %1795 = vmatprep.subr.bf16.mxu0 0
      %1796 = vmatpush1.bf16.msra.mxu0 %v1551
      %1797 = vmatprep.subr.bf16.mxu0 0
      %1798 = vmatpush1.bf16.msra.mxu0 %v1550
      %1799 = vmatprep.subr.bf16.mxu0 0
      %1800 = vmatpush1.bf16.msra.mxu0 %v1549
      %1801 = vmatprep.subr.bf16.mxu0 0
      %1802 = vmatpush1.bf16.msra.mxu0 %v1548
      %1803 = vmatprep.subr.bf16.mxu0 0
      %1804 = vmatpush2.bf16.msra.mxu0 %v1563
      %1805 = vmatprep.subr.bf16.mxu0 0
      %1806 = vmatpush2.bf16.msra.mxu0 %v1562
      %1807 = vmatprep.subr.bf16.mxu0 0
      %1808 = vmatpush2.bf16.msra.mxu0 %v1561
      %1809 = vmatprep.subr.bf16.mxu0 0
      %1810 = vmatpush2.bf16.msra.mxu0 %v1560
      %1811 = vmatprep.subr.bf16.mxu0 0
      %1812 = vmatpush2.bf16.msra.mxu0 %v1559
      %1813 = vmatprep.subr.bf16.mxu0 0
      %1814 = vmatpush2.bf16.msra.mxu0 %v1558
      %1815 = vmatprep.subr.bf16.mxu0 0
      %1816 = vmatpush2.bf16.msra.mxu0 %v1557
      %1817 = vmatprep.subr.bf16.mxu0 0
      %1818 = vmatpush2.bf16.msra.mxu0 %v1556
      %1819 = vmatprep.mubr.bf16.mxu0 %v1661
      %1820 = vmatmul.mubr.bf16.gmra.mxu0 %v1660
      %v1821 = vpop.f32.mrf.mxu0
      %v1822 = vadd.f32 %v1758, %v1821
      %v1823 = vpop.f32.mrf.mxu0
      %v1824 = vpop.f32.mrf.mxu0
      %v1825 = vadd.f32 %v1761, %v1824
      %v1826 = vpop.f32.mrf.mxu0
      %1827 = vmatprep.mubr.bf16.mxu0 %v1668
      %1828 = vmatmul.mubr.bf16.gmra.mxu0 %v1667
      %v1829 = vpop.f32.mrf.mxu0
      %v1830 = vadd.f32 %v1766, %v1829
      %v1831 = vpop.f32.mrf.mxu0
      %v1832 = vpop.f32.mrf.mxu0
      %v1833 = vadd.f32 %v1769, %v1832
      %v1834 = vpop.f32.mrf.mxu0
      %1835 = vmatprep.mubr.bf16.mxu0 %v1675
      %1836 = vmatmul.mubr.bf16.gmra.mxu0 %v1674
      %v1837 = vpop.f32.mrf.mxu0
      %v1838 = vadd.f32 %v1774, %v1837
      %v1839 = vpop.f32.mrf.mxu0
      %v1840 = vpop.f32.mrf.mxu0
      %v1841 = vadd.f32 %v1777, %v1840
      %v1842 = vpop.f32.mrf.mxu0
      %1843 = vmatprep.mubr.bf16.mxu0 %v1682
      %1844 = vmatmul.mubr.bf16.gmra.mxu0 %v1681
      %v1845 = vpop.f32.mrf.mxu0
      %v1846 = vadd.f32 %v1782, %v1845
      %v1847 = vpop.f32.mrf.mxu0
      %v1848 = vpop.f32.mrf.mxu0
      %v1849 = vpop.f32.mrf.mxu0
      %1850 = vdwg.mxu0
      %1851 = vmatprep.subr.bf16.mxu0 0
      %1852 = vmatpush1.bf16.msra.mxu0 %v1571
      %1853 = vmatprep.subr.bf16.mxu0 0
      %1854 = vmatpush1.bf16.msra.mxu0 %v1570
      %1855 = vmatprep.subr.bf16.mxu0 0
      %1856 = vmatpush1.bf16.msra.mxu0 %v1569
      %1857 = vmatprep.subr.bf16.mxu0 0
      %1858 = vmatpush1.bf16.msra.mxu0 %v1568
      %1859 = vmatprep.subr.bf16.mxu0 0
      %1860 = vmatpush1.bf16.msra.mxu0 %v1567
      %1861 = vmatprep.subr.bf16.mxu0 0
      %1862 = vmatpush1.bf16.msra.mxu0 %v1566
      %1863 = vmatprep.subr.bf16.mxu0 0
      %1864 = vmatpush1.bf16.msra.mxu0 %v1565
      %1865 = vmatprep.subr.bf16.mxu0 0
      %1866 = vmatpush1.bf16.msra.mxu0 %v1564
      %1867 = vmatprep.subr.bf16.mxu0 0
      %1868 = vmatpush2.bf16.msra.mxu0 %v1579
      %1869 = vmatprep.subr.bf16.mxu0 0
      %1870 = vmatpush2.bf16.msra.mxu0 %v1578
      %1871 = vmatprep.subr.bf16.mxu0 0
      %1872 = vmatpush2.bf16.msra.mxu0 %v1577
      %1873 = vmatprep.subr.bf16.mxu0 0
      %1874 = vmatpush2.bf16.msra.mxu0 %v1576
      %1875 = vmatprep.subr.bf16.mxu0 0
      %1876 = vmatpush2.bf16.msra.mxu0 %v1575
      %1877 = vmatprep.subr.bf16.mxu0 0
      %1878 = vmatpush2.bf16.msra.mxu0 %v1574
      %1879 = vmatprep.subr.bf16.mxu0 0
      %1880 = vmatpush2.bf16.msra.mxu0 %v1573
      %1881 = vmatprep.subr.bf16.mxu0 0
      %1882 = vmatpush2.bf16.msra.mxu0 %v1572
      %1883 = vmatprep.mubr.bf16.mxu0 %v1663
      %1884 = vmatmul.mubr.bf16.gmra.mxu0 %v1662
      %v1885 = vpop.f32.mrf.mxu0
      %v1886 = vadd.f32 %v1822, %v1885
      %v1887 = vpop.f32.mrf.mxu0
      %v1888 = vpop.f32.mrf.mxu0
      %v1889 = vadd.f32 %v1825, %v1888
      %v1890 = vpop.f32.mrf.mxu0
      %1891 = vmatprep.mubr.bf16.mxu0 %v1670
      %1892 = vmatmul.mubr.bf16.gmra.mxu0 %v1669
      %v1893 = vpop.f32.mrf.mxu0
      %v1894 = vadd.f32 %v1830, %v1893
      %v1895 = vpop.f32.mrf.mxu0
      %v1896 = vpop.f32.mrf.mxu0
      %v1897 = vadd.f32 %v1833, %v1896
      %v1898 = vpop.f32.mrf.mxu0
      %1899 = vmatprep.mubr.bf16.mxu0 %v1677
      %1900 = vmatmul.mubr.bf16.gmra.mxu0 %v1676
      %v1901 = vpop.f32.mrf.mxu0
      %v1902 = vadd.f32 %v1838, %v1901
      %v1903 = vpop.f32.mrf.mxu0
      %v1904 = vpop.f32.mrf.mxu0
      %v1905 = vadd.f32 %v1841, %v1904
      %v1906 = vpop.f32.mrf.mxu0
      %1907 = vmatprep.mubr.bf16.mxu0 %v1684
      %1908 = vmatmul.mubr.bf16.gmra.mxu0 %v1683
      %v1909 = vpop.f32.mrf.mxu0
      %v1910 = vadd.f32 %v1846, %v1909
      %v1911 = vpop.f32.mrf.mxu0
      %v1912 = vpop.f32.mrf.mxu0
      %v1913 = vpop.f32.mrf.mxu0
      %1914 = vdwg.mxu0
      %1915 = vmatprep.subr.bf16.mxu0 0
      %1916 = vmatpush1.bf16.msra.mxu0 0
      %1917 = vmatprep.subr.bf16.mxu0 0
      %1918 = vmatpush1.bf16.msra.mxu0 0
      %1919 = vmatprep.subr.bf16.mxu0 0
      %1920 = vmatpush1.bf16.msra.mxu0 0
      %1921 = vmatprep.subr.bf16.mxu0 0
      %1922 = vmatpush1.bf16.msra.mxu0 0
      %1923 = vmatprep.subr.bf16.mxu0 0
      %1924 = vmatpush1.bf16.msra.mxu0 0
      %1925 = vmatprep.subr.bf16.mxu0 0
      %1926 = vmatpush1.bf16.msra.mxu0 0
      %1927 = vmatprep.subr.bf16.mxu0 0
      %1928 = vmatpush1.bf16.msra.mxu0 0
      %1929 = vmatprep.subr.bf16.mxu0 0
      %1930 = vmatpush1.bf16.msra.mxu0 %v1580
      %1931 = vmatprep.subr.bf16.mxu0 0
      %1932 = vmatpush2.bf16.msra.mxu0 0
      %1933 = vmatprep.subr.bf16.mxu0 0
      %1934 = vmatpush2.bf16.msra.mxu0 0
      %1935 = vmatprep.subr.bf16.mxu0 0
      %1936 = vmatpush2.bf16.msra.mxu0 0
      %1937 = vmatprep.subr.bf16.mxu0 0
      %1938 = vmatpush2.bf16.msra.mxu0 0
      %1939 = vmatprep.subr.bf16.mxu0 0
      %1940 = vmatpush2.bf16.msra.mxu0 0
      %1941 = vmatprep.subr.bf16.mxu0 0
      %1942 = vmatpush2.bf16.msra.mxu0 0
      %1943 = vmatprep.subr.bf16.mxu0 0
      %1944 = vmatpush2.bf16.msra.mxu0 0
      %1945 = vmatprep.subr.bf16.mxu0 0
      %1946 = vmatpush2.bf16.msra.mxu0 0
      %1947 = vmatprep.mubr.bf16.mxu0 0
      %1948 = vmatmul.mubr.bf16.gmra.mxu0 %v1712
      %v1949 = vpop.f32.mrf.mxu0
      %v1950 = vadd.f32 %v1886, %v1949
      %v1951 = vpop.f32.mrf.mxu0
      %v1952 = vpop.f32.mrf.mxu0
      %v1953 = vadd.f32 %v1889, %v1952
      %v1954 = vpop.f32.mrf.mxu0
      %1955 = vmatprep.mubr.bf16.mxu0 0
      %1956 = vmatmul.mubr.bf16.gmra.mxu0 %v1715
      %v1957 = vpop.f32.mrf.mxu0
      %v1958 = vadd.f32 %v1894, %v1957
      %v1959 = vpop.f32.mrf.mxu0
      %v1960 = vpop.f32.mrf.mxu0
      %v1961 = vadd.f32 %v1897, %v1960
      %v1962 = vpop.f32.mrf.mxu0
      %1963 = vmatprep.mubr.bf16.mxu0 0
      %1964 = vmatmul.mubr.bf16.gmra.mxu0 %v1718
      %v1965 = vpop.f32.mrf.mxu0
      %v1966 = vadd.f32 %v1902, %v1965
      %v1967 = vpop.f32.mrf.mxu0
      %v1968 = vpop.f32.mrf.mxu0
      %v1969 = vadd.f32 %v1905, %v1968
      %v1970 = vpop.f32.mrf.mxu0
      %1971 = vmatprep.mubr.bf16.mxu0 0
      %1972 = vmatmul.mubr.bf16.gmra.mxu0 %v1721
      %v1973 = vpop.f32.mrf.mxu0
      %v1974 = vadd.f32 %v1910, %v1973
      %v1975 = vpop.f32.mrf.mxu0
      %v1976 = vpop.f32.mrf.mxu0
      %v1977 = vpop.f32.mrf.mxu0
      %1978 = vdwg.mxu0
      %v1979 = vpack.c.bf16 %v1953, %v1950
      %v1980 = vpack.c.bf16 %v1961, %v1958
      %v1981 = vpack.c.bf16 %v1969, %v1966
      %v1982 = vpack.c.bf16 %v1974, %v1974
      %v1983 = vld [vmem:[%s4] sm:$0xff]
      %v1984 = vld [vmem:[%s4 + $0x8] sm:$0xff]
      %v1985 = vld [vmem:[%s4 + $0x10] sm:$0xff]
      %v1986 = vld [vmem:[%s4 + $0x18] sm:$0xff]
      %v1987 = vld [vmem:[%s4 + $0x20] sm:$0xff]
      %v1988 = vld [vmem:[%s4 + $0x28] sm:$0xff]
      %v1989 = vld [vmem:[%s4 + $0x30] sm:$0xff]
      %v1990 = vld [vmem:[%s4 + $0x38] sm:$0xff]
      %v1991 = vld [vmem:[%s5] sm:$0x3]
      %v1993 = vlaneseq
      %v1994 = vshrl.u32 %v1993, 7
      %v1995 = vsub.s32 0, %v1994
      %v1996 = vrot.slane %v1991, %v1995
      %v1997 = vlaneseq
      %v1998 = vshrl.u32 %v1997, 7
      %v1999 = vsub.s32 1, %v1998
      %v2000 = vrot.slane %v1991, %v1999
      %v2011 = vunpack.c.l.b16 %v1983
      %v2012 = vunpack.c.h.b16 %v1983
      %v2013 = vunpack.c.l.b16 %v1984
      %v2014 = vunpack.c.h.b16 %v1984
      %v2015 = vunpack.c.l.b16 %v1985
      %v2016 = vunpack.c.h.b16 %v1985
      %v2017 = vunpack.c.l.b16 %v1986
      %v2018 = vunpack.c.h.b16 %v1986
      %v2019 = vunpack.c.l.b16 %v1987
      %v2020 = vunpack.c.h.b16 %v1987
      %v2021 = vunpack.c.l.b16 %v1988
      %v2022 = vunpack.c.h.b16 %v1988
      %v2023 = vunpack.c.l.b16 %v1989
      %v2024 = vunpack.c.h.b16 %v1989
      %v2025 = vunpack.c.l.b16 %v1990
      %v2026 = vunpack.c.h.b16 %v1990
      %v2027 = vpack.c.b16 %v2013, %v2011
      %v2028 = vpack.c.b16 %v2014, %v2012
      %v2029 = vpack.c.b16 %v2017, %v2015
      %v2030 = vpack.c.b16 %v2018, %v2016
      %v2031 = vpack.c.b16 %v2021, %v2019
      %v2032 = vpack.c.b16 %v2022, %v2020
      %v2033 = vpack.c.b16 %v2025, %v2023
      %v2034 = vpack.c.b16 %v2026, %v2024
      %vm2043 = vcmask 523264
      %v2045 = vsel %vm2043, %v1979, 0
      %v2048 = vsel %vm2043, %v1980, 0
      %v2051 = vsel %vm2043, %v1981, 0
      %v2054 = vsel %vm2043, %v1982, 0
      %2056 = vmatprep.subr.bf16.mxu0 0
      %2057 = vmatpush1.bf16.msra.mxu0 0
      %2058 = vmatprep.subr.bf16.mxu0 0
      %2059 = vmatpush1.bf16.msra.mxu0 0
      %2060 = vmatprep.subr.bf16.mxu0 0
      %2061 = vmatpush1.bf16.msra.mxu0 0
      %2062 = vmatprep.subr.bf16.mxu0 0
      %2063 = vmatpush1.bf16.msra.mxu0 0
      %2064 = vmatprep.subr.bf16.mxu0 %v2034
      %2065 = vmatpush1.bf16.msra.mxu0 %v2033
      %2066 = vmatprep.subr.bf16.mxu0 %v2032
      %2067 = vmatpush1.bf16.msra.mxu0 %v2031
      %2068 = vmatprep.subr.bf16.mxu0 %v2030
      %2069 = vmatpush1.bf16.msra.mxu0 %v2029
      %2070 = vmatprep.subr.bf16.mxu0 %v2028
      %2071 = vmatpush1.bf16.msra.mxu0 %v2027
      %2072 = vmatprep.subr.bf16.mxu0 0
      %2073 = vmatpush2.bf16.msra.mxu0 0
      %2074 = vmatprep.subr.bf16.mxu0 0
      %2075 = vmatpush2.bf16.msra.mxu0 0
      %2076 = vmatprep.subr.bf16.mxu0 0
      %2077 = vmatpush2.bf16.msra.mxu0 0
      %2078 = vmatprep.subr.bf16.mxu0 0
      %2079 = vmatpush2.bf16.msra.mxu0 0
      %2080 = vmatprep.subr.bf16.mxu0 0
      %2081 = vmatpush2.bf16.msra.mxu0 0
      %2082 = vmatprep.subr.bf16.mxu0 0
      %2083 = vmatpush2.bf16.msra.mxu0 0
      %2084 = vmatprep.subr.bf16.mxu0 0
      %2085 = vmatpush2.bf16.msra.mxu0 0
      %2086 = vmatprep.subr.bf16.mxu0 0
      %2087 = vmatpush2.bf16.msra.mxu0 0
      %2088 = vmatprep.mubr.bf16.mxu0 0
      %2089 = vmatmul.mubr.bf16.gmra.mxu0 %v2045
      %v2090 = vpop.f32.mrf.mxu0
      %v2091 = vadd.f32 %v1996, %v2090
      %v2092 = vpop.f32.mrf.mxu0
      %v2093 = vadd.f32 %v2000, %v2092
      %v2094 = vpop.f32.mrf.mxu0
      %v2095 = vadd.f32 %v1996, %v2094
      %v2096 = vpop.f32.mrf.mxu0
      %v2097 = vadd.f32 %v2000, %v2096
      %2098 = vmatprep.mubr.bf16.mxu0 0
      %2099 = vmatmul.mubr.bf16.gmra.mxu0 %v2048
      %v2100 = vpop.f32.mrf.mxu0
      %v2101 = vadd.f32 %v1996, %v2100
      %v2102 = vpop.f32.mrf.mxu0
      %v2103 = vadd.f32 %v2000, %v2102
      %v2104 = vpop.f32.mrf.mxu0
      %v2105 = vadd.f32 %v1996, %v2104
      %v2106 = vpop.f32.mrf.mxu0
      %v2107 = vadd.f32 %v2000, %v2106
      %2108 = vmatprep.mubr.bf16.mxu0 0
      %2109 = vmatmul.mubr.bf16.gmra.mxu0 %v2051
      %v2110 = vpop.f32.mrf.mxu0
      %v2111 = vadd.f32 %v1996, %v2110
      %v2112 = vpop.f32.mrf.mxu0
      %v2113 = vadd.f32 %v2000, %v2112
      %v2114 = vpop.f32.mrf.mxu0
      %v2115 = vadd.f32 %v1996, %v2114
      %v2116 = vpop.f32.mrf.mxu0
      %v2117 = vadd.f32 %v2000, %v2116
      %2118 = vmatprep.mubr.bf16.mxu0 0
      %2119 = vmatmul.mubr.bf16.gmra.mxu0 %v2054
      %v2120 = vpop.f32.mrf.mxu0
      %v2121 = vadd.f32 %v1996, %v2120
      %v2122 = vpop.f32.mrf.mxu0
      %v2123 = vadd.f32 %v2000, %v2122
      %v2124 = vpop.f32.mrf.mxu0
      %v2125 = vpop.f32.mrf.mxu0
      %2126 = vdwg.mxu0
      %v2127 = vmax.f32 %v2091, 0.0
      %v2128 = vmax.f32 %v2093, 0.0
      %v2129 = vmax.f32 %v2095, 0.0
      %v2130 = vmax.f32 %v2097, 0.0
      %v2131 = vmax.f32 %v2101, 0.0
      %v2132 = vmax.f32 %v2103, 0.0
      %v2133 = vmax.f32 %v2105, 0.0
      %v2134 = vmax.f32 %v2107, 0.0
      %v2135 = vmax.f32 %v2111, 0.0
      %v2136 = vmax.f32 %v2113, 0.0
      %v2137 = vmax.f32 %v2115, 0.0
      %v2138 = vmax.f32 %v2117, 0.0
      %v2139 = vmax.f32 %v2121, 0.0
      %v2140 = vmax.f32 %v2123, 0.0
      %v2141 = vpack.c.bf16 %v2129, %v2127
      %v2142 = vpack.c.bf16 %v2130, %v2128
      %v2143 = vpack.c.bf16 %v2133, %v2131
      %v2144 = vpack.c.bf16 %v2134, %v2132
      %v2145 = vpack.c.bf16 %v2137, %v2135
      %v2146 = vpack.c.bf16 %v2138, %v2136
      %v2147 = vpack.c.bf16 %v2139, %v2139
      %v2148 = vpack.c.bf16 %v2140, %v2140
      %v2157 = vunpack.c.l.b16 %v2141
      %v2158 = vunpack.c.l.b16 %v2142
      %v2159 = vunpack.c.h.b16 %v2141
      %v2160 = vunpack.c.h.b16 %v2142
      %v2161 = vunpack.c.l.b16 %v2143
      %v2162 = vunpack.c.l.b16 %v2144
      %v2163 = vunpack.c.h.b16 %v2143
      %v2164 = vunpack.c.h.b16 %v2144
      %v2165 = vunpack.c.l.b16 %v2145
      %v2166 = vunpack.c.l.b16 %v2146
      %v2167 = vunpack.c.h.b16 %v2145
      %v2168 = vunpack.c.h.b16 %v2146
      %v2169 = vunpack.c.l.b16 %v2147
      %v2170 = vunpack.c.l.b16 %v2148
      %v2171 = vpack.c.b16 %v2158, %v2157
      %v2172 = vpack.c.b16 %v2160, %v2159
      %v2173 = vpack.c.b16 %v2162, %v2161
      %v2174 = vpack.c.b16 %v2164, %v2163
      %v2175 = vpack.c.b16 %v2166, %v2165
      %v2176 = vpack.c.b16 %v2168, %v2167
      %v2177 = vpack.c.b16 %v2170, %v2169
      %2185 = vst [vmem:[%s256] sm:$0xff] %v2171
      %2186 = vst [vmem:[%s256 + $0x8] sm:$0xff] %v2172
      %2187 = vst [vmem:[%s256 + $0x10] sm:$0xff] %v2173
      %2188 = vst [vmem:[%s256 + $0x18] sm:$0xff] %v2174
      %2189 = vst [vmem:[%s256 + $0x20] sm:$0xff] %v2175
      %2190 = vst [vmem:[%s256 + $0x28] sm:$0xff] %v2176
      %vm2191 = vcmask 1040384
      %vm2192 = vsmask.f32 256
      %vm2193 = vmand %vm2191, %vm2192
      %vm2194 = vcmask 1044484
      %vm2195 = vsmask.f32 4352
      %vm2196 = vmand %vm2194, %vm2195
      %vm2197 = vmor %vm2196, %vm2193
      %v2198 = vld [vmem:[%s256 + $0x30] sm:$0x11]
      %v2199 = vsel %vm2197, %v2177, %v2198
      %2200 = vst [vmem:[%s256 + $0x30] sm:$0x11] %v2199
      %p2201 = scmp.lt.s32.totalorder %s17, 1
      %s2202 = scalar_select %p2201, %s17, 1
      %s2203 = smul.addr %s2202, 14
      %s2204 = smul.addr %s2203, 4
      %s2205 = scalar_lea.vmem %s6, %s2204
      // Predicated region
      $region45: #{img_forward.2} parent=43 // pred_check
        %p2206 = pneg %p166
      $region46: #{img_forward.2} parent=43 // pred_check_branch
        %2208 = sbr.rel (%p2206) target = $region48
      $region47: #{img_forward.2} parent=43 // pred_region
        _
      $region48: #{img_forward.2} parent=43 // pred_fallthru
        _
    $region44: #{img_forward.2} parent=5 // pred_fallthru
      _
    %p2209 = scmp.le.s32.totalorder 2, %s12
    // Predicated region
    $region49: #{img_forward.2} parent=5 // pred_check
      %p2210 = pneg %p2209
    $region50: #{img_forward.2} parent=5 // pred_check_branch
      %2212 = sbr.rel (%p2210) target = $region52
    $region51: #{img_forward.2} parent=5 // pred_region
      %s2213 = ssub.s32 %s12, 2
      // Predicated region
      $region53: #{img_forward.2} parent=51 // pred_check
        %p2214 = pneg %p172
      $region54: #{img_forward.2} parent=51 // pred_check_branch
        %2216 = sbr.rel (%p2214) target = $region56
      $region55: #{img_forward.2} parent=51 // pred_region
        %p2217 = scmp.lt.s32.totalorder %s18, 1
        %s2218 = scalar_select %p2217, %s18, 1
        %s2219 = smul.addr %s2218, 14
        %s2220 = smul.addr %s2219, 4
        %s2221 = scalar_lea.vmem %s6, %s2220
      $region56: #{img_forward.2} parent=51 // pred_fallthru
        _
    $region52: #{img_forward.2} parent=5 // pred_fallthru
      _
  $region6: #{img_forward.2} parent=0 // loop_footer
    %s16 = sadd.s32 1, %s12
  $region7: #{img_forward.2} parent=0 // loop_footer_branch
    %11 = sbr.rel target = $region3
  $region8: #{img_forward.2} parent=0 // loop_exit
    _

// kernel: img_forward.3
$region0: #{img_forward.3}
  #allocation0 [shape = 'u32[]', space=smem, size = 0x4, offset = 0x4, fixed_abs, tag = 'smem constant byte address 0x4 - core index']
  #allocation1 [shape = 'u32[144,128]{1,0:T(1,128)}', space=vmem, size = 0x12000, scoped, tag = 'internal scratch']
  #allocation2 [shape = 'f32[2,128]{1,0:T(2,128)}', space=vmem, size = 0x400, scoped, tag = 'scratch operand']
  %s0 = inlined_call_operand.vmem [shape: bf16[2,12544], index: 0, kind: input, shape index: {}]
  %s1 = inlined_call_operand.vmem [shape: bf16[12544,128], index: 1, kind: input, shape index: {}]
  %s2 = inlined_call_operand.vmem [shape: f32[1,128], index: 2, kind: input, shape index: {}]
  %s3 = inlined_call_operand.vmem [shape: bf16[128,128], index: 3, kind: input, shape index: {}]
  %s4 = inlined_call_operand.vmem [shape: f32[1,128], index: 4, kind: input, shape index: {}]
  %s5 = inlined_call_operand.hbm [shape: f32[2,128], index: 5, kind: output, shape index: {}]
  %s6 = sld [smem:[#allocation0]]
  $region61: #{img_forward.3} parent=0
    _
  %s8 = ssub.s32 1, %s6
  %s9 = scalar_select 0, %s8, %s6
  $region1: #{img_forward.3} parent=0
    #allocation3 [shape = 'u8[1024]{0}', space=vmem, size = 0x400, scoped, tag = 'output window, operand 0, single buffered']
    #allocation4 [shape = 's32[2]{0}', space=sflag, size = 0x8, scoped, tag = 'scoped memory for img_forward.3']
    %10 = vsyncpa [#allocation4], 0
    loop: start=0, step=1, limit=9
    $region2: #{img_forward.3} parent=1 // loop_pre_header
      _
    $region3: #{img_forward.3} parent=1 // loop_header
      %s12 = sphi 0, %s16
      %p13 = scmp.ge.s32.totalorder %s12, 9
      %s22 = sphi 0, %s24
      %s25 = sphi 0, %s22
      %s26 = sphi 0, %s25
      %s42 = sphi 0, %s26
      %s48 = sphi 0, %s50
      %s51 = sphi 0, %s48
      %s52 = sphi 0, %s51
      %s68 = sphi 0, %s52
      %s72 = sphi 0, %s72
      %s74 = sphi 0, %s72
      %s75 = sphi 0, %s74
      %s89 = sphi 0, %s75
      %s93 = sphi 0, %s93
      %s95 = sphi 0, %s93
      %s96 = sphi 0, %s95
      %s110 = sphi 0, %s96
      %s114 = sphi 0, %s114
      %s116 = sphi 0, %s114
      %s117 = sphi 0, %s116
      %s131 = sphi 0, %s117
      %s135 = sphi 0, %s135
      %s137 = sphi 0, %s135
      %s138 = sphi 0, %s137
      %s152 = sphi 0, %s138
    $region4: #{img_forward.3} parent=1 // loop_header_branch
      %15 = sbr.rel (%p13) target = $region8
    $region5: #{img_forward.3} parent=1 // loop_body
      %s17 = ssub.s32 %s12, 1
      %s18 = ssub.s32 %s12, 2
      %s19 = sadd.s32 %s12, 1
      %s20 = ssub.s32 %s12, %s19
      %p21 = scmp.eq.s32.totalorder %s20, 0
      %s23 = sadd.s32 %s22, 1
      %s24 = scalar_select %p21, %s22, %s23
      %p27 = pneg %p21
      %p28 = scmp.eq.s32.totalorder %s12, 6
      %p29 = por %p27, %p28
      %p30 = scmp.ne.s32.totalorder %s22, %s25
      %p31 = scmp.eq.s32.totalorder %s12, 0
      %p32 = por %p30, %p31
      %p33 = scmp.ne.s32.totalorder %s22, %s25
      %p34 = scmp.eq.s32.totalorder %s17, 6
      %p35 = por %p33, %p34
      %p36 = scmp.ne.s32.totalorder %s25, %s26
      %p37 = scmp.eq.s32.totalorder %s17, 0
      %p38 = por %p36, %p37
      %p39 = scmp.ne.s32.totalorder %s25, %s26
      %p40 = scmp.eq.s32.totalorder %s18, 6
      %p41 = por %p39, %p40
      %p43 = scmp.ne.s32.totalorder %s26, %s42
      %p44 = scmp.eq.s32.totalorder %s18, 0
      %p45 = por %p43, %p44
      %s46 = ssub.s32 %s12, %s19
      %p47 = scmp.eq.s32.totalorder %s46, 0
      %s49 = sadd.s32 %s48, 1
      %s50 = scalar_select %p47, %s48, %s49
      %p53 = pneg %p47
      %p54 = scmp.eq.s32.totalorder %s12, 6
      %p55 = por %p53, %p54
      %p56 = scmp.ne.s32.totalorder %s48, %s51
      %p57 = scmp.eq.s32.totalorder %s12, 0
      %p58 = por %p56, %p57
      %p59 = scmp.ne.s32.totalorder %s48, %s51
      %p60 = scmp.eq.s32.totalorder %s17, 6
      %p61 = por %p59, %p60
      %p62 = scmp.ne.s32.totalorder %s51, %s52
      %p63 = scmp.eq.s32.totalorder %s17, 0
      %p64 = por %p62, %p63
      %p65 = scmp.ne.s32.totalorder %s51, %s52
      %p66 = scmp.eq.s32.totalorder %s18, 6
      %p67 = por %p65, %p66
      %p69 = scmp.ne.s32.totalorder %s52, %s68
      %p70 = scmp.eq.s32.totalorder %s18, 0
      %p71 = por %p69, %p70
      %s73 = sadd.s32 %s72, 1
      %p76 = scmp.eq.s32.totalorder %s12, 6
      %p77 = scmp.ne.s32.totalorder %s72, %s74
      %p78 = scmp.eq.s32.totalorder %s12, 0
      %p79 = por %p77, %p78
      %p80 = scmp.ne.s32.totalorder %s72, %s74
      %p81 = scmp.eq.s32.totalorder %s17, 6
      %p82 = por %p80, %p81
      %p83 = scmp.ne.s32.totalorder %s74, %s75
      %p84 = scmp.eq.s32.totalorder %s17, 0
      %p85 = por %p83, %p84
      %p86 = scmp.ne.s32.totalorder %s74, %s75
      %p87 = scmp.eq.s32.totalorder %s18, 6
      %p88 = por %p86, %p87
      %p90 = scmp.ne.s32.totalorder %s75, %s89
      %p91 = scmp.eq.s32.totalorder %s18, 0
      %p92 = por %p90, %p91
      %s94 = sadd.s32 %s93, 1
      %p97 = scmp.eq.s32.totalorder %s12, 6
      %p98 = scmp.ne.s32.totalorder %s93, %s95
      %p99 = scmp.eq.s32.totalorder %s12, 0
      %p100 = por %p98, %p99
      %p101 = scmp.ne.s32.totalorder %s93, %s95
      %p102 = scmp.eq.s32.totalorder %s17, 6
      %p103 = por %p101, %p102
      %p104 = scmp.ne.s32.totalorder %s95, %s96
      %p105 = scmp.eq.s32.totalorder %s17, 0
      %p106 = por %p104, %p105
      %p107 = scmp.ne.s32.totalorder %s95, %s96
      %p108 = scmp.eq.s32.totalorder %s18, 6
      %p109 = por %p107, %p108
      %p111 = scmp.ne.s32.totalorder %s96, %s110
      %p112 = scmp.eq.s32.totalorder %s18, 0
      %p113 = por %p111, %p112
      %s115 = sadd.s32 %s114, 1
      %p118 = scmp.eq.s32.totalorder %s12, 6
      %p119 = scmp.ne.s32.totalorder %s114, %s116
      %p120 = scmp.eq.s32.totalorder %s12, 0
      %p121 = por %p119, %p120
      %p122 = scmp.ne.s32.totalorder %s114, %s116
      %p123 = scmp.eq.s32.totalorder %s17, 6
      %p124 = por %p122, %p123
      %p125 = scmp.ne.s32.totalorder %s116, %s117
      %p126 = scmp.eq.s32.totalorder %s17, 0
      %p127 = por %p125, %p126
      %p128 = scmp.ne.s32.totalorder %s116, %s117
      %p129 = scmp.eq.s32.totalorder %s18, 6
      %p130 = por %p128, %p129
      %p132 = scmp.ne.s32.totalorder %s117, %s131
      %p133 = scmp.eq.s32.totalorder %s18, 0
      %p134 = por %p132, %p133
      %s136 = sadd.s32 %s135, 1
      %p139 = scmp.eq.s32.totalorder %s12, 6
      %p140 = scmp.ne.s32.totalorder %s135, %s137
      %p141 = scmp.eq.s32.totalorder %s12, 0
      %p142 = por %p140, %p141
      %p143 = scmp.ne.s32.totalorder %s135, %s137
      %p144 = scmp.eq.s32.totalorder %s17, 6
      %p145 = por %p143, %p144
      %p146 = scmp.ne.s32.totalorder %s137, %s138
      %p147 = scmp.eq.s32.totalorder %s17, 0
      %p148 = por %p146, %p147
      %p149 = scmp.ne.s32.totalorder %s137, %s138
      %p150 = scmp.eq.s32.totalorder %s18, 6
      %p151 = por %p149, %p150
      %p153 = scmp.ne.s32.totalorder %s138, %s152
      %p154 = scmp.eq.s32.totalorder %s18, 0
      %p155 = por %p153, %p154
      %p156 = scmp.le.s32.totalorder 1, %s12
      %p157 = scmp.lt.s32.totalorder %s12, 8
      %p158 = pnand %p156, %p157
      %p159 = pneg %p158
      // Predicated region
      $region9: #{img_forward.3} parent=5 // pred_check
        _
      $region10: #{img_forward.3} parent=5 // pred_check_branch
        %161 = sbr.rel (%p158) target = $region12
      $region11: #{img_forward.3} parent=5 // pred_region
        %s162 = ssub.s32 %s12, 1
        // Predicated region
        $region13: #{img_forward.3} parent=11 // pred_check
          %p163 = pneg %p85
        $region14: #{img_forward.3} parent=11 // pred_check_branch
          %165 = sbr.rel (%p163) target = $region16
        $region15: #{img_forward.3} parent=11 // pred_region
          _
        $region16: #{img_forward.3} parent=11 // pred_fallthru
          _
        // Predicated region
        $region17: #{img_forward.3} parent=11 // pred_check
          %p166 = pneg %p106
        $region18: #{img_forward.3} parent=11 // pred_check_branch
          %168 = sbr.rel (%p166) target = $region20
        $region19: #{img_forward.3} parent=11 // pred_region
          _
        $region20: #{img_forward.3} parent=11 // pred_fallthru
          _
        // Predicated region
        $region21: #{img_forward.3} parent=11 // pred_check
          %p169 = pneg %p127
        $region22: #{img_forward.3} parent=11 // pred_check_branch
          %171 = sbr.rel (%p169) target = $region24
        $region23: #{img_forward.3} parent=11 // pred_region
          _
        $region24: #{img_forward.3} parent=11 // pred_fallthru
          _
      $region12: #{img_forward.3} parent=5 // pred_fallthru
        _
      %p172 = scmp.lt.s32.totalorder %s12, 7
      // Predicated region
      $region25: #{img_forward.3} parent=5 // pred_check
        %p173 = pneg %p172
      $region26: #{img_forward.3} parent=5 // pred_check_branch
        %175 = sbr.rel (%p173) target = $region28
      $region27: #{img_forward.3} parent=5 // pred_region
        // Predicated region
        $region29: #{img_forward.3} parent=27 // pred_check
          %p176 = pneg %p32
        $region30: #{img_forward.3} parent=27 // pred_check_branch
          %178 = sbr.rel (%p176) target = $region32
        $region31: #{img_forward.3} parent=27 // pred_region
          %s179 = smul.u32 14, %s12
          %p180 = scmp.lt.s32.totalorder %s179, 97
          %s181 = scalar_select %p180, %s179, 97
          %s182 = scalar_lea.vmem %s0, %s181
          %s183 = smul.u32 14, %s12
        $region32: #{img_forward.3} parent=27 // pred_fallthru
          _
        // Predicated region
        $region33: #{img_forward.3} parent=27 // pred_check
          %p184 = pneg %p58
        $region34: #{img_forward.3} parent=27 // pred_check_branch
          %186 = sbr.rel (%p184) target = $region36
        $region35: #{img_forward.3} parent=27 // pred_region
          %s187 = smul.u32 224, %s12
          %p188 = scmp.lt.s32.totalorder %s187, 1567
          %s189 = scalar_select %p188, %s187, 1567
          %s190 = smul.addr %s189, 4
          %s191 = scalar_lea.vmem %s1, %s190
          %s192 = smul.u32 224, %s12
        $region36: #{img_forward.3} parent=27 // pred_fallthru
          _
      $region28: #{img_forward.3} parent=5 // pred_fallthru
        _
      %p193 = scmp.le.s32.totalorder 1, %s12
      %p194 = scmp.lt.s32.totalorder %s12, 8
      %p195 = pnand %p193, %p194
      %p196 = pneg %p195
      // Predicated region
      $region37: #{img_forward.3} parent=5 // pred_check
        _
      $region38: #{img_forward.3} parent=5 // pred_check_branch
        %198 = sbr.rel (%p195) target = $region40
      $region39: #{img_forward.3} parent=5 // pred_region
        %s199 = ssub.s32 %s12, 1
        %s200 = smul.u32 14, %s17
        %p201 = scmp.lt.s32.totalorder %s200, 97
        %s202 = scalar_select %p201, %s200, 97
        %s203 = scalar_lea.vmem %s0, %s202
        %p204 = pneg %p38
        %p205 = pneg %p35
        %s206 = smul.u32 224, %s17
        %p207 = scmp.lt.s32.totalorder %s206, 1567
        %s208 = scalar_select %p207, %s206, 1567
        %s209 = smul.addr %s208, 4
        %s210 = scalar_lea.vmem %s1, %s209
        %p211 = pneg %p64
        %p212 = pneg %p61
        %p213 = pneg %p85
        %p214 = pneg %p82
        %p215 = pneg %p106
        %p216 = pneg %p103
        %p217 = pneg %p127
        %p218 = pneg %p124
        %p219 = pneg %p148
        %p220 = pneg %p145
        %s221 = smul.u32 14, %s17
        %p222 = scmp.lt.s32.totalorder %s221, 97
        %s223 = scalar_select %p222, %s221, 97
        %s224 = scalar_lea.vmem %s0, %s223
        %s225 = smul.u32 14, %s17
        %s226 = smul.u32 224, %s17
        %p227 = scmp.lt.s32.totalorder %s226, 1567
        %s228 = scalar_select %p227, %s226, 1567
        %s229 = smul.addr %s228, 4
        %s230 = scalar_lea.vmem %s1, %s229
        %s231 = smul.u32 224, %s17
        %p233 = scmp.eq.s32.totalorder %s17, 0
        // Predicated region
        $region41: #{img_forward.3} parent=39 // pred_check
          %p234 = pneg %p233
        $region42: #{img_forward.3} parent=39 // pred_check_branch
          %236 = sbr.rel (%p234) target = $region44
        $region43: #{img_forward.3} parent=39 // pred_region
          %237 = vst [vmem:[#allocation2] sm:$0x3] 0.0
        $region44: #{img_forward.3} parent=39 // pred_fallthru
          _
        %v238 = vld [vmem:[#allocation2] sm:$0x3]
        %v239 = vld [vmem:[%s224] sm:$0xff]
        %v240 = vld [vmem:[%s224 + $0x8] sm:$0x3f]
        %v241 = vld [vmem:[%s230] sm:$0xf]
        %v242 = vld [vmem:[%s230 + $0x4] sm:$0xf]
        %v243 = vld [vmem:[%s230 + $0x8] sm:$0xf]
        %v244 = vld [vmem:[%s230 + $0xc] sm:$0xf]
        %v245 = vld [vmem:[%s230 + $0x10] sm:$0xf]
        %v246 = vld [vmem:[%s230 + $0x14] sm:$0xf]
        %v247 = vld [vmem:[%s230 + $0x18] sm:$0xf]
        %v248 = vld [vmem:[%s230 + $0x1c] sm:$0xf]
        %v249 = vld [vmem:[%s230 + $0x20] sm:$0xf]
        %v250 = vld [vmem:[%s230 + $0x24] sm:$0xf]
        %v251 = vld [vmem:[%s230 + $0x28] sm:$0xf]
        %v252 = vld [vmem:[%s230 + $0x2c] sm:$0xf]
        %v253 = vld [vmem:[%s230 + $0x30] sm:$0xf]
        %v254 = vld [vmem:[%s230 + $0x34] sm:$0xf]
        %v255 = vld [vmem:[%s230 + $0x38] sm:$0xf]
        %v256 = vld [vmem:[%s230 + $0x3c] sm:$0xf]
        %v257 = vld [vmem:[%s230 + $0x40] sm:$0xf]
        %v258 = vld [vmem:[%s230 + $0x44] sm:$0xf]
        %v259 = vld [vmem:[%s230 + $0x48] sm:$0xf]
        %v260 = vld [vmem:[%s230 + $0x4c] sm:$0xf]
        %v261 = vld [vmem:[%s230 + $0x50] sm:$0xf]
        %v262 = vld [vmem:[%s230 + $0x54] sm:$0xf]
        %v263 = vld [vmem:[%s230 + $0x58] sm:$0xf]
        %v264 = vld [vmem:[%s230 + $0x5c] sm:$0xf]
        %v265 = vld [vmem:[%s230 + $0x60] sm:$0xf]
        %v266 = vld [vmem:[%s230 + $0x64] sm:$0xf]
        %v267 = vld [vmem:[%s230 + $0x68] sm:$0xf]
        %v268 = vld [vmem:[%s230 + $0x6c] sm:$0xf]
        %v269 = vld [vmem:[%s230 + $0x70] sm:$0xf]
        %v270 = vld [vmem:[%s230 + $0x74] sm:$0xf]
        %v271 = vld [vmem:[%s230 + $0x78] sm:$0xf]
        %v272 = vld [vmem:[%s230 + $0x7c] sm:$0xf]
        %v273 = vld [vmem:[%s230 + $0x80] sm:$0xf]
        %v274 = vld [vmem:[%s230 + $0x84] sm:$0xf]
        %v275 = vld [vmem:[%s230 + $0x88] sm:$0xf]
        %v276 = vld [vmem:[%s230 + $0x8c] sm:$0xf]
        %v277 = vld [vmem:[%s230 + $0x90] sm:$0xf]
        %v278 = vld [vmem:[%s230 + $0x94] sm:$0xf]
        %v279 = vld [vmem:[%s230 + $0x98] sm:$0xf]
        %v280 = vld [vmem:[%s230 + $0x9c] sm:$0xf]
        %v281 = vld [vmem:[%s230 + $0xa0] sm:$0xf]
        %v282 = vld [vmem:[%s230 + $0xa4] sm:$0xf]
        %v283 = vld [vmem:[%s230 + $0xa8] sm:$0xf]
        %v284 = vld [vmem:[%s230 + $0xac] sm:$0xf]
        %v285 = vld [vmem:[%s230 + $0xb0] sm:$0xf]
        %v286 = vld [vmem:[%s230 + $0xb4] sm:$0xf]
        %v287 = vld [vmem:[%s230 + $0xb8] sm:$0xf]
        %v288 = vld [vmem:[%s230 + $0xbc] sm:$0xf]
        %v289 = vld [vmem:[%s230 + $0xc0] sm:$0xf]
        %v290 = vld [vmem:[%s230 + $0xc4] sm:$0xf]
        %v291 = vld [vmem:[%s230 + $0xc8] sm:$0xf]
        %v292 = vld [vmem:[%s230 + $0xcc] sm:$0xf]
        %v293 = vld [vmem:[%s230 + $0xd0] sm:$0xf]
        %v294 = vld [vmem:[%s230 + $0xd4] sm:$0xf]
        %v295 = vld [vmem:[%s230 + $0xd8] sm:$0xf]
        %v296 = vld [vmem:[%s230 + $0xdc] sm:$0xf]
        %v297 = vld [vmem:[%s230 + $0xe0] sm:$0xf]
        %v298 = vld [vmem:[%s230 + $0xe4] sm:$0xf]
        %v299 = vld [vmem:[%s230 + $0xe8] sm:$0xf]
        %v300 = vld [vmem:[%s230 + $0xec] sm:$0xf]
        %v301 = vld [vmem:[%s230 + $0xf0] sm:$0xf]
        %v302 = vld [vmem:[%s230 + $0xf4] sm:$0xf]
        %v303 = vld [vmem:[%s230 + $0xf8] sm:$0xf]
        %v304 = vld [vmem:[%s230 + $0xfc] sm:$0xf]
        %v305 = vld [vmem:[%s230 + $0x100] sm:$0xf]
        %v306 = vld [vmem:[%s230 + $0x104] sm:$0xf]
        %v307 = vld [vmem:[%s230 + $0x108] sm:$0xf]
        %v308 = vld [vmem:[%s230 + $0x10c] sm:$0xf]
        %v309 = vld [vmem:[%s230 + $0x110] sm:$0xf]
        %v310 = vld [vmem:[%s230 + $0x114] sm:$0xf]
        %v311 = vld [vmem:[%s230 + $0x118] sm:$0xf]
        %v312 = vld [vmem:[%s230 + $0x11c] sm:$0xf]
        %v313 = vld [vmem:[%s230 + $0x120] sm:$0xf]
        %v314 = vld [vmem:[%s230 + $0x124] sm:$0xf]
        %v315 = vld [vmem:[%s230 + $0x128] sm:$0xf]
        %v316 = vld [vmem:[%s230 + $0x12c] sm:$0xf]
        %v317 = vld [vmem:[%s230 + $0x130] sm:$0xf]
        %v318 = vld [vmem:[%s230 + $0x134] sm:$0xf]
        %v319 = vld [vmem:[%s230 + $0x138] sm:$0xf]
        %v320 = vld [vmem:[%s230 + $0x13c] sm:$0xf]
        %v321 = vld [vmem:[%s230 + $0x140] sm:$0xf]
        %v322 = vld [vmem:[%s230 + $0x144] sm:$0xf]
        %v323 = vld [vmem:[%s230 + $0x148] sm:$0xf]
        %v324 = vld [vmem:[%s230 + $0x14c] sm:$0xf]
        %v325 = vld [vmem:[%s230 + $0x150] sm:$0xf]
        %v326 = vld [vmem:[%s230 + $0x154] sm:$0xf]
        %v327 = vld [vmem:[%s230 + $0x158] sm:$0xf]
        %v328 = vld [vmem:[%s230 + $0x15c] sm:$0xf]
        %v329 = vld [vmem:[%s230 + $0x160] sm:$0xf]
        %v330 = vld [vmem:[%s230 + $0x164] sm:$0xf]
        %v331 = vld [vmem:[%s230 + $0x168] sm:$0xf]
        %v332 = vld [vmem:[%s230 + $0x16c] sm:$0xf]
        %v333 = vld [vmem:[%s230 + $0x170] sm:$0xf]
        %v334 = vld [vmem:[%s230 + $0x174] sm:$0xf]
        %v335 = vld [vmem:[%s230 + $0x178] sm:$0xf]
        %v336 = vld [vmem:[%s230 + $0x17c] sm:$0xf]
        %v337 = vld [vmem:[%s230 + $0x180] sm:$0xf]
        %v338 = vld [vmem:[%s230 + $0x184] sm:$0xf]
        %v339 = vld [vmem:[%s230 + $0x188] sm:$0xf]
        %v340 = vld [vmem:[%s230 + $0x18c] sm:$0xf]
        %v341 = vld [vmem:[%s230 + $0x190] sm:$0xf]
        %v342 = vld [vmem:[%s230 + $0x194] sm:$0xf]
        %v343 = vld [vmem:[%s230 + $0x198] sm:$0xf]
        %v344 = vld [vmem:[%s230 + $0x19c] sm:$0xf]
        %v345 = vld [vmem:[%s230 + $0x1a0] sm:$0xf]
        %v346 = vld [vmem:[%s230 + $0x1a4] sm:$0xf]
        %v347 = vld [vmem:[%s230 + $0x1a8] sm:$0xf]
        %v348 = vld [vmem:[%s230 + $0x1ac] sm:$0xf]
        %v349 = vld [vmem:[%s230 + $0x1b0] sm:$0xf]
        %v350 = vld [vmem:[%s230 + $0x1b4] sm:$0xf]
        %v351 = vld [vmem:[%s230 + $0x1b8] sm:$0xf]
        %v352 = vld [vmem:[%s230 + $0x1bc] sm:$0xf]
        %v353 = vld [vmem:[%s230 + $0x1c0] sm:$0xf]
        %v354 = vld [vmem:[%s230 + $0x1c4] sm:$0xf]
        %v355 = vld [vmem:[%s230 + $0x1c8] sm:$0xf]
        %v356 = vld [vmem:[%s230 + $0x1cc] sm:$0xf]
        %v357 = vld [vmem:[%s230 + $0x1d0] sm:$0xf]
        %v358 = vld [vmem:[%s230 + $0x1d4] sm:$0xf]
        %v359 = vld [vmem:[%s230 + $0x1d8] sm:$0xf]
        %v360 = vld [vmem:[%s230 + $0x1dc] sm:$0xf]
        %v361 = vld [vmem:[%s230 + $0x1e0] sm:$0xf]
        %v362 = vld [vmem:[%s230 + $0x1e4] sm:$0xf]
        %v363 = vld [vmem:[%s230 + $0x1e8] sm:$0xf]
        %v364 = vld [vmem:[%s230 + $0x1ec] sm:$0xf]
        %v365 = vld [vmem:[%s230 + $0x1f0] sm:$0xf]
        %v366 = vld [vmem:[%s230 + $0x1f4] sm:$0xf]
        %v367 = vld [vmem:[%s230 + $0x1f8] sm:$0xf]
        %v368 = vld [vmem:[%s230 + $0x1fc] sm:$0xf]
        %v369 = vld [vmem:[%s230 + $0x200] sm:$0xf]
        %v370 = vld [vmem:[%s230 + $0x204] sm:$0xf]
        %v371 = vld [vmem:[%s230 + $0x208] sm:$0xf]
        %v372 = vld [vmem:[%s230 + $0x20c] sm:$0xf]
        %v373 = vld [vmem:[%s230 + $0x210] sm:$0xf]
        %v374 = vld [vmem:[%s230 + $0x214] sm:$0xf]
        %v375 = vld [vmem:[%s230 + $0x218] sm:$0xf]
        %v376 = vld [vmem:[%s230 + $0x21c] sm:$0xf]
        %v377 = vld [vmem:[%s230 + $0x220] sm:$0xf]
        %v378 = vld [vmem:[%s230 + $0x224] sm:$0xf]
        %v379 = vld [vmem:[%s230 + $0x228] sm:$0xf]
        %v380 = vld [vmem:[%s230 + $0x22c] sm:$0xf]
        %v381 = vld [vmem:[%s230 + $0x230] sm:$0xf]
        %v382 = vld [vmem:[%s230 + $0x234] sm:$0xf]
        %v383 = vld [vmem:[%s230 + $0x238] sm:$0xf]
        %v384 = vld [vmem:[%s230 + $0x23c] sm:$0xf]
        %v385 = vld [vmem:[%s230 + $0x240] sm:$0xf]
        %v386 = vld [vmem:[%s230 + $0x244] sm:$0xf]
        %v387 = vld [vmem:[%s230 + $0x248] sm:$0xf]
        %v388 = vld [vmem:[%s230 + $0x24c] sm:$0xf]
        %v389 = vld [vmem:[%s230 + $0x250] sm:$0xf]
        %v390 = vld [vmem:[%s230 + $0x254] sm:$0xf]
        %v391 = vld [vmem:[%s230 + $0x258] sm:$0xf]
        %v392 = vld [vmem:[%s230 + $0x25c] sm:$0xf]
        %v393 = vld [vmem:[%s230 + $0x260] sm:$0xf]
        %v394 = vld [vmem:[%s230 + $0x264] sm:$0xf]
        %v395 = vld [vmem:[%s230 + $0x268] sm:$0xf]
        %v396 = vld [vmem:[%s230 + $0x26c] sm:$0xf]
        %v397 = vld [vmem:[%s230 + $0x270] sm:$0xf]
        %v398 = vld [vmem:[%s230 + $0x274] sm:$0xf]
        %v399 = vld [vmem:[%s230 + $0x278] sm:$0xf]
        %v400 = vld [vmem:[%s230 + $0x27c] sm:$0xf]
        %v401 = vld [vmem:[%s230 + $0x280] sm:$0xf]
        %v402 = vld [vmem:[%s230 + $0x284] sm:$0xf]
        %v403 = vld [vmem:[%s230 + $0x288] sm:$0xf]
        %v404 = vld [vmem:[%s230 + $0x28c] sm:$0xf]
        %v405 = vld [vmem:[%s230 + $0x290] sm:$0xf]
        %v406 = vld [vmem:[%s230 + $0x294] sm:$0xf]
        %v407 = vld [vmem:[%s230 + $0x298] sm:$0xf]
        %v408 = vld [vmem:[%s230 + $0x29c] sm:$0xf]
        %v409 = vld [vmem:[%s230 + $0x2a0] sm:$0xf]
        %v410 = vld [vmem:[%s230 + $0x2a4] sm:$0xf]
        %v411 = vld [vmem:[%s230 + $0x2a8] sm:$0xf]
        %v412 = vld [vmem:[%s230 + $0x2ac] sm:$0xf]
        %v413 = vld [vmem:[%s230 + $0x2b0] sm:$0xf]
        %v414 = vld [vmem:[%s230 + $0x2b4] sm:$0xf]
        %v415 = vld [vmem:[%s230 + $0x2b8] sm:$0xf]
        %v416 = vld [vmem:[%s230 + $0x2bc] sm:$0xf]
        %v417 = vld [vmem:[%s230 + $0x2c0] sm:$0xf]
        %v418 = vld [vmem:[%s230 + $0x2c4] sm:$0xf]
        %v419 = vld [vmem:[%s230 + $0x2c8] sm:$0xf]
        %v420 = vld [vmem:[%s230 + $0x2cc] sm:$0xf]
        %v421 = vld [vmem:[%s230 + $0x2d0] sm:$0xf]
        %v422 = vld [vmem:[%s230 + $0x2d4] sm:$0xf]
        %v423 = vld [vmem:[%s230 + $0x2d8] sm:$0xf]
        %v424 = vld [vmem:[%s230 + $0x2dc] sm:$0xf]
        %v425 = vld [vmem:[%s230 + $0x2e0] sm:$0xf]
        %v426 = vld [vmem:[%s230 + $0x2e4] sm:$0xf]
        %v427 = vld [vmem:[%s230 + $0x2e8] sm:$0xf]
        %v428 = vld [vmem:[%s230 + $0x2ec] sm:$0xf]
        %v429 = vld [vmem:[%s230 + $0x2f0] sm:$0xf]
        %v430 = vld [vmem:[%s230 + $0x2f4] sm:$0xf]
        %v431 = vld [vmem:[%s230 + $0x2f8] sm:$0xf]
        %v432 = vld [vmem:[%s230 + $0x2fc] sm:$0xf]
        %v433 = vld [vmem:[%s230 + $0x300] sm:$0xf]
        %v434 = vld [vmem:[%s230 + $0x304] sm:$0xf]
        %v435 = vld [vmem:[%s230 + $0x308] sm:$0xf]
        %v436 = vld [vmem:[%s230 + $0x30c] sm:$0xf]
        %v437 = vld [vmem:[%s230 + $0x310] sm:$0xf]
        %v438 = vld [vmem:[%s230 + $0x314] sm:$0xf]
        %v439 = vld [vmem:[%s230 + $0x318] sm:$0xf]
        %v440 = vld [vmem:[%s230 + $0x31c] sm:$0xf]
        %v441 = vld [vmem:[%s230 + $0x320] sm:$0xf]
        %v442 = vld [vmem:[%s230 + $0x324] sm:$0xf]
        %v443 = vld [vmem:[%s230 + $0x328] sm:$0xf]
        %v444 = vld [vmem:[%s230 + $0x32c] sm:$0xf]
        %v445 = vld [vmem:[%s230 + $0x330] sm:$0xf]
        %v446 = vld [vmem:[%s230 + $0x334] sm:$0xf]
        %v447 = vld [vmem:[%s230 + $0x338] sm:$0xf]
        %v448 = vld [vmem:[%s230 + $0x33c] sm:$0xf]
        %v449 = vld [vmem:[%s230 + $0x340] sm:$0xf]
        %v450 = vld [vmem:[%s230 + $0x344] sm:$0xf]
        %v451 = vld [vmem:[%s230 + $0x348] sm:$0xf]
        %v452 = vld [vmem:[%s230 + $0x34c] sm:$0xf]
        %v453 = vld [vmem:[%s230 + $0x350] sm:$0xf]
        %v454 = vld [vmem:[%s230 + $0x354] sm:$0xf]
        %v455 = vld [vmem:[%s230 + $0x358] sm:$0xf]
        %v456 = vld [vmem:[%s230 + $0x35c] sm:$0xf]
        %v457 = vld [vmem:[%s230 + $0x360] sm:$0xf]
        %v458 = vld [vmem:[%s230 + $0x364] sm:$0xf]
        %v459 = vld [vmem:[%s230 + $0x368] sm:$0xf]
        %v460 = vld [vmem:[%s230 + $0x36c] sm:$0xf]
        %v461 = vld [vmem:[%s230 + $0x370] sm:$0xf]
        %v462 = vld [vmem:[%s230 + $0x374] sm:$0xf]
        %v463 = vld [vmem:[%s230 + $0x378] sm:$0xf]
        %v464 = vld [vmem:[%s230 + $0x37c] sm:$0xf]
        %v467 = vcombine.high %v239, %v239
        %v469 = vunpack.c.l.s4 1966171168
        %v470 = vunpack.c.0.s8 %v469
        %v471 = vlaneseq
        %v472 = vshrl.u32 %v471, 7
        %v473 = vsub.s32 %v470, %v472
        %v474 = vrot.slane %v239, %v473
        %v476 = vunpack.c.l.s4 1966171168
        %v477 = vunpack.c.0.s8 %v476
        %v478 = vlaneseq
        %v479 = vshrl.u32 %v478, 7
        %v480 = vsub.s32 %v477, %v479
        %v481 = vrot.slane %v467, %v480
        %v482 = vcombine.high %v474, %v474
        %v483 = vcombine.high %v481, %v481
        %v485 = vunpack.c.l.s4 1966171168
        %v486 = vunpack.c.0.s8 %v485
        %v487 = vlaneseq
        %v488 = vshrl.u32 %v487, 7
        %v489 = vsub.s32 %v486, %v488
        %v490 = vrot.slane %v474, %v489
        %v492 = vunpack.c.l.s4 1966171168
        %v493 = vunpack.c.0.s8 %v492
        %v494 = vlaneseq
        %v495 = vshrl.u32 %v494, 7
        %v496 = vsub.s32 %v493, %v495
        %v497 = vrot.slane %v481, %v496
        %v499 = vunpack.c.l.s4 1966171168
        %v500 = vunpack.c.0.s8 %v499
        %v501 = vlaneseq
        %v502 = vshrl.u32 %v501, 7
        %v503 = vsub.s32 %v500, %v502
        %v504 = vrot.slane %v482, %v503
        %v506 = vunpack.c.l.s4 1966171168
        %v507 = vunpack.c.0.s8 %v506
        %v508 = vlaneseq
        %v509 = vshrl.u32 %v508, 7
        %v510 = vsub.s32 %v507, %v509
        %v511 = vrot.slane %v483, %v510
        %v512 = vcombine.high %v490, %v490
        %v513 = vcombine.high %v497, %v497
        %v514 = vcombine.high %v504, %v504
        %v515 = vcombine.high %v511, %v511
        %v516 = vcombine.high %v240, %v240
        %v518 = vunpack.c.l.s4 1966171168
        %v519 = vunpack.c.0.s8 %v518
        %v520 = vlaneseq
        %v521 = vshrl.u32 %v520, 7
        %v522 = vsub.s32 %v519, %v521
        %v523 = vrot.slane %v240, %v522
        %v525 = vunpack.c.l.s4 1966171168
        %v526 = vunpack.c.0.s8 %v525
        %v527 = vlaneseq
        %v528 = vshrl.u32 %v527, 7
        %v529 = vsub.s32 %v526, %v528
        %v530 = vrot.slane %v516, %v529
        %v531 = vcombine.high %v523, %v523
        %v532 = vcombine.high %v530, %v530
        %v534 = vunpack.c.l.s4 1966171168
        %v535 = vunpack.c.0.s8 %v534
        %v536 = vlaneseq
        %v537 = vshrl.u32 %v536, 7
        %v538 = vsub.s32 %v535, %v537
        %v539 = vrot.slane %v523, %v538
        %v541 = vunpack.c.l.s4 1966171168
        %v542 = vunpack.c.0.s8 %v541
        %v543 = vlaneseq
        %v544 = vshrl.u32 %v543, 7
        %v545 = vsub.s32 %v542, %v544
        %v546 = vrot.slane %v530, %v545
        %v548 = vunpack.c.l.s4 1966171168
        %v549 = vunpack.c.0.s8 %v548
        %v550 = vlaneseq
        %v551 = vshrl.u32 %v550, 7
        %v552 = vsub.s32 %v549, %v551
        %v553 = vrot.slane %v531, %v552
        %v555 = vunpack.c.l.s4 1966171168
        %v556 = vunpack.c.0.s8 %v555
        %v557 = vlaneseq
        %v558 = vshrl.u32 %v557, 7
        %v559 = vsub.s32 %v556, %v558
        %v560 = vrot.slane %v532, %v559
        %v561 = vcombine.high %v539, %v539
        %v562 = vcombine.high %v553, %v553
        %v801 = vunpack.c.l.b16 %v241
        %v802 = vunpack.c.l.b16 %v242
        %v803 = vunpack.c.l.b16 %v243
        %v804 = vunpack.c.l.b16 %v244
        %v805 = vunpack.c.l.b16 %v245
        %v806 = vunpack.c.l.b16 %v246
        %v807 = vunpack.c.l.b16 %v247
        %v808 = vunpack.c.l.b16 %v248
        %v809 = vunpack.c.l.b16 %v249
        %v810 = vunpack.c.l.b16 %v250
        %v811 = vunpack.c.l.b16 %v251
        %v812 = vunpack.c.l.b16 %v252
        %v813 = vunpack.c.l.b16 %v253
        %v814 = vunpack.c.l.b16 %v254
        %v815 = vunpack.c.l.b16 %v255
        %v816 = vunpack.c.l.b16 %v256
        %v817 = vunpack.c.l.b16 %v257
        %v818 = vunpack.c.l.b16 %v258
        %v819 = vunpack.c.l.b16 %v259
        %v820 = vunpack.c.l.b16 %v260
        %v821 = vunpack.c.l.b16 %v261
        %v822 = vunpack.c.l.b16 %v262
        %v823 = vunpack.c.l.b16 %v263
        %v824 = vunpack.c.l.b16 %v264
        %v825 = vunpack.c.l.b16 %v265
        %v826 = vunpack.c.l.b16 %v266
        %v827 = vunpack.c.l.b16 %v267
        %v828 = vunpack.c.l.b16 %v268
        %v829 = vunpack.c.l.b16 %v269
        %v830 = vunpack.c.l.b16 %v270
        %v831 = vunpack.c.l.b16 %v271
        %v832 = vunpack.c.l.b16 %v272
        %v833 = vunpack.c.l.b16 %v273
        %v834 = vunpack.c.l.b16 %v274
        %v835 = vunpack.c.l.b16 %v275
        %v836 = vunpack.c.l.b16 %v276
        %v837 = vunpack.c.l.b16 %v277
        %v838 = vunpack.c.l.b16 %v278
        %v839 = vunpack.c.l.b16 %v279
        %v840 = vunpack.c.l.b16 %v280
        %v841 = vunpack.c.l.b16 %v281
        %v842 = vunpack.c.l.b16 %v282
        %v843 = vunpack.c.l.b16 %v283
        %v844 = vunpack.c.l.b16 %v284
        %v845 = vunpack.c.l.b16 %v285
        %v846 = vunpack.c.l.b16 %v286
        %v847 = vunpack.c.l.b16 %v287
        %v848 = vunpack.c.l.b16 %v288
        %v849 = vunpack.c.l.b16 %v289
        %v850 = vunpack.c.l.b16 %v290
        %v851 = vunpack.c.l.b16 %v291
        %v852 = vunpack.c.l.b16 %v292
        %v853 = vunpack.c.l.b16 %v293
        %v854 = vunpack.c.l.b16 %v294
        %v855 = vunpack.c.l.b16 %v295
        %v856 = vunpack.c.l.b16 %v296
        %v857 = vunpack.c.l.b16 %v297
        %v858 = vunpack.c.l.b16 %v298
        %v859 = vunpack.c.l.b16 %v299
        %v860 = vunpack.c.l.b16 %v300
        %v861 = vunpack.c.l.b16 %v301
        %v862 = vunpack.c.l.b16 %v302
        %v863 = vunpack.c.l.b16 %v303
        %v864 = vunpack.c.l.b16 %v304
        %v865 = vunpack.c.l.b16 %v305
        %v866 = vunpack.c.l.b16 %v306
        %v867 = vunpack.c.l.b16 %v307
        %v868 = vunpack.c.l.b16 %v308
        %v869 = vunpack.c.l.b16 %v309
        %v870 = vunpack.c.l.b16 %v310
        %v871 = vunpack.c.l.b16 %v311
        %v872 = vunpack.c.l.b16 %v312
        %v873 = vunpack.c.l.b16 %v313
        %v874 = vunpack.c.l.b16 %v314
        %v875 = vunpack.c.l.b16 %v315
        %v876 = vunpack.c.l.b16 %v316
        %v877 = vunpack.c.l.b16 %v317
        %v878 = vunpack.c.l.b16 %v318
        %v879 = vunpack.c.l.b16 %v319
        %v880 = vunpack.c.l.b16 %v320
        %v881 = vunpack.c.l.b16 %v321
        %v882 = vunpack.c.l.b16 %v322
        %v883 = vunpack.c.l.b16 %v323
        %v884 = vunpack.c.l.b16 %v324
        %v885 = vunpack.c.l.b16 %v325
        %v886 = vunpack.c.l.b16 %v326
        %v887 = vunpack.c.l.b16 %v327
        %v888 = vunpack.c.l.b16 %v328
        %v889 = vunpack.c.l.b16 %v329
        %v890 = vunpack.c.l.b16 %v330
        %v891 = vunpack.c.l.b16 %v331
        %v892 = vunpack.c.l.b16 %v332
        %v893 = vunpack.c.l.b16 %v333
        %v894 = vunpack.c.l.b16 %v334
        %v895 = vunpack.c.l.b16 %v335
        %v896 = vunpack.c.l.b16 %v336
        %v897 = vunpack.c.l.b16 %v337
        %v898 = vunpack.c.l.b16 %v338
        %v899 = vunpack.c.l.b16 %v339
        %v900 = vunpack.c.l.b16 %v340
        %v901 = vunpack.c.l.b16 %v341
        %v902 = vunpack.c.l.b16 %v342
        %v903 = vunpack.c.l.b16 %v343
        %v904 = vunpack.c.l.b16 %v344
        %v905 = vunpack.c.l.b16 %v345
        %v906 = vunpack.c.l.b16 %v346
        %v907 = vunpack.c.l.b16 %v347
        %v908 = vunpack.c.l.b16 %v348
        %v909 = vunpack.c.l.b16 %v349
        %v910 = vunpack.c.l.b16 %v350
        %v911 = vunpack.c.l.b16 %v351
        %v912 = vunpack.c.l.b16 %v352
        %v913 = vunpack.c.l.b16 %v353
        %v914 = vunpack.c.l.b16 %v354
        %v915 = vunpack.c.l.b16 %v355
        %v916 = vunpack.c.l.b16 %v356
        %v917 = vunpack.c.l.b16 %v357
        %v918 = vunpack.c.l.b16 %v358
        %v919 = vunpack.c.l.b16 %v359
        %v920 = vunpack.c.l.b16 %v360
        %v921 = vunpack.c.l.b16 %v361
        %v922 = vunpack.c.l.b16 %v362
        %v923 = vunpack.c.l.b16 %v363
        %v924 = vunpack.c.l.b16 %v364
        %v925 = vunpack.c.l.b16 %v365
        %v926 = vunpack.c.l.b16 %v366
        %v927 = vunpack.c.l.b16 %v367
        %v928 = vunpack.c.l.b16 %v368
        %v929 = vunpack.c.l.b16 %v369
        %v930 = vunpack.c.l.b16 %v370
        %v931 = vunpack.c.l.b16 %v371
        %v932 = vunpack.c.l.b16 %v372
        %v933 = vunpack.c.l.b16 %v373
        %v934 = vunpack.c.l.b16 %v374
        %v935 = vunpack.c.l.b16 %v375
        %v936 = vunpack.c.l.b16 %v376
        %v937 = vunpack.c.l.b16 %v377
        %v938 = vunpack.c.l.b16 %v378
        %v939 = vunpack.c.l.b16 %v379
        %v940 = vunpack.c.l.b16 %v380
        %v941 = vunpack.c.l.b16 %v381
        %v942 = vunpack.c.l.b16 %v382
        %v943 = vunpack.c.l.b16 %v383
        %v944 = vunpack.c.l.b16 %v384
        %v945 = vunpack.c.l.b16 %v385
        %v946 = vunpack.c.l.b16 %v386
        %v947 = vunpack.c.l.b16 %v387
        %v948 = vunpack.c.l.b16 %v388
        %v949 = vunpack.c.l.b16 %v389
        %v950 = vunpack.c.l.b16 %v390
        %v951 = vunpack.c.l.b16 %v391
        %v952 = vunpack.c.l.b16 %v392
        %v953 = vunpack.c.l.b16 %v393
        %v954 = vunpack.c.l.b16 %v394
        %v955 = vunpack.c.l.b16 %v395
        %v956 = vunpack.c.l.b16 %v396
        %v957 = vunpack.c.l.b16 %v397
        %v958 = vunpack.c.l.b16 %v398
        %v959 = vunpack.c.l.b16 %v399
        %v960 = vunpack.c.l.b16 %v400
        %v961 = vunpack.c.l.b16 %v401
        %v962 = vunpack.c.l.b16 %v402
        %v963 = vunpack.c.l.b16 %v403
        %v964 = vunpack.c.l.b16 %v404
        %v965 = vunpack.c.l.b16 %v405
        %v966 = vunpack.c.l.b16 %v406
        %v967 = vunpack.c.l.b16 %v407
        %v968 = vunpack.c.l.b16 %v408
        %v969 = vunpack.c.l.b16 %v409
        %v970 = vunpack.c.l.b16 %v410
        %v971 = vunpack.c.l.b16 %v411
        %v972 = vunpack.c.l.b16 %v412
        %v973 = vunpack.c.l.b16 %v413
        %v974 = vunpack.c.l.b16 %v414
        %v975 = vunpack.c.l.b16 %v415
        %v976 = vunpack.c.l.b16 %v416
        %v977 = vunpack.c.l.b16 %v417
        %v978 = vunpack.c.l.b16 %v418
        %v979 = vunpack.c.l.b16 %v419
        %v980 = vunpack.c.l.b16 %v420
        %v981 = vunpack.c.l.b16 %v421
        %v982 = vunpack.c.l.b16 %v422
        %v983 = vunpack.c.l.b16 %v423
        %v984 = vunpack.c.l.b16 %v424
        %v985 = vunpack.c.l.b16 %v425
        %v986 = vunpack.c.l.b16 %v426
        %v987 = vunpack.c.l.b16 %v427
        %v988 = vunpack.c.l.b16 %v428
        %v989 = vunpack.c.l.b16 %v429
        %v990 = vunpack.c.l.b16 %v430
        %v991 = vunpack.c.l.b16 %v431
        %v992 = vunpack.c.l.b16 %v432
        %v993 = vunpack.c.l.b16 %v433
        %v994 = vunpack.c.l.b16 %v434
        %v995 = vunpack.c.l.b16 %v435
        %v996 = vunpack.c.l.b16 %v436
        %v997 = vunpack.c.l.b16 %v437
        %v998 = vunpack.c.l.b16 %v438
        %v999 = vunpack.c.l.b16 %v439
        %v1000 = vunpack.c.l.b16 %v440
        %v1001 = vunpack.c.l.b16 %v441
        %v1002 = vunpack.c.l.b16 %v442
        %v1003 = vunpack.c.l.b16 %v443
        %v1004 = vunpack.c.l.b16 %v444
        %v1005 = vunpack.c.l.b16 %v445
        %v1006 = vunpack.c.l.b16 %v446
        %v1007 = vunpack.c.l.b16 %v447
        %v1008 = vunpack.c.l.b16 %v448
        %v1009 = vunpack.c.l.b16 %v449
        %v1010 = vunpack.c.l.b16 %v450
        %v1011 = vunpack.c.l.b16 %v451
        %v1012 = vunpack.c.l.b16 %v452
        %v1013 = vunpack.c.l.b16 %v453
        %v1014 = vunpack.c.l.b16 %v454
        %v1015 = vunpack.c.l.b16 %v455
        %v1016 = vunpack.c.l.b16 %v456
        %v1017 = vunpack.c.l.b16 %v457
        %v1018 = vunpack.c.l.b16 %v458
        %v1019 = vunpack.c.l.b16 %v459
        %v1020 = vunpack.c.l.b16 %v460
        %v1021 = vunpack.c.l.b16 %v461
        %v1022 = vunpack.c.l.b16 %v462
        %v1023 = vunpack.c.l.b16 %v463
        %v1024 = vunpack.c.l.b16 %v464
        %v1025 = vpack.c.b16 %v802, %v801
        %v1026 = vpack.c.b16 %v804, %v803
        %v1027 = vpack.c.b16 %v806, %v805
        %v1028 = vpack.c.b16 %v808, %v807
        %v1029 = vpack.c.b16 %v810, %v809
        %v1030 = vpack.c.b16 %v812, %v811
        %v1031 = vpack.c.b16 %v814, %v813
        %v1032 = vpack.c.b16 %v816, %v815
        %v1033 = vpack.c.b16 %v818, %v817
        %v1034 = vpack.c.b16 %v820, %v819
        %v1035 = vpack.c.b16 %v822, %v821
        %v1036 = vpack.c.b16 %v824, %v823
        %v1037 = vpack.c.b16 %v826, %v825
        %v1038 = vpack.c.b16 %v828, %v827
        %v1039 = vpack.c.b16 %v830, %v829
        %v1040 = vpack.c.b16 %v832, %v831
        %v1041 = vpack.c.b16 %v834, %v833
        %v1042 = vpack.c.b16 %v836, %v835
        %v1043 = vpack.c.b16 %v838, %v837
        %v1044 = vpack.c.b16 %v840, %v839
        %v1045 = vpack.c.b16 %v842, %v841
        %v1046 = vpack.c.b16 %v844, %v843
        %v1047 = vpack.c.b16 %v846, %v845
        %v1048 = vpack.c.b16 %v848, %v847
        %v1049 = vpack.c.b16 %v850, %v849
        %v1050 = vpack.c.b16 %v852, %v851
        %v1051 = vpack.c.b16 %v854, %v853
        %v1052 = vpack.c.b16 %v856, %v855
        %v1053 = vpack.c.b16 %v858, %v857
        %v1054 = vpack.c.b16 %v860, %v859
        %v1055 = vpack.c.b16 %v862, %v861
        %v1056 = vpack.c.b16 %v864, %v863
        %v1057 = vpack.c.b16 %v866, %v865
        %v1058 = vpack.c.b16 %v868, %v867
        %v1059 = vpack.c.b16 %v870, %v869
        %v1060 = vpack.c.b16 %v872, %v871
        %v1061 = vpack.c.b16 %v874, %v873
        %v1062 = vpack.c.b16 %v876, %v875
        %v1063 = vpack.c.b16 %v878, %v877
        %v1064 = vpack.c.b16 %v880, %v879
        %v1065 = vpack.c.b16 %v882, %v881
        %v1066 = vpack.c.b16 %v884, %v883
        %v1067 = vpack.c.b16 %v886, %v885
        %v1068 = vpack.c.b16 %v888, %v887
        %v1069 = vpack.c.b16 %v890, %v889
        %v1070 = vpack.c.b16 %v892, %v891
        %v1071 = vpack.c.b16 %v894, %v893
        %v1072 = vpack.c.b16 %v896, %v895
        %v1073 = vpack.c.b16 %v898, %v897
        %v1074 = vpack.c.b16 %v900, %v899
        %v1075 = vpack.c.b16 %v902, %v901
        %v1076 = vpack.c.b16 %v904, %v903
        %v1077 = vpack.c.b16 %v906, %v905
        %v1078 = vpack.c.b16 %v908, %v907
        %v1079 = vpack.c.b16 %v910, %v909
        %v1080 = vpack.c.b16 %v912, %v911
        %v1081 = vpack.c.b16 %v914, %v913
        %v1082 = vpack.c.b16 %v916, %v915
        %v1083 = vpack.c.b16 %v918, %v917
        %v1084 = vpack.c.b16 %v920, %v919
        %v1085 = vpack.c.b16 %v922, %v921
        %v1086 = vpack.c.b16 %v924, %v923
        %v1087 = vpack.c.b16 %v926, %v925
        %v1088 = vpack.c.b16 %v928, %v927
        %v1089 = vpack.c.b16 %v930, %v929
        %v1090 = vpack.c.b16 %v932, %v931
        %v1091 = vpack.c.b16 %v934, %v933
        %v1092 = vpack.c.b16 %v936, %v935
        %v1093 = vpack.c.b16 %v938, %v937
        %v1094 = vpack.c.b16 %v940, %v939
        %v1095 = vpack.c.b16 %v942, %v941
        %v1096 = vpack.c.b16 %v944, %v943
        %v1097 = vpack.c.b16 %v946, %v945
        %v1098 = vpack.c.b16 %v948, %v947
        %v1099 = vpack.c.b16 %v950, %v949
        %v1100 = vpack.c.b16 %v952, %v951
        %v1101 = vpack.c.b16 %v954, %v953
        %v1102 = vpack.c.b16 %v956, %v955
        %v1103 = vpack.c.b16 %v958, %v957
        %v1104 = vpack.c.b16 %v960, %v959
        %v1105 = vpack.c.b16 %v962, %v961
        %v1106 = vpack.c.b16 %v964, %v963
        %v1107 = vpack.c.b16 %v966, %v965
        %v1108 = vpack.c.b16 %v968, %v967
        %v1109 = vpack.c.b16 %v970, %v969
        %v1110 = vpack.c.b16 %v972, %v971
        %v1111 = vpack.c.b16 %v974, %v973
        %v1112 = vpack.c.b16 %v976, %v975
        %v1113 = vpack.c.b16 %v978, %v977
        %v1114 = vpack.c.b16 %v980, %v979
        %v1115 = vpack.c.b16 %v982, %v981
        %v1116 = vpack.c.b16 %v984, %v983
        %v1117 = vpack.c.b16 %v986, %v985
        %v1118 = vpack.c.b16 %v988, %v987
        %v1119 = vpack.c.b16 %v990, %v989
        %v1120 = vpack.c.b16 %v992, %v991
        %v1121 = vpack.c.b16 %v994, %v993
        %v1122 = vpack.c.b16 %v996, %v995
        %v1123 = vpack.c.b16 %v998, %v997
        %v1124 = vpack.c.b16 %v1000, %v999
        %v1125 = vpack.c.b16 %v1002, %v1001
        %v1126 = vpack.c.b16 %v1004, %v1003
        %v1127 = vpack.c.b16 %v1006, %v1005
        %v1128 = vpack.c.b16 %v1008, %v1007
        %v1129 = vpack.c.b16 %v1010, %v1009
        %v1130 = vpack.c.b16 %v1012, %v1011
        %v1131 = vpack.c.b16 %v1014, %v1013
        %v1132 = vpack.c.b16 %v1016, %v1015
        %v1133 = vpack.c.b16 %v1018, %v1017
        %v1134 = vpack.c.b16 %v1020, %v1019
        %v1135 = vpack.c.b16 %v1022, %v1021
        %v1136 = vpack.c.b16 %v1024, %v1023
        %1249 = vmatprep.subr.bf16.mxu0 0
        %1250 = vmatpush1.bf16.msra.mxu0 %v1032
        %1251 = vmatprep.subr.bf16.mxu0 0
        %1252 = vmatpush1.bf16.msra.mxu0 %v1031
        %1253 = vmatprep.subr.bf16.mxu0 0
        %1254 = vmatpush1.bf16.msra.mxu0 %v1030
        %1255 = vmatprep.subr.bf16.mxu0 0
        %1256 = vmatpush1.bf16.msra.mxu0 %v1029
        %1257 = vmatprep.subr.bf16.mxu0 0
        %1258 = vmatpush1.bf16.msra.mxu0 %v1028
        %1259 = vmatprep.subr.bf16.mxu0 0
        %1260 = vmatpush1.bf16.msra.mxu0 %v1027
        %1261 = vmatprep.subr.bf16.mxu0 0
        %1262 = vmatpush1.bf16.msra.mxu0 %v1026
        %1263 = vmatprep.subr.bf16.mxu0 0
        %1264 = vmatpush1.bf16.msra.mxu0 %v1025
        %1265 = vmatprep.subr.bf16.mxu0 0
        %1266 = vmatpush2.bf16.msra.mxu0 %v1040
        %1267 = vmatprep.subr.bf16.mxu0 0
        %1268 = vmatpush2.bf16.msra.mxu0 %v1039
        %1269 = vmatprep.subr.bf16.mxu0 0
        %1270 = vmatpush2.bf16.msra.mxu0 %v1038
        %1271 = vmatprep.subr.bf16.mxu0 0
        %1272 = vmatpush2.bf16.msra.mxu0 %v1037
        %1273 = vmatprep.subr.bf16.mxu0 0
        %1274 = vmatpush2.bf16.msra.mxu0 %v1036
        %1275 = vmatprep.subr.bf16.mxu0 0
        %1276 = vmatpush2.bf16.msra.mxu0 %v1035
        %1277 = vmatprep.subr.bf16.mxu0 0
        %1278 = vmatpush2.bf16.msra.mxu0 %v1034
        %1279 = vmatprep.subr.bf16.mxu0 0
        %1280 = vmatpush2.bf16.msra.mxu0 %v1033
        %1281 = vmatprep.mubr.bf16.mxu0 %v504
        %1282 = vmatmul.mubr.bf16.gmra.mxu0 %v490
        %v1283 = vpop.f32.mrf.mxu0
        %v1284 = vadd.f32 0.0, %v1283
        %v1285 = vpop.f32.mrf.mxu0
        %v1286 = vpop.f32.mrf.mxu0
        %v1287 = vpop.f32.mrf.mxu0
        %1288 = vdwg.mxu0
        %1289 = vmatprep.subr.bf16.mxu0 0
        %1290 = vmatpush1.bf16.msra.mxu0 %v1048
        %1291 = vmatprep.subr.bf16.mxu0 0
        %1292 = vmatpush1.bf16.msra.mxu0 %v1047
        %1293 = vmatprep.subr.bf16.mxu0 0
        %1294 = vmatpush1.bf16.msra.mxu0 %v1046
        %1295 = vmatprep.subr.bf16.mxu0 0
        %1296 = vmatpush1.bf16.msra.mxu0 %v1045
        %1297 = vmatprep.subr.bf16.mxu0 0
        %1298 = vmatpush1.bf16.msra.mxu0 %v1044
        %1299 = vmatprep.subr.bf16.mxu0 0
        %1300 = vmatpush1.bf16.msra.mxu0 %v1043
        %1301 = vmatprep.subr.bf16.mxu0 0
        %1302 = vmatpush1.bf16.msra.mxu0 %v1042
        %1303 = vmatprep.subr.bf16.mxu0 0
        %1304 = vmatpush1.bf16.msra.mxu0 %v1041
        %1305 = vmatprep.subr.bf16.mxu0 0
        %1306 = vmatpush2.bf16.msra.mxu0 %v1056
        %1307 = vmatprep.subr.bf16.mxu0 0
        %1308 = vmatpush2.bf16.msra.mxu0 %v1055
        %1309 = vmatprep.subr.bf16.mxu0 0
        %1310 = vmatpush2.bf16.msra.mxu0 %v1054
        %1311 = vmatprep.subr.bf16.mxu0 0
        %1312 = vmatpush2.bf16.msra.mxu0 %v1053
        %1313 = vmatprep.subr.bf16.mxu0 0
        %1314 = vmatpush2.bf16.msra.mxu0 %v1052
        %1315 = vmatprep.subr.bf16.mxu0 0
        %1316 = vmatpush2.bf16.msra.mxu0 %v1051
        %1317 = vmatprep.subr.bf16.mxu0 0
        %1318 = vmatpush2.bf16.msra.mxu0 %v1050
        %1319 = vmatprep.subr.bf16.mxu0 0
        %1320 = vmatpush2.bf16.msra.mxu0 %v1049
        %1321 = vmatprep.mubr.bf16.mxu0 %v514
        %1322 = vmatmul.mubr.bf16.gmra.mxu0 %v512
        %v1323 = vpop.f32.mrf.mxu0
        %v1324 = vadd.f32 %v1284, %v1323
        %v1325 = vpop.f32.mrf.mxu0
        %v1326 = vpop.f32.mrf.mxu0
        %v1327 = vpop.f32.mrf.mxu0
        %1328 = vdwg.mxu0
        %1329 = vmatprep.subr.bf16.mxu0 0
        %1330 = vmatpush1.bf16.msra.mxu0 %v1064
        %1331 = vmatprep.subr.bf16.mxu0 0
        %1332 = vmatpush1.bf16.msra.mxu0 %v1063
        %1333 = vmatprep.subr.bf16.mxu0 0
        %1334 = vmatpush1.bf16.msra.mxu0 %v1062
        %1335 = vmatprep.subr.bf16.mxu0 0
        %1336 = vmatpush1.bf16.msra.mxu0 %v1061
        %1337 = vmatprep.subr.bf16.mxu0 0
        %1338 = vmatpush1.bf16.msra.mxu0 %v1060
        %1339 = vmatprep.subr.bf16.mxu0 0
        %1340 = vmatpush1.bf16.msra.mxu0 %v1059
        %1341 = vmatprep.subr.bf16.mxu0 0
        %1342 = vmatpush1.bf16.msra.mxu0 %v1058
        %1343 = vmatprep.subr.bf16.mxu0 0
        %1344 = vmatpush1.bf16.msra.mxu0 %v1057
        %1345 = vmatprep.subr.bf16.mxu0 0
        %1346 = vmatpush2.bf16.msra.mxu0 %v1072
        %1347 = vmatprep.subr.bf16.mxu0 0
        %1348 = vmatpush2.bf16.msra.mxu0 %v1071
        %1349 = vmatprep.subr.bf16.mxu0 0
        %1350 = vmatpush2.bf16.msra.mxu0 %v1070
        %1351 = vmatprep.subr.bf16.mxu0 0
        %1352 = vmatpush2.bf16.msra.mxu0 %v1069
        %1353 = vmatprep.subr.bf16.mxu0 0
        %1354 = vmatpush2.bf16.msra.mxu0 %v1068
        %1355 = vmatprep.subr.bf16.mxu0 0
        %1356 = vmatpush2.bf16.msra.mxu0 %v1067
        %1357 = vmatprep.subr.bf16.mxu0 0
        %1358 = vmatpush2.bf16.msra.mxu0 %v1066
        %1359 = vmatprep.subr.bf16.mxu0 0
        %1360 = vmatpush2.bf16.msra.mxu0 %v1065
        %1361 = vmatprep.mubr.bf16.mxu0 %v511
        %1362 = vmatmul.mubr.bf16.gmra.mxu0 %v497
        %v1363 = vpop.f32.mrf.mxu0
        %v1364 = vadd.f32 %v1324, %v1363
        %v1365 = vpop.f32.mrf.mxu0
        %v1366 = vpop.f32.mrf.mxu0
        %v1367 = vpop.f32.mrf.mxu0
        %1368 = vdwg.mxu0
        %1369 = vmatprep.subr.bf16.mxu0 0
        %1370 = vmatpush1.bf16.msra.mxu0 %v1080
        %1371 = vmatprep.subr.bf16.mxu0 0
        %1372 = vmatpush1.bf16.msra.mxu0 %v1079
        %1373 = vmatprep.subr.bf16.mxu0 0
        %1374 = vmatpush1.bf16.msra.mxu0 %v1078
        %1375 = vmatprep.subr.bf16.mxu0 0
        %1376 = vmatpush1.bf16.msra.mxu0 %v1077
        %1377 = vmatprep.subr.bf16.mxu0 0
        %1378 = vmatpush1.bf16.msra.mxu0 %v1076
        %1379 = vmatprep.subr.bf16.mxu0 0
        %1380 = vmatpush1.bf16.msra.mxu0 %v1075
        %1381 = vmatprep.subr.bf16.mxu0 0
        %1382 = vmatpush1.bf16.msra.mxu0 %v1074
        %1383 = vmatprep.subr.bf16.mxu0 0
        %1384 = vmatpush1.bf16.msra.mxu0 %v1073
        %1385 = vmatprep.subr.bf16.mxu0 0
        %1386 = vmatpush2.bf16.msra.mxu0 %v1088
        %1387 = vmatprep.subr.bf16.mxu0 0
        %1388 = vmatpush2.bf16.msra.mxu0 %v1087
        %1389 = vmatprep.subr.bf16.mxu0 0
        %1390 = vmatpush2.bf16.msra.mxu0 %v1086
        %1391 = vmatprep.subr.bf16.mxu0 0
        %1392 = vmatpush2.bf16.msra.mxu0 %v1085
        %1393 = vmatprep.subr.bf16.mxu0 0
        %1394 = vmatpush2.bf16.msra.mxu0 %v1084
        %1395 = vmatprep.subr.bf16.mxu0 0
        %1396 = vmatpush2.bf16.msra.mxu0 %v1083
        %1397 = vmatprep.subr.bf16.mxu0 0
        %1398 = vmatpush2.bf16.msra.mxu0 %v1082
        %1399 = vmatprep.subr.bf16.mxu0 0
        %1400 = vmatpush2.bf16.msra.mxu0 %v1081
        %1401 = vmatprep.mubr.bf16.mxu0 %v515
        %1402 = vmatmul.mubr.bf16.gmra.mxu0 %v513
        %v1403 = vpop.f32.mrf.mxu0
        %v1404 = vadd.f32 %v1364, %v1403
        %v1405 = vpop.f32.mrf.mxu0
        %v1406 = vpop.f32.mrf.mxu0
        %v1407 = vpop.f32.mrf.mxu0
        %1408 = vdwg.mxu0
        %1409 = vmatprep.subr.bf16.mxu0 0
        %1410 = vmatpush1.bf16.msra.mxu0 %v1096
        %1411 = vmatprep.subr.bf16.mxu0 0
        %1412 = vmatpush1.bf16.msra.mxu0 %v1095
        %1413 = vmatprep.subr.bf16.mxu0 0
        %1414 = vmatpush1.bf16.msra.mxu0 %v1094
        %1415 = vmatprep.subr.bf16.mxu0 0
        %1416 = vmatpush1.bf16.msra.mxu0 %v1093
        %1417 = vmatprep.subr.bf16.mxu0 0
        %1418 = vmatpush1.bf16.msra.mxu0 %v1092
        %1419 = vmatprep.subr.bf16.mxu0 0
        %1420 = vmatpush1.bf16.msra.mxu0 %v1091
        %1421 = vmatprep.subr.bf16.mxu0 0
        %1422 = vmatpush1.bf16.msra.mxu0 %v1090
        %1423 = vmatprep.subr.bf16.mxu0 0
        %1424 = vmatpush1.bf16.msra.mxu0 %v1089
        %1425 = vmatprep.subr.bf16.mxu0 0
        %1426 = vmatpush2.bf16.msra.mxu0 %v1104
        %1427 = vmatprep.subr.bf16.mxu0 0
        %1428 = vmatpush2.bf16.msra.mxu0 %v1103
        %1429 = vmatprep.subr.bf16.mxu0 0
        %1430 = vmatpush2.bf16.msra.mxu0 %v1102
        %1431 = vmatprep.subr.bf16.mxu0 0
        %1432 = vmatpush2.bf16.msra.mxu0 %v1101
        %1433 = vmatprep.subr.bf16.mxu0 0
        %1434 = vmatpush2.bf16.msra.mxu0 %v1100
        %1435 = vmatprep.subr.bf16.mxu0 0
        %1436 = vmatpush2.bf16.msra.mxu0 %v1099
        %1437 = vmatprep.subr.bf16.mxu0 0
        %1438 = vmatpush2.bf16.msra.mxu0 %v1098
        %1439 = vmatprep.subr.bf16.mxu0 0
        %1440 = vmatpush2.bf16.msra.mxu0 %v1097
        %1441 = vmatprep.mubr.bf16.mxu0 %v553
        %1442 = vmatmul.mubr.bf16.gmra.mxu0 %v539
        %v1443 = vpop.f32.mrf.mxu0
        %v1444 = vadd.f32 %v1404, %v1443
        %v1445 = vpop.f32.mrf.mxu0
        %v1446 = vpop.f32.mrf.mxu0
        %v1447 = vpop.f32.mrf.mxu0
        %1448 = vdwg.mxu0
        %1449 = vmatprep.subr.bf16.mxu0 0
        %1450 = vmatpush1.bf16.msra.mxu0 %v1112
        %1451 = vmatprep.subr.bf16.mxu0 0
        %1452 = vmatpush1.bf16.msra.mxu0 %v1111
        %1453 = vmatprep.subr.bf16.mxu0 0
        %1454 = vmatpush1.bf16.msra.mxu0 %v1110
        %1455 = vmatprep.subr.bf16.mxu0 0
        %1456 = vmatpush1.bf16.msra.mxu0 %v1109
        %1457 = vmatprep.subr.bf16.mxu0 0
        %1458 = vmatpush1.bf16.msra.mxu0 %v1108
        %1459 = vmatprep.subr.bf16.mxu0 0
        %1460 = vmatpush1.bf16.msra.mxu0 %v1107
        %1461 = vmatprep.subr.bf16.mxu0 0
        %1462 = vmatpush1.bf16.msra.mxu0 %v1106
        %1463 = vmatprep.subr.bf16.mxu0 0
        %1464 = vmatpush1.bf16.msra.mxu0 %v1105
        %1465 = vmatprep.subr.bf16.mxu0 0
        %1466 = vmatpush2.bf16.msra.mxu0 %v1120
        %1467 = vmatprep.subr.bf16.mxu0 0
        %1468 = vmatpush2.bf16.msra.mxu0 %v1119
        %1469 = vmatprep.subr.bf16.mxu0 0
        %1470 = vmatpush2.bf16.msra.mxu0 %v1118
        %1471 = vmatprep.subr.bf16.mxu0 0
        %1472 = vmatpush2.bf16.msra.mxu0 %v1117
        %1473 = vmatprep.subr.bf16.mxu0 0
        %1474 = vmatpush2.bf16.msra.mxu0 %v1116
        %1475 = vmatprep.subr.bf16.mxu0 0
        %1476 = vmatpush2.bf16.msra.mxu0 %v1115
        %1477 = vmatprep.subr.bf16.mxu0 0
        %1478 = vmatpush2.bf16.msra.mxu0 %v1114
        %1479 = vmatprep.subr.bf16.mxu0 0
        %1480 = vmatpush2.bf16.msra.mxu0 %v1113
        %1481 = vmatprep.mubr.bf16.mxu0 %v562
        %1482 = vmatmul.mubr.bf16.gmra.mxu0 %v561
        %v1483 = vpop.f32.mrf.mxu0
        %v1484 = vadd.f32 %v1444, %v1483
        %v1485 = vpop.f32.mrf.mxu0
        %v1486 = vpop.f32.mrf.mxu0
        %v1487 = vpop.f32.mrf.mxu0
        %1488 = vdwg.mxu0
        %1489 = vmatprep.subr.bf16.mxu0 0
        %1490 = vmatpush1.bf16.msra.mxu0 %v1128
        %1491 = vmatprep.subr.bf16.mxu0 0
        %1492 = vmatpush1.bf16.msra.mxu0 %v1127
        %1493 = vmatprep.subr.bf16.mxu0 0
        %1494 = vmatpush1.bf16.msra.mxu0 %v1126
        %1495 = vmatprep.subr.bf16.mxu0 0
        %1496 = vmatpush1.bf16.msra.mxu0 %v1125
        %1497 = vmatprep.subr.bf16.mxu0 0
        %1498 = vmatpush1.bf16.msra.mxu0 %v1124
        %1499 = vmatprep.subr.bf16.mxu0 0
        %1500 = vmatpush1.bf16.msra.mxu0 %v1123
        %1501 = vmatprep.subr.bf16.mxu0 0
        %1502 = vmatpush1.bf16.msra.mxu0 %v1122
        %1503 = vmatprep.subr.bf16.mxu0 0
        %1504 = vmatpush1.bf16.msra.mxu0 %v1121
        %1505 = vmatprep.subr.bf16.mxu0 0
        %1506 = vmatpush2.bf16.msra.mxu0 %v1136
        %1507 = vmatprep.subr.bf16.mxu0 0
        %1508 = vmatpush2.bf16.msra.mxu0 %v1135
        %1509 = vmatprep.subr.bf16.mxu0 0
        %1510 = vmatpush2.bf16.msra.mxu0 %v1134
        %1511 = vmatprep.subr.bf16.mxu0 0
        %1512 = vmatpush2.bf16.msra.mxu0 %v1133
        %1513 = vmatprep.subr.bf16.mxu0 0
        %1514 = vmatpush2.bf16.msra.mxu0 %v1132
        %1515 = vmatprep.subr.bf16.mxu0 0
        %1516 = vmatpush2.bf16.msra.mxu0 %v1131
        %1517 = vmatprep.subr.bf16.mxu0 0
        %1518 = vmatpush2.bf16.msra.mxu0 %v1130
        %1519 = vmatprep.subr.bf16.mxu0 0
        %1520 = vmatpush2.bf16.msra.mxu0 %v1129
        %1521 = vmatprep.mubr.bf16.mxu0 %v560
        %1522 = vmatmul.mubr.bf16.gmra.mxu0 %v546
        %v1523 = vpop.f32.mrf.mxu0
        %v1524 = vadd.f32 %v1484, %v1523
        %v1525 = vpop.f32.mrf.mxu0
        %v1526 = vpop.f32.mrf.mxu0
        %v1527 = vpop.f32.mrf.mxu0
        %1528 = vdwg.mxu0
        %v1529 = vadd.f32 %v238, %v1524
        %1530 = vst [vmem:[#allocation2] sm:$0x3] %v1529
        %p1531 = scmp.eq.s32.totalorder %s17, 6
        // Predicated region
        $region45: #{img_forward.3} parent=39 // pred_check
          %p1532 = pneg %p1531
        $region46: #{img_forward.3} parent=39 // pred_check_branch
          %1534 = sbr.rel (%p1532) target = $region48
        $region47: #{img_forward.3} parent=39 // pred_region
          %v1535 = vld [vmem:[#allocation2] sm:$0x3]
          %v1536 = vld [vmem:[%s2] sm:$0x1]
          %v1538 = vlaneseq
          %v1539 = vshrl.u32 %v1538, 7
          %v1540 = vsub.s32 0, %v1539
          %v1541 = vrot.slane %v1536, %v1540
          %v1543 = vadd.f32 %v1535, %v1541
          %v1544 = vmax.f32 %v1543, 0.0
          %v1545 = vpack.c.bf16 %v1544, %v1544
          %v1546 = vld [vmem:[%s3] sm:$0xf]
          %v1547 = vld [vmem:[%s3 + $0x4] sm:$0xf]
          %v1548 = vld [vmem:[%s3 + $0x8] sm:$0xf]
          %v1549 = vld [vmem:[%s3 + $0xc] sm:$0xf]
          %v1550 = vld [vmem:[%s3 + $0x10] sm:$0xf]
          %v1551 = vld [vmem:[%s3 + $0x14] sm:$0xf]
          %v1552 = vld [vmem:[%s3 + $0x18] sm:$0xf]
          %v1553 = vld [vmem:[%s3 + $0x1c] sm:$0xf]
          %v1554 = vld [vmem:[%s3 + $0x20] sm:$0xf]
          %v1555 = vld [vmem:[%s3 + $0x24] sm:$0xf]
          %v1556 = vld [vmem:[%s3 + $0x28] sm:$0xf]
          %v1557 = vld [vmem:[%s3 + $0x2c] sm:$0xf]
          %v1558 = vld [vmem:[%s3 + $0x30] sm:$0xf]
          %v1559 = vld [vmem:[%s3 + $0x34] sm:$0xf]
          %v1560 = vld [vmem:[%s3 + $0x38] sm:$0xf]
          %v1561 = vld [vmem:[%s3 + $0x3c] sm:$0xf]
          %v1562 = vld [vmem:[%s4] sm:$0x1]
          %v1564 = vlaneseq
          %v1565 = vshrl.u32 %v1564, 7
          %v1566 = vsub.s32 0, %v1565
          %v1567 = vrot.slane %v1562, %v1566
          %v1585 = vunpack.c.l.b16 %v1546
          %v1586 = vunpack.c.l.b16 %v1547
          %v1587 = vunpack.c.l.b16 %v1548
          %v1588 = vunpack.c.l.b16 %v1549
          %v1589 = vunpack.c.l.b16 %v1550
          %v1590 = vunpack.c.l.b16 %v1551
          %v1591 = vunpack.c.l.b16 %v1552
          %v1592 = vunpack.c.l.b16 %v1553
          %v1593 = vunpack.c.l.b16 %v1554
          %v1594 = vunpack.c.l.b16 %v1555
          %v1595 = vunpack.c.l.b16 %v1556
          %v1596 = vunpack.c.l.b16 %v1557
          %v1597 = vunpack.c.l.b16 %v1558
          %v1598 = vunpack.c.l.b16 %v1559
          %v1599 = vunpack.c.l.b16 %v1560
          %v1600 = vunpack.c.l.b16 %v1561
          %v1601 = vpack.c.b16 %v1586, %v1585
          %v1602 = vpack.c.b16 %v1588, %v1587
          %v1603 = vpack.c.b16 %v1590, %v1589
          %v1604 = vpack.c.b16 %v1592, %v1591
          %v1605 = vpack.c.b16 %v1594, %v1593
          %v1606 = vpack.c.b16 %v1596, %v1595
          %v1607 = vpack.c.b16 %v1598, %v1597
          %v1608 = vpack.c.b16 %v1600, %v1599
          %1617 = vmatprep.subr.bf16.mxu0 0
          %1618 = vmatpush1.bf16.msra.mxu0 %v1608
          %1619 = vmatprep.subr.bf16.mxu0 0
          %1620 = vmatpush1.bf16.msra.mxu0 %v1607
          %1621 = vmatprep.subr.bf16.mxu0 0
          %1622 = vmatpush1.bf16.msra.mxu0 %v1606
          %1623 = vmatprep.subr.bf16.mxu0 0
          %1624 = vmatpush1.bf16.msra.mxu0 %v1605
          %1625 = vmatprep.subr.bf16.mxu0 0
          %1626 = vmatpush1.bf16.msra.mxu0 %v1604
          %1627 = vmatprep.subr.bf16.mxu0 0
          %1628 = vmatpush1.bf16.msra.mxu0 %v1603
          %1629 = vmatprep.subr.bf16.mxu0 0
          %1630 = vmatpush1.bf16.msra.mxu0 %v1602
          %1631 = vmatprep.subr.bf16.mxu0 0
          %1632 = vmatpush1.bf16.msra.mxu0 %v1601
          %1633 = vmatprep.subr.bf16.mxu0 0
          %1634 = vmatpush2.bf16.msra.mxu0 0
          %1635 = vmatprep.subr.bf16.mxu0 0
          %1636 = vmatpush2.bf16.msra.mxu0 0
          %1637 = vmatprep.subr.bf16.mxu0 0
          %1638 = vmatpush2.bf16.msra.mxu0 0
          %1639 = vmatprep.subr.bf16.mxu0 0
          %1640 = vmatpush2.bf16.msra.mxu0 0
          %1641 = vmatprep.subr.bf16.mxu0 0
          %1642 = vmatpush2.bf16.msra.mxu0 0
          %1643 = vmatprep.subr.bf16.mxu0 0
          %1644 = vmatpush2.bf16.msra.mxu0 0
          %1645 = vmatprep.subr.bf16.mxu0 0
          %1646 = vmatpush2.bf16.msra.mxu0 0
          %1647 = vmatprep.subr.bf16.mxu0 0
          %1648 = vmatpush2.bf16.msra.mxu0 0
          %1649 = vmatprep.mubr.bf16.mxu0 0
          %1650 = vmatmul.mubr.bf16.gmra.mxu0 %v1545
          %v1651 = vpop.f32.mrf.mxu0
          %v1652 = vadd.f32 %v1567, %v1651
          %v1653 = vpop.f32.mrf.mxu0
          %v1654 = vpop.f32.mrf.mxu0
          %v1655 = vpop.f32.mrf.mxu0
          %1656 = vdwg.mxu0
          %1657 = vst [vmem:[#allocation3] sm:$0x3] %v1652
        $region48: #{img_forward.3} parent=39 // pred_fallthru
          _
        // Predicated region
        $region49: #{img_forward.3} parent=39 // pred_check
          %p1658 = pneg %p145
        $region50: #{img_forward.3} parent=39 // pred_check_branch
          %1660 = sbr.rel (%p1658) target = $region52
        $region51: #{img_forward.3} parent=39 // pred_region
          %s1662 = ssub.s32 32, 32
          %1663 = vsyncadd [#allocation4], %s1662
          %s1665 = sshll.u32 [#allocation3], 4
          %s1666 = int_to_ptr.vmem [resolvable:$true] %s1665
          %1668 = dma.vmem_to_hbm [thread:$0]  %s1666, 32, %s5, [#allocation4]
        $region52: #{img_forward.3} parent=39 // pred_fallthru
          _
        // Predicated region
        $region53: #{img_forward.3} parent=39 // pred_check
          %p1669 = pneg %p145
        $region54: #{img_forward.3} parent=39 // pred_check_branch
          %1671 = sbr.rel (%p1669) target = $region56
        $region55: #{img_forward.3} parent=39 // pred_region
          %1672 = dma.done [#allocation4], 32
        $region56: #{img_forward.3} parent=39 // pred_fallthru
          _
      $region40: #{img_forward.3} parent=5 // pred_fallthru
        _
      %p1673 = scmp.le.s32.totalorder 2, %s12
      // Predicated region
      $region57: #{img_forward.3} parent=5 // pred_check
        %p1674 = pneg %p1673
      $region58: #{img_forward.3} parent=5 // pred_check_branch
        %1676 = sbr.rel (%p1674) target = $region60
      $region59: #{img_forward.3} parent=5 // pred_region
        %s1677 = ssub.s32 %s12, 2
      $region60: #{img_forward.3} parent=5 // pred_fallthru
        _
    $region6: #{img_forward.3} parent=1 // loop_footer
      %s16 = sadd.s32 1, %s12
    $region7: #{img_forward.3} parent=1 // loop_footer_branch
      %11 = sbr.rel target = $region3
    $region8: #{img_forward.3} parent=1 // loop_exit
      _
    %1678 = vsyncpa [#allocation4], 1
    %s1679 = scalar_lea.sflag [#allocation4], 1
    %1680 = vsyncpa %s1679, 1

</llo_original>
